<compile_context>
chip_gen: v5e
topology: v5e:2x2
jax: 0.10.0
libtpu: 0.0.40
codegen_flags: <defaults>
</compile_context>

<pallas_src>
import jax
import jax.numpy as jnp
from jax import lax
from jax.experimental import pallas as pl
from jax.experimental.pallas import tpu as pltpu


# ------------------------------ Pallas kernel ------------------------------ #

def bigru_kernel(x_ref,                 # (T*Bb, D)   time-major within block
                 wih_ref, bih_ref,      # (D, 6Hp), (1, 6Hp)
                 whh_f_ref, bhhn_f_ref,  # (Hp, 3Hp), (1, Hp)
                 whh_b_ref, bhhn_b_ref,  # (Hp, 3Hp), (1, Hp)
                 fcw_f_ref, fcw_b_ref,   # (1, Hp), (1, Hp)
                 fcb_ref,                # (1, 128)
                 out_ref,                # (Bb, 128)
                 gi_ref, hf_ref, hb_ref  # scratch: (T*Bb, 6Hp), (Bb,Hp), (Bb,Hp)
                 ):
    TB, _ = x_ref.shape
    Bb, Hp = hf_ref.shape
    T = TB // Bb
    G3 = 3 * Hp

    # ---- Phase 1: hoisted input projection — one big MXU matmul. ----
    # gi[:, :3Hp] = forward-direction gates, gi[:, 3Hp:] = backward-direction
    # gates; all input-side biases (and the r/z parts of b_hh) already folded.
    gi_ref[...] = (
        jnp.dot(x_ref[...], wih_ref[...], preferred_element_type=jnp.float32)
        + bih_ref[...])

    # ---- Phase 2: bidirectional recurrence (the truly serial part). ----
    hf_ref[...] = jnp.zeros_like(hf_ref)
    hb_ref[...] = jnp.zeros_like(hb_ref)
    whh_f = whh_f_ref[...]
    whh_b = whh_b_ref[...]
    # Hoist the (1, Hp) -> (Bb, Hp) bias broadcasts out of the loop.
    bhhn_f = jnp.broadcast_to(bhhn_f_ref[...], (Bb, Hp))
    bhhn_b = jnp.broadcast_to(bhhn_b_ref[...], (Bb, Hp))

    def cell(gi, h, whh, bhh_n):
        # PyTorch GRU semantics; gi already includes b_ih (+ b_hh for r/z).
        gh = jnp.dot(h, whh, preferred_element_type=jnp.float32)     # (Bb, 3Hp)
        r = jax.nn.sigmoid(gi[:, 0:Hp] + gh[:, 0:Hp])
        z = jax.nn.sigmoid(gi[:, Hp:2 * Hp] + gh[:, Hp:2 * Hp])
        n = jnp.tanh(gi[:, 2 * Hp:G3] + r * (gh[:, 2 * Hp:G3] + bhh_n))
        return (1.0 - z) * n + z * h

    def step(t, carry):
        row_f = pl.multiple_of(t * Bb, Bb)              # forward reads time t
        row_b = pl.multiple_of((T - 1 - t) * Bb, Bb)    # backward reads T-1-t
        gi_f = gi_ref[pl.ds(row_f, Bb), pl.ds(0, G3)]
        gi_b = gi_ref[pl.ds(row_b, Bb), pl.ds(G3, G3)]
        hf_ref[...] = cell(gi_f, hf_ref[...], whh_f, bhhn_f)
        hb_ref[...] = cell(gi_b, hb_ref[...], whh_b, bhhn_b)
        return carry

    lax.fori_loop(0, T, step, 0, unroll=True if T <= 32 else 8)

    # ---- Phase 3: Linear(2H, 1) head — VPU multiply + lane reduction. ----
    head = (jnp.sum(hf_ref[...] * fcw_f_ref[...], axis=-1, keepdims=True)
            + jnp.sum(hb_ref[...] * fcw_b_ref[...], axis=-1, keepdims=True))
    out_ref[...] = jnp.broadcast_to(head, out_ref.shape) + fcb_ref[...]


# ---------------------------- Parameter packing ----------------------------- #

def _round_up(v, m):
    return ((v + m - 1) // m) * m


def _pack_direction(w_ih, w_hh, b_ih, b_hh, H, Hp):
    """PyTorch (3H, in) weights -> (in, 3*Hp) pre-transposed, lane-padded."""
    pad_c = Hp - H

    def gate_w(w, pad_rows):
        outs = []
        for g in range(3):                                   # gate order r, z, n
            blk = w[g * H:(g + 1) * H, :].T                  # (in, H)
            blk = jnp.pad(blk, ((0, pad_rows), (0, pad_c)))  # pad lanes (+rows)
            outs.append(blk)
        return outs

    def gate_b(b):
        return [jnp.pad(b[g * H:(g + 1) * H], (0, pad_c)) for g in range(3)]

    wih_r, wih_z, wih_n = gate_w(w_ih, 0)        # (D, Hp) each
    whh_r, whh_z, whh_n = gate_w(w_hh, pad_c)    # (Hp, Hp) each (rows padded)
    bih_r, bih_z, bih_n = gate_b(b_ih)
    bhh_r, bhh_z, bhh_n = gate_b(b_hh)

    wih = jnp.concatenate([wih_r, wih_z, wih_n], axis=1)     # (D, 3Hp)
    whh = jnp.concatenate([whh_r, whh_z, whh_n], axis=1)     # (Hp, 3Hp)
    # Fold b_ih (all gates) + the loop-invariant r/z parts of b_hh into the
    # bias added once in phase 1; b_hh_n must stay inside the reset product.
    bih = jnp.concatenate([bih_r + bhh_r, bih_z + bhh_z, bih_n])   # (3Hp,)
    return wih, whh, bih, bhh_n[None, :]


def pack_params(raw, hidden_dim):
    H = hidden_dim
    Hp = _round_up(H, 128)    # lane-align each gate block
    wih_f, whh_f, bih_f, bhhn_f = _pack_direction(
        raw["w_ih_f"], raw["w_hh_f"], raw["b_ih_f"], raw["b_hh_f"], H, Hp)
    wih_b, whh_b, bih_b, bhhn_b = _pack_direction(
        raw["w_ih_b"], raw["w_hh_b"], raw["b_ih_b"], raw["b_hh_b"], H, Hp)
    fc_w = raw["fc_w"]
    return {
        "wih": jnp.concatenate([wih_f, wih_b], axis=1),           # (D, 6Hp)
        "bih": jnp.concatenate([bih_f, bih_b])[None, :],          # (1, 6Hp)
        "whh_f": whh_f, "bhhn_f": bhhn_f,
        "whh_b": whh_b, "bhhn_b": bhhn_b,
        "fcw_f": jnp.pad(fc_w[:, :H], ((0, 0), (0, Hp - H))),     # (1, Hp)
        "fcw_b": jnp.pad(fc_w[:, H:], ((0, 0), (0, Hp - H))),     # (1, Hp)
        "fcb": jnp.tile(raw["fc_b"].reshape(1, 1), (1, 128)),     # (1, 128)
    }


# --------------------------------- Wrapper ---------------------------------- #

def bigru_forward(x, packed, *, b_block=8):
    """x: (B, T, D) float32 (batch_first, as in the PyTorch module)."""
    B, T, D = x.shape
    Hp = packed["whh_f"].shape[0]
    G6 = packed["wih"].shape[1]
    G3 = G6 // 2

    Bp = _round_up(max(B, 1), b_block)
    nb = Bp // b_block

    # Pad batch to a multiple of 8 sublanes, then regroup batch-block-major,
    # time-major within each block: x_blk[b, t*Bb + i, :] = x[b*Bb + i, t, :].
    # All reshaping happens in the wrapper so the kernel only sees clean 2-D
    # (T*Bb, D) slabs (no in-kernel relayout).
    x_pad = jnp.pad(x.astype(jnp.float32), ((0, Bp - B), (0, 0), (0, 0)))
    x_blk = (x_pad.reshape(nb, b_block, T, D)
             .transpose(0, 2, 1, 3)
             .reshape(nb, T * b_block, D))

    # VMEM budget (double-buffered inputs/outputs + persistent scratch).
    itemsize = 4
    in_bytes = (T * b_block * D + D * G6 + G6
                + 2 * (Hp * G3 + Hp) + 2 * Hp + 128) * itemsize
    out_bytes = b_block * 128 * itemsize
    scratch_bytes = (T * b_block * G6 + 2 * b_block * Hp) * itemsize
    vmem_limit = min(32 * 1024 * 1024,
                     max(16 * 1024 * 1024,
                         2 * (2 * (in_bytes + out_bytes) + scratch_bytes)))

    flops = (2 * T * Bp * D * G6            # hoisted input projection
             + 2 * 2 * T * Bp * Hp * G3     # recurrence, both directions
             + 4 * Bp * Hp)                 # FC head
    transcendentals = 2 * T * Bp * 3 * Hp
    param_elems = sum(int(packed[k].size) for k in
                      ("wih", "bih", "whh_f", "bhhn_f", "whh_b", "bhhn_b",
                       "fcw_f", "fcw_b", "fcb"))
    bytes_accessed = itemsize * (int(x_blk.size) + nb * param_elems + Bp * 128)

    out_pad = pl.pallas_call(
        bigru_kernel,
        out_shape=jax.ShapeDtypeStruct((Bp, 128), jnp.float32),
        grid_spec=pltpu.PrefetchScalarGridSpec(
            num_scalar_prefetch=0,
            grid=(nb,),
            in_specs=[
                pl.BlockSpec((None, T * b_block, D), lambda b: (b, 0, 0)),
                pl.BlockSpec((D, G6), lambda b: (0, 0)),
                pl.BlockSpec((1, G6), lambda b: (0, 0)),
                pl.BlockSpec((Hp, G3), lambda b: (0, 0)),
                pl.BlockSpec((1, Hp), lambda b: (0, 0)),
                pl.BlockSpec((Hp, G3), lambda b: (0, 0)),
                pl.BlockSpec((1, Hp), lambda b: (0, 0)),
                pl.BlockSpec((1, Hp), lambda b: (0, 0)),
                pl.BlockSpec((1, Hp), lambda b: (0, 0)),
                pl.BlockSpec((1, 128), lambda b: (0, 0)),
            ],
            out_specs=pl.BlockSpec((b_block, 128), lambda b: (b, 0)),
            scratch_shapes=[
                pltpu.VMEM((T * b_block, G6), jnp.float32),   # gi (all steps)
                pltpu.VMEM((b_block, Hp), jnp.float32),       # h_forward
                pltpu.VMEM((b_block, Hp), jnp.float32),       # h_backward
            ],
        ),
        compiler_params=pltpu.CompilerParams(
            dimension_semantics=("parallel",),      # megacore split on v7x
            vmem_limit_bytes=int(vmem_limit),
        ),
        cost_estimate=pl.CostEstimate(
            flops=int(flops),
            transcendentals=int(transcendentals),
            bytes_accessed=int(bytes_accessed)),
    )(x_blk, packed["wih"], packed["bih"],
      packed["whh_f"], packed["bhhn_f"],
      packed["whh_b"], packed["bhhn_b"],
      packed["fcw_f"], packed["fcw_b"], packed["fcb"])

    output = out_pad[:B, 0]                      # drop batch padding, squeeze
    return output, jnp.ones((B, T), dtype=x.dtype)


# ------------------------ Raw (PyTorch-layout) params ----------------------- #

def init_raw_params(key, input_dim, hidden_dim):
    """Mirror torch.nn.GRU / nn.Linear default init U(-k, k), PyTorch layout."""
    H = hidden_dim
    kg = 1.0 / (H ** 0.5)
    kf = 1.0 / ((2 * H) ** 0.5)
    ks = jax.random.split(key, 10)

    def u(k, shape, bound):
        return jax.random.uniform(k, shape, jnp.float32, -bound, bound)

    return {
        "w_ih_f": u(ks[0], (3 * H, input_dim), kg),
        "w_hh_f": u(ks[1], (3 * H, H), kg),
        "b_ih_f": u(ks[2], (3 * H,), kg),
        "b_hh_f": u(ks[3], (3 * H,), kg),
        "w_ih_b": u(ks[4], (3 * H, input_dim), kg),
        "w_hh_b": u(ks[5], (3 * H, H), kg),
        "b_ih_b": u(ks[6], (3 * H,), kg),
        "b_hh_b": u(ks[7], (3 * H,), kg),
        "fc_w": u(ks[8], (1, 2 * H), kf),
        "fc_b": u(ks[9], (1,), kf),
    }


# ---------------------- Independent pure-JAX reference ---------------------- #

def bigru_reference(x, raw):
    """Straight transcription of torch GRU equations from the raw params."""
    B, T, _ = x.shape
    H = raw["w_hh_f"].shape[1]

    def run_dir(xs, w_ih, w_hh, b_ih, b_hh):
        def step(h, x_t):
            gi = x_t @ w_ih.T + b_ih
            gh = h @ w_hh.T + b_hh
            i_r, i_z, i_n = jnp.split(gi, 3, axis=1)
            h_r, h_z, h_n = jnp.split(gh, 3, axis=1)
            r = jax.nn.sigmoid(i_r + h_r)
            z = jax.nn.sigmoid(i_z + h_z)
            n = jnp.tanh(i_n + r * h_n)
            return (1.0 - z) * n + z * h, None
        h0 = jnp.zeros((xs.shape[1], H), jnp.float32)
        h_last, _ = lax.scan(step, h0, xs)
        return h_last

    xs = jnp.transpose(x, (1, 0, 2))             # (T, B, D)
    h_f = run_dir(xs, raw["w_ih_f"], raw["w_hh_f"], raw["b_ih_f"], raw["b_hh_f"])
    h_b = run_dir(xs[::-1], raw["w_ih_b"], raw["w_hh_b"],
                  raw["b_ih_b"], raw["b_hh_b"])
    hidden = jnp.concatenate([h_f, h_b], axis=1)
    out = hidden @ raw["fc_w"].T + raw["fc_b"]
    return out[:, 0], jnp.ones((B, T), dtype=x.dtype)


# ----------------------------------- Main ------------------------------------ #

if __name__ == "__main__":
    B, T, D, H = 2, 8, 16, 32

    key = jax.random.PRNGKey(0)
    k_x, k_p = jax.random.split(key)
    x = jax.random.normal(k_x, (B, T, D), jnp.float32)
    raw = init_raw_params(k_p, D, H)
    packed = pack_params(raw, H)

    out, ones = jax.block_until_ready(bigru_forward(x, packed))
    ref_out, ref_ones = jax.block_until_ready(bigru_reference(x, raw))

    assert out.shape == (B,) and ones.shape == (B, T)
    assert jnp.allclose(out, ref_out, atol=1e-4, rtol=1e-4), (out, ref_out)
    assert jnp.all(ones == 1.0)

    print("KERNEL_OK")
</pallas_src>

<mosaic_0001>
module attributes {stable_mosaic.version = 11 : i64} {
  func.func @bigru_kernel(%arg0: i32, %arg1: memref<1x64x16xf32, #tpu.memory_space<vmem>>, %arg2: memref<16x768xf32, #tpu.memory_space<vmem>>, %arg3: memref<1x768xf32, #tpu.memory_space<vmem>>, %arg4: memref<128x384xf32, #tpu.memory_space<vmem>>, %arg5: memref<1x128xf32, #tpu.memory_space<vmem>>, %arg6: memref<128x384xf32, #tpu.memory_space<vmem>>, %arg7: memref<1x128xf32, #tpu.memory_space<vmem>>, %arg8: memref<1x128xf32, #tpu.memory_space<vmem>>, %arg9: memref<1x128xf32, #tpu.memory_space<vmem>>, %arg10: memref<1x128xf32, #tpu.memory_space<vmem>>, %arg11: memref<8x128xf32, #tpu.memory_space<vmem>>, %arg12: memref<64x768xf32, #tpu.memory_space<vmem>>, %arg13: memref<8x128xf32, #tpu.memory_space<vmem>>, %arg14: memref<8x128xf32, #tpu.memory_space<vmem>>) attributes {dimension_semantics = [#tpu.dimension_semantics<parallel>], iteration_bounds = array<i64: 1>, scalar_prefetch = 0 : i64, scratch_operands = 3 : i64, tpu.core_type = #tpu.core_type<tc>, window_params = [{transform_indices = @transform_0, window_bounds = array<i64: 1, 64, 16>}, {pipeline_mode = #tpu.pipeline_mode<synchronous>, transform_indices = @transform_1, window_bounds = array<i64: 16, 768>}, {pipeline_mode = #tpu.pipeline_mode<synchronous>, transform_indices = @transform_2, window_bounds = array<i64: 1, 768>}, {pipeline_mode = #tpu.pipeline_mode<synchronous>, transform_indices = @transform_3, window_bounds = array<i64: 128, 384>}, {pipeline_mode = #tpu.pipeline_mode<synchronous>, transform_indices = @transform_4, window_bounds = array<i64: 1, 128>}, {pipeline_mode = #tpu.pipeline_mode<synchronous>, transform_indices = @transform_5, window_bounds = array<i64: 128, 384>}, {pipeline_mode = #tpu.pipeline_mode<synchronous>, transform_indices = @transform_6, window_bounds = array<i64: 1, 128>}, {pipeline_mode = #tpu.pipeline_mode<synchronous>, transform_indices = @transform_7, window_bounds = array<i64: 1, 128>}, {pipeline_mode = #tpu.pipeline_mode<synchronous>, transform_indices = @transform_8, window_bounds = array<i64: 1, 128>}, {pipeline_mode = #tpu.pipeline_mode<synchronous>, transform_indices = @transform_9, window_bounds = array<i64: 1, 128>}, {transform_indices = @transform_10, window_bounds = array<i64: 8, 128>}]} {
    %c0 = arith.constant 0 : index
    %c0_0 = arith.constant 0 : index
    %c0_1 = arith.constant 0 : index
    %0 = vector.load %arg1[%c0, %c0_0, %c0_1] : memref<1x64x16xf32, #tpu.memory_space<vmem>>, vector<1x64x16xf32>
    %1 = vector.shape_cast %0 : vector<1x64x16xf32> to vector<64x16xf32>
    %c0_2 = arith.constant 0 : index
    %c0_3 = arith.constant 0 : index
    %2 = vector.load %arg2[%c0_2, %c0_3] : memref<16x768xf32, #tpu.memory_space<vmem>>, vector<16x768xf32>
    %cst = arith.constant dense<0.000000e+00> : vector<64x768xf32>
    %3 = tpu.matmul %1, %2, %cst {dimension_numbers = #tpu.dot_dimension_numbers<[1], [0], [0], [1], [0, 0, 1, 1], [], []>} : vector<64x16xf32>, vector<16x768xf32>, vector<64x768xf32> -> vector<64x768xf32>
    %c0_4 = arith.constant 0 : index
    %c0_5 = arith.constant 0 : index
    %4 = vector.load %arg3[%c0_4, %c0_5] : memref<1x768xf32, #tpu.memory_space<vmem>>, vector<1x768xf32>
    %5 = vector.broadcast %4 : vector<1x768xf32> to vector<64x768xf32>
    %6 = arith.addf %3, %5 : vector<64x768xf32>
    %c0_6 = arith.constant 0 : index
    %c0_7 = arith.constant 0 : index
    %7 = vector.load %arg12[%c0_6, %c0_7] : memref<64x768xf32, #tpu.memory_space<vmem>>, vector<64x768xf32>
    tpu.vector_store %arg12[%c0_6, %c0_7], %6 {strides = array<i32>} : memref<64x768xf32, #tpu.memory_space<vmem>>, vector<64x768xf32>,
    %cst_8 = arith.constant 0.000000e+00 : f32
    %8 = vector.broadcast %cst_8 : f32 to vector<8x128xf32>
    %c0_9 = arith.constant 0 : index
    %c0_10 = arith.constant 0 : index
    %9 = vector.load %arg13[%c0_9, %c0_10] : memref<8x128xf32, #tpu.memory_space<vmem>>, vector<8x128xf32>
    tpu.vector_store %arg13[%c0_9, %c0_10], %8 {strides = array<i32>} : memref<8x128xf32, #tpu.memory_space<vmem>>, vector<8x128xf32>,
    %cst_11 = arith.constant 0.000000e+00 : f32
    %10 = vector.broadcast %cst_11 : f32 to vector<8x128xf32>
    %c0_12 = arith.constant 0 : index
    %c0_13 = arith.constant 0 : index
    %11 = vector.load %arg14[%c0_12, %c0_13] : memref<8x128xf32, #tpu.memory_space<vmem>>, vector<8x128xf32>
    tpu.vector_store %arg14[%c0_12, %c0_13], %10 {strides = array<i32>} : memref<8x128xf32, #tpu.memory_space<vmem>>, vector<8x128xf32>,
    %c0_14 = arith.constant 0 : index
    %c0_15 = arith.constant 0 : index
    %12 = vector.load %arg4[%c0_14, %c0_15] : memref<128x384xf32, #tpu.memory_space<vmem>>, vector<128x384xf32>
    %c0_16 = arith.constant 0 : index
    %c0_17 = arith.constant 0 : index
    %13 = vector.load %arg6[%c0_16, %c0_17] : memref<128x384xf32, #tpu.memory_space<vmem>>, vector<128x384xf32>
    %c0_18 = arith.constant 0 : index
    %c0_19 = arith.constant 0 : index
    %14 = vector.load %arg5[%c0_18, %c0_19] : memref<1x128xf32, #tpu.memory_space<vmem>>, vector<1x128xf32>
    %15 = vector.shape_cast %14 : vector<1x128xf32> to vector<1x128xf32>
    %16 = vector.broadcast %15 : vector<1x128xf32> to vector<8x128xf32>
    %c0_20 = arith.constant 0 : index
    %c0_21 = arith.constant 0 : index
    %17 = vector.load %arg7[%c0_20, %c0_21] : memref<1x128xf32, #tpu.memory_space<vmem>>, vector<1x128xf32>
    %18 = vector.shape_cast %17 : vector<1x128xf32> to vector<1x128xf32>
    %19 = vector.broadcast %18 : vector<1x128xf32> to vector<8x128xf32>
    %c0_i32 = arith.constant 0 : i32
    %c8_i32 = arith.constant 8 : i32
    %20 = arith.muli %c0_i32, %c8_i32 : i32
    %21 = tpu.assume_multiple %20, 8 : i32
    %c7_i32 = arith.constant 7 : i32
    %22 = arith.subi %c7_i32, %c0_i32 : i32
    %c8_i32_22 = arith.constant 8 : i32
    %23 = arith.muli %22, %c8_i32_22 : i32
    %24 = tpu.assume_multiple %23, 8 : i32
    %25 = arith.index_cast %21 : i32 to index
    %c0_23 = arith.constant 0 : index
    %26 = vector.load %arg12[%25, %c0_23] : memref<64x768xf32, #tpu.memory_space<vmem>>, vector<8x384xf32>
    %27 = arith.index_cast %24 : i32 to index
    %c384 = arith.constant 384 : index
    %28 = vector.load %arg12[%27, %c384] : memref<64x768xf32, #tpu.memory_space<vmem>>, vector<8x384xf32>
    %c0_24 = arith.constant 0 : index
    %c0_25 = arith.constant 0 : index
    %29 = vector.load %arg13[%c0_24, %c0_25] : memref<8x128xf32, #tpu.memory_space<vmem>>, vector<8x128xf32>
    %cst_26 = arith.constant dense<0.000000e+00> : vector<8x384xf32>
    %30 = tpu.matmul %29, %12, %cst_26 {dimension_numbers = #tpu.dot_dimension_numbers<[1], [0], [0], [1], [0, 0, 1, 1], [], []>} : vector<8x128xf32>, vector<128x384xf32>, vector<8x384xf32> -> vector<8x384xf32>
    %31 = vector.extract_strided_slice %26 {offsets = [0, 0], sizes = [8, 128], strides = [1, 1]} : vector<8x384xf32> to vector<8x128xf32>
    %32 = vector.extract_strided_slice %30 {offsets = [0, 0], sizes = [8, 128], strides = [1, 1]} : vector<8x384xf32> to vector<8x128xf32>
    %33 = arith.addf %31, %32 : vector<8x128xf32>
    %34 = arith.negf %33 : vector<8x128xf32>
    %35 = math.exp %34 : vector<8x128xf32>
    %cst_27 = arith.constant 1.000000e+00 : f32
    %36 = vector.broadcast %cst_27 : f32 to vector<8x128xf32>
    %37 = arith.addf %36, %35 : vector<8x128xf32>
    %38 = arith.divf %36, %37 : vector<8x128xf32>
    %39 = vector.extract_strided_slice %26 {offsets = [0, 128], sizes = [8, 128], strides = [1, 1]} : vector<8x384xf32> to vector<8x128xf32>
    %40 = vector.extract_strided_slice %30 {offsets = [0, 128], sizes = [8, 128], strides = [1, 1]} : vector<8x384xf32> to vector<8x128xf32>
    %41 = arith.addf %39, %40 : vector<8x128xf32>
    %42 = arith.negf %41 : vector<8x128xf32>
    %43 = math.exp %42 : vector<8x128xf32>
    %cst_28 = arith.constant 1.000000e+00 : f32
    %44 = vector.broadcast %cst_28 : f32 to vector<8x128xf32>
    %45 = arith.addf %44, %43 : vector<8x128xf32>
    %46 = arith.divf %44, %45 : vector<8x128xf32>
    %47 = vector.extract_strided_slice %26 {offsets = [0, 256], sizes = [8, 128], strides = [1, 1]} : vector<8x384xf32> to vector<8x128xf32>
    %48 = vector.extract_strided_slice %30 {offsets = [0, 256], sizes = [8, 128], strides = [1, 1]} : vector<8x384xf32> to vector<8x128xf32>
    %49 = arith.addf %48, %16 : vector<8x128xf32>
    %50 = arith.mulf %38, %49 : vector<8x128xf32>
    %51 = arith.addf %47, %50 : vector<8x128xf32>
    %52 = math.tanh %51 : vector<8x128xf32>
    %cst_29 = arith.constant 1.000000e+00 : f32
    %53 = vector.broadcast %cst_29 : f32 to vector<8x128xf32>
    %54 = arith.subf %53, %46 : vector<8x128xf32>
    %55 = arith.mulf %54, %52 : vector<8x128xf32>
    %56 = arith.mulf %46, %29 : vector<8x128xf32>
    %57 = arith.addf %55, %56 : vector<8x128xf32>
    %c0_30 = arith.constant 0 : index
    %c0_31 = arith.constant 0 : index
    %58 = vector.load %arg13[%c0_30, %c0_31] : memref<8x128xf32, #tpu.memory_space<vmem>>, vector<8x128xf32>
    tpu.vector_store %arg13[%c0_30, %c0_31], %57 {strides = array<i32>} : memref<8x128xf32, #tpu.memory_space<vmem>>, vector<8x128xf32>,
    %c0_32 = arith.constant 0 : index
    %c0_33 = arith.constant 0 : index
    %59 = vector.load %arg14[%c0_32, %c0_33] : memref<8x128xf32, #tpu.memory_space<vmem>>, vector<8x128xf32>
    %cst_34 = arith.constant dense<0.000000e+00> : vector<8x384xf32>
    %60 = tpu.matmul %59, %13, %cst_34 {dimension_numbers = #tpu.dot_dimension_numbers<[1], [0], [0], [1], [0, 0, 1, 1], [], []>} : vector<8x128xf32>, vector<128x384xf32>, vector<8x384xf32> -> vector<8x384xf32>
    %61 = vector.extract_strided_slice %28 {offsets = [0, 0], sizes = [8, 128], strides = [1, 1]} : vector<8x384xf32> to vector<8x128xf32>
    %62 = vector.extract_strided_slice %60 {offsets = [0, 0], sizes = [8, 128], strides = [1, 1]} : vector<8x384xf32> to vector<8x128xf32>
    %63 = arith.addf %61, %62 : vector<8x128xf32>
    %64 = arith.negf %63 : vector<8x128xf32>
    %65 = math.exp %64 : vector<8x128xf32>
    %cst_35 = arith.constant 1.000000e+00 : f32
    %66 = vector.broadcast %cst_35 : f32 to vector<8x128xf32>
    %67 = arith.addf %66, %65 : vector<8x128xf32>
    %68 = arith.divf %66, %67 : vector<8x128xf32>
    %69 = vector.extract_strided_slice %28 {offsets = [0, 128], sizes = [8, 128], strides = [1, 1]} : vector<8x384xf32> to vector<8x128xf32>
    %70 = vector.extract_strided_slice %60 {offsets = [0, 128], sizes = [8, 128], strides = [1, 1]} : vector<8x384xf32> to vector<8x128xf32>
    %71 = arith.addf %69, %70 : vector<8x128xf32>
    %72 = arith.negf %71 : vector<8x128xf32>
    %73 = math.exp %72 : vector<8x128xf32>
    %cst_36 = arith.constant 1.000000e+00 : f32
    %74 = vector.broadcast %cst_36 : f32 to vector<8x128xf32>
    %75 = arith.addf %74, %73 : vector<8x128xf32>
    %76 = arith.divf %74, %75 : vector<8x128xf32>
    %77 = vector.extract_strided_slice %28 {offsets = [0, 256], sizes = [8, 128], strides = [1, 1]} : vector<8x384xf32> to vector<8x128xf32>
    %78 = vector.extract_strided_slice %60 {offsets = [0, 256], sizes = [8, 128], strides = [1, 1]} : vector<8x384xf32> to vector<8x128xf32>
    %79 = arith.addf %78, %19 : vector<8x128xf32>
    %80 = arith.mulf %68, %79 : vector<8x128xf32>
    %81 = arith.addf %77, %80 : vector<8x128xf32>
    %82 = math.tanh %81 : vector<8x128xf32>
    %cst_37 = arith.constant 1.000000e+00 : f32
    %83 = vector.broadcast %cst_37 : f32 to vector<8x128xf32>
    %84 = arith.subf %83, %76 : vector<8x128xf32>
    %85 = arith.mulf %84, %82 : vector<8x128xf32>
    %86 = arith.mulf %76, %59 : vector<8x128xf32>
    %87 = arith.addf %85, %86 : vector<8x128xf32>
    %c0_38 = arith.constant 0 : index
    %c0_39 = arith.constant 0 : index
    %88 = vector.load %arg14[%c0_38, %c0_39] : memref<8x128xf32, #tpu.memory_space<vmem>>, vector<8x128xf32>
    tpu.vector_store %arg14[%c0_38, %c0_39], %87 {strides = array<i32>} : memref<8x128xf32, #tpu.memory_space<vmem>>, vector<8x128xf32>,
    %c1_i32 = arith.constant 1 : i32
    %c8_i32_40 = arith.constant 8 : i32
    %89 = arith.muli %c1_i32, %c8_i32_40 : i32
    %90 = tpu.assume_multiple %89, 8 : i32
    %c7_i32_41 = arith.constant 7 : i32
    %91 = arith.subi %c7_i32_41, %c1_i32 : i32
    %c8_i32_42 = arith.constant 8 : i32
    %92 = arith.muli %91, %c8_i32_42 : i32
    %93 = tpu.assume_multiple %92, 8 : i32
    %94 = arith.index_cast %90 : i32 to index
    %c0_43 = arith.constant 0 : index
    %95 = vector.load %arg12[%94, %c0_43] : memref<64x768xf32, #tpu.memory_space<vmem>>, vector<8x384xf32>
    %96 = arith.index_cast %93 : i32 to index
    %c384_44 = arith.constant 384 : index
    %97 = vector.load %arg12[%96, %c384_44] : memref<64x768xf32, #tpu.memory_space<vmem>>, vector<8x384xf32>
    %c0_45 = arith.constant 0 : index
    %c0_46 = arith.constant 0 : index
    %98 = vector.load %arg13[%c0_45, %c0_46] : memref<8x128xf32, #tpu.memory_space<vmem>>, vector<8x128xf32>
    %cst_47 = arith.constant dense<0.000000e+00> : vector<8x384xf32>
    %99 = tpu.matmul %98, %12, %cst_47 {dimension_numbers = #tpu.dot_dimension_numbers<[1], [0], [0], [1], [0, 0, 1, 1], [], []>} : vector<8x128xf32>, vector<128x384xf32>, vector<8x384xf32> -> vector<8x384xf32>
    %100 = vector.extract_strided_slice %95 {offsets = [0, 0], sizes = [8, 128], strides = [1, 1]} : vector<8x384xf32> to vector<8x128xf32>
    %101 = vector.extract_strided_slice %99 {offsets = [0, 0], sizes = [8, 128], strides = [1, 1]} : vector<8x384xf32> to vector<8x128xf32>
    %102 = arith.addf %100, %101 : vector<8x128xf32>
    %103 = arith.negf %102 : vector<8x128xf32>
    %104 = math.exp %103 : vector<8x128xf32>
    %cst_48 = arith.constant 1.000000e+00 : f32
    %105 = vector.broadcast %cst_48 : f32 to vector<8x128xf32>
    %106 = arith.addf %105, %104 : vector<8x128xf32>
    %107 = arith.divf %105, %106 : vector<8x128xf32>
    %108 = vector.extract_strided_slice %95 {offsets = [0, 128], sizes = [8, 128], strides = [1, 1]} : vector<8x384xf32> to vector<8x128xf32>
    %109 = vector.extract_strided_slice %99 {offsets = [0, 128], sizes = [8, 128], strides = [1, 1]} : vector<8x384xf32> to vector<8x128xf32>
    %110 = arith.addf %108, %109 : vector<8x128xf32>
    %111 = arith.negf %110 : vector<8x128xf32>
    %112 = math.exp %111 : vector<8x128xf32>
    %cst_49 = arith.constant 1.000000e+00 : f32
    %113 = vector.broadcast %cst_49 : f32 to vector<8x128xf32>
    %114 = arith.addf %113, %112 : vector<8x128xf32>
    %115 = arith.divf %113, %114 : vector<8x128xf32>
    %116 = vector.extract_strided_slice %95 {offsets = [0, 256], sizes = [8, 128], strides = [1, 1]} : vector<8x384xf32> to vector<8x128xf32>
    %117 = vector.extract_strided_slice %99 {offsets = [0, 256], sizes = [8, 128], strides = [1, 1]} : vector<8x384xf32> to vector<8x128xf32>
    %118 = arith.addf %117, %16 : vector<8x128xf32>
    %119 = arith.mulf %107, %118 : vector<8x128xf32>
    %120 = arith.addf %116, %119 : vector<8x128xf32>
    %121 = math.tanh %120 : vector<8x128xf32>
    %cst_50 = arith.constant 1.000000e+00 : f32
    %122 = vector.broadcast %cst_50 : f32 to vector<8x128xf32>
    %123 = arith.subf %122, %115 : vector<8x128xf32>
    %124 = arith.mulf %123, %121 : vector<8x128xf32>
    %125 = arith.mulf %115, %98 : vector<8x128xf32>
    %126 = arith.addf %124, %125 : vector<8x128xf32>
    %c0_51 = arith.constant 0 : index
    %c0_52 = arith.constant 0 : index
    %127 = vector.load %arg13[%c0_51, %c0_52] : memref<8x128xf32, #tpu.memory_space<vmem>>, vector<8x128xf32>
    tpu.vector_store %arg13[%c0_51, %c0_52], %126 {strides = array<i32>} : memref<8x128xf32, #tpu.memory_space<vmem>>, vector<8x128xf32>,
    %c0_53 = arith.constant 0 : index
    %c0_54 = arith.constant 0 : index
    %128 = vector.load %arg14[%c0_53, %c0_54] : memref<8x128xf32, #tpu.memory_space<vmem>>, vector<8x128xf32>
    %cst_55 = arith.constant dense<0.000000e+00> : vector<8x384xf32>
    %129 = tpu.matmul %128, %13, %cst_55 {dimension_numbers = #tpu.dot_dimension_numbers<[1], [0], [0], [1], [0, 0, 1, 1], [], []>} : vector<8x128xf32>, vector<128x384xf32>, vector<8x384xf32> -> vector<8x384xf32>
    %130 = vector.extract_strided_slice %97 {offsets = [0, 0], sizes = [8, 128], strides = [1, 1]} : vector<8x384xf32> to vector<8x128xf32>
    %131 = vector.extract_strided_slice %129 {offsets = [0, 0], sizes = [8, 128], strides = [1, 1]} : vector<8x384xf32> to vector<8x128xf32>
    %132 = arith.addf %130, %131 : vector<8x128xf32>
    %133 = arith.negf %132 : vector<8x128xf32>
    %134 = math.exp %133 : vector<8x128xf32>
    %cst_56 = arith.constant 1.000000e+00 : f32
    %135 = vector.broadcast %cst_56 : f32 to vector<8x128xf32>
    %136 = arith.addf %135, %134 : vector<8x128xf32>
    %137 = arith.divf %135, %136 : vector<8x128xf32>
    %138 = vector.extract_strided_slice %97 {offsets = [0, 128], sizes = [8, 128], strides = [1, 1]} : vector<8x384xf32> to vector<8x128xf32>
    %139 = vector.extract_strided_slice %129 {offsets = [0, 128], sizes = [8, 128], strides = [1, 1]} : vector<8x384xf32> to vector<8x128xf32>
    %140 = arith.addf %138, %139 : vector<8x128xf32>
    %141 = arith.negf %140 : vector<8x128xf32>
    %142 = math.exp %141 : vector<8x128xf32>
    %cst_57 = arith.constant 1.000000e+00 : f32
    %143 = vector.broadcast %cst_57 : f32 to vector<8x128xf32>
    %144 = arith.addf %143, %142 : vector<8x128xf32>
    %145 = arith.divf %143, %144 : vector<8x128xf32>
    %146 = vector.extract_strided_slice %97 {offsets = [0, 256], sizes = [8, 128], strides = [1, 1]} : vector<8x384xf32> to vector<8x128xf32>
    %147 = vector.extract_strided_slice %129 {offsets = [0, 256], sizes = [8, 128], strides = [1, 1]} : vector<8x384xf32> to vector<8x128xf32>
    %148 = arith.addf %147, %19 : vector<8x128xf32>
    %149 = arith.mulf %137, %148 : vector<8x128xf32>
    %150 = arith.addf %146, %149 : vector<8x128xf32>
    %151 = math.tanh %150 : vector<8x128xf32>
    %cst_58 = arith.constant 1.000000e+00 : f32
    %152 = vector.broadcast %cst_58 : f32 to vector<8x128xf32>
    %153 = arith.subf %152, %145 : vector<8x128xf32>
    %154 = arith.mulf %153, %151 : vector<8x128xf32>
    %155 = arith.mulf %145, %128 : vector<8x128xf32>
    %156 = arith.addf %154, %155 : vector<8x128xf32>
    %c0_59 = arith.constant 0 : index
    %c0_60 = arith.constant 0 : index
    %157 = vector.load %arg14[%c0_59, %c0_60] : memref<8x128xf32, #tpu.memory_space<vmem>>, vector<8x128xf32>
    tpu.vector_store %arg14[%c0_59, %c0_60], %156 {strides = array<i32>} : memref<8x128xf32, #tpu.memory_space<vmem>>, vector<8x128xf32>,
    %c2_i32 = arith.constant 2 : i32
    %c8_i32_61 = arith.constant 8 : i32
    %158 = arith.muli %c2_i32, %c8_i32_61 : i32
    %159 = tpu.assume_multiple %158, 8 : i32
    %c7_i32_62 = arith.constant 7 : i32
    %160 = arith.subi %c7_i32_62, %c2_i32 : i32
    %c8_i32_63 = arith.constant 8 : i32
    %161 = arith.muli %160, %c8_i32_63 : i32
    %162 = tpu.assume_multiple %161, 8 : i32
    %163 = arith.index_cast %159 : i32 to index
    %c0_64 = arith.constant 0 : index
    %164 = vector.load %arg12[%163, %c0_64] : memref<64x768xf32, #tpu.memory_space<vmem>>, vector<8x384xf32>
    %165 = arith.index_cast %162 : i32 to index
    %c384_65 = arith.constant 384 : index
    %166 = vector.load %arg12[%165, %c384_65] : memref<64x768xf32, #tpu.memory_space<vmem>>, vector<8x384xf32>
    %c0_66 = arith.constant 0 : index
    %c0_67 = arith.constant 0 : index
    %167 = vector.load %arg13[%c0_66, %c0_67] : memref<8x128xf32, #tpu.memory_space<vmem>>, vector<8x128xf32>
    %cst_68 = arith.constant dense<0.000000e+00> : vector<8x384xf32>
    %168 = tpu.matmul %167, %12, %cst_68 {dimension_numbers = #tpu.dot_dimension_numbers<[1], [0], [0], [1], [0, 0, 1, 1], [], []>} : vector<8x128xf32>, vector<128x384xf32>, vector<8x384xf32> -> vector<8x384xf32>
    %169 = vector.extract_strided_slice %164 {offsets = [0, 0], sizes = [8, 128], strides = [1, 1]} : vector<8x384xf32> to vector<8x128xf32>
    %170 = vector.extract_strided_slice %168 {offsets = [0, 0], sizes = [8, 128], strides = [1, 1]} : vector<8x384xf32> to vector<8x128xf32>
    %171 = arith.addf %169, %170 : vector<8x128xf32>
    %172 = arith.negf %171 : vector<8x128xf32>
    %173 = math.exp %172 : vector<8x128xf32>
    %cst_69 = arith.constant 1.000000e+00 : f32
    %174 = vector.broadcast %cst_69 : f32 to vector<8x128xf32>
    %175 = arith.addf %174, %173 : vector<8x128xf32>
    %176 = arith.divf %174, %175 : vector<8x128xf32>
    %177 = vector.extract_strided_slice %164 {offsets = [0, 128], sizes = [8, 128], strides = [1, 1]} : vector<8x384xf32> to vector<8x128xf32>
    %178 = vector.extract_strided_slice %168 {offsets = [0, 128], sizes = [8, 128], strides = [1, 1]} : vector<8x384xf32> to vector<8x128xf32>
    %179 = arith.addf %177, %178 : vector<8x128xf32>
    %180 = arith.negf %179 : vector<8x128xf32>
    %181 = math.exp %180 : vector<8x128xf32>
    %cst_70 = arith.constant 1.000000e+00 : f32
    %182 = vector.broadcast %cst_70 : f32 to vector<8x128xf32>
    %183 = arith.addf %182, %181 : vector<8x128xf32>
    %184 = arith.divf %182, %183 : vector<8x128xf32>
    %185 = vector.extract_strided_slice %164 {offsets = [0, 256], sizes = [8, 128], strides = [1, 1]} : vector<8x384xf32> to vector<8x128xf32>
    %186 = vector.extract_strided_slice %168 {offsets = [0, 256], sizes = [8, 128], strides = [1, 1]} : vector<8x384xf32> to vector<8x128xf32>
    %187 = arith.addf %186, %16 : vector<8x128xf32>
    %188 = arith.mulf %176, %187 : vector<8x128xf32>
    %189 = arith.addf %185, %188 : vector<8x128xf32>
    %190 = math.tanh %189 : vector<8x128xf32>
    %cst_71 = arith.constant 1.000000e+00 : f32
    %191 = vector.broadcast %cst_71 : f32 to vector<8x128xf32>
    %192 = arith.subf %191, %184 : vector<8x128xf32>
    %193 = arith.mulf %192, %190 : vector<8x128xf32>
    %194 = arith.mulf %184, %167 : vector<8x128xf32>
    %195 = arith.addf %193, %194 : vector<8x128xf32>
    %c0_72 = arith.constant 0 : index
    %c0_73 = arith.constant 0 : index
    %196 = vector.load %arg13[%c0_72, %c0_73] : memref<8x128xf32, #tpu.memory_space<vmem>>, vector<8x128xf32>
    tpu.vector_store %arg13[%c0_72, %c0_73], %195 {strides = array<i32>} : memref<8x128xf32, #tpu.memory_space<vmem>>, vector<8x128xf32>,
    %c0_74 = arith.constant 0 : index
    %c0_75 = arith.constant 0 : index
    %197 = vector.load %arg14[%c0_74, %c0_75] : memref<8x128xf32, #tpu.memory_space<vmem>>, vector<8x128xf32>
    %cst_76 = arith.constant dense<0.000000e+00> : vector<8x384xf32>
    %198 = tpu.matmul %197, %13, %cst_76 {dimension_numbers = #tpu.dot_dimension_numbers<[1], [0], [0], [1], [0, 0, 1, 1], [], []>} : vector<8x128xf32>, vector<128x384xf32>, vector<8x384xf32> -> vector<8x384xf32>
    %199 = vector.extract_strided_slice %166 {offsets = [0, 0], sizes = [8, 128], strides = [1, 1]} : vector<8x384xf32> to vector<8x128xf32>
    %200 = vector.extract_strided_slice %198 {offsets = [0, 0], sizes = [8, 128], strides = [1, 1]} : vector<8x384xf32> to vector<8x128xf32>
    %201 = arith.addf %199, %200 : vector<8x128xf32>
    %202 = arith.negf %201 : vector<8x128xf32>
    %203 = math.exp %202 : vector<8x128xf32>
    %cst_77 = arith.constant 1.000000e+00 : f32
    %204 = vector.broadcast %cst_77 : f32 to vector<8x128xf32>
    %205 = arith.addf %204, %203 : vector<8x128xf32>
    %206 = arith.divf %204, %205 : vector<8x128xf32>
    %207 = vector.extract_strided_slice %166 {offsets = [0, 128], sizes = [8, 128], strides = [1, 1]} : vector<8x384xf32> to vector<8x128xf32>
    %208 = vector.extract_strided_slice %198 {offsets = [0, 128], sizes = [8, 128], strides = [1, 1]} : vector<8x384xf32> to vector<8x128xf32>
    %209 = arith.addf %207, %208 : vector<8x128xf32>
    %210 = arith.negf %209 : vector<8x128xf32>
    %211 = math.exp %210 : vector<8x128xf32>
    %cst_78 = arith.constant 1.000000e+00 : f32
    %212 = vector.broadcast %cst_78 : f32 to vector<8x128xf32>
    %213 = arith.addf %212, %211 : vector<8x128xf32>
    %214 = arith.divf %212, %213 : vector<8x128xf32>
    %215 = vector.extract_strided_slice %166 {offsets = [0, 256], sizes = [8, 128], strides = [1, 1]} : vector<8x384xf32> to vector<8x128xf32>
    %216 = vector.extract_strided_slice %198 {offsets = [0, 256], sizes = [8, 128], strides = [1, 1]} : vector<8x384xf32> to vector<8x128xf32>
    %217 = arith.addf %216, %19 : vector<8x128xf32>
    %218 = arith.mulf %206, %217 : vector<8x128xf32>
    %219 = arith.addf %215, %218 : vector<8x128xf32>
    %220 = math.tanh %219 : vector<8x128xf32>
    %cst_79 = arith.constant 1.000000e+00 : f32
    %221 = vector.broadcast %cst_79 : f32 to vector<8x128xf32>
    %222 = arith.subf %221, %214 : vector<8x128xf32>
    %223 = arith.mulf %222, %220 : vector<8x128xf32>
    %224 = arith.mulf %214, %197 : vector<8x128xf32>
    %225 = arith.addf %223, %224 : vector<8x128xf32>
    %c0_80 = arith.constant 0 : index
    %c0_81 = arith.constant 0 : index
    %226 = vector.load %arg14[%c0_80, %c0_81] : memref<8x128xf32, #tpu.memory_space<vmem>>, vector<8x128xf32>
    tpu.vector_store %arg14[%c0_80, %c0_81], %225 {strides = array<i32>} : memref<8x128xf32, #tpu.memory_space<vmem>>, vector<8x128xf32>,
    %c3_i32 = arith.constant 3 : i32
    %c8_i32_82 = arith.constant 8 : i32
    %227 = arith.muli %c3_i32, %c8_i32_82 : i32
    %228 = tpu.assume_multiple %227, 8 : i32
    %c7_i32_83 = arith.constant 7 : i32
    %229 = arith.subi %c7_i32_83, %c3_i32 : i32
    %c8_i32_84 = arith.constant 8 : i32
    %230 = arith.muli %229, %c8_i32_84 : i32
    %231 = tpu.assume_multiple %230, 8 : i32
    %232 = arith.index_cast %228 : i32 to index
    %c0_85 = arith.constant 0 : index
    %233 = vector.load %arg12[%232, %c0_85] : memref<64x768xf32, #tpu.memory_space<vmem>>, vector<8x384xf32>
    %234 = arith.index_cast %231 : i32 to index
    %c384_86 = arith.constant 384 : index
    %235 = vector.load %arg12[%234, %c384_86] : memref<64x768xf32, #tpu.memory_space<vmem>>, vector<8x384xf32>
    %c0_87 = arith.constant 0 : index
    %c0_88 = arith.constant 0 : index
    %236 = vector.load %arg13[%c0_87, %c0_88] : memref<8x128xf32, #tpu.memory_space<vmem>>, vector<8x128xf32>
    %cst_89 = arith.constant dense<0.000000e+00> : vector<8x384xf32>
    %237 = tpu.matmul %236, %12, %cst_89 {dimension_numbers = #tpu.dot_dimension_numbers<[1], [0], [0], [1], [0, 0, 1, 1], [], []>} : vector<8x128xf32>, vector<128x384xf32>, vector<8x384xf32> -> vector<8x384xf32>
    %238 = vector.extract_strided_slice %233 {offsets = [0, 0], sizes = [8, 128], strides = [1, 1]} : vector<8x384xf32> to vector<8x128xf32>
    %239 = vector.extract_strided_slice %237 {offsets = [0, 0], sizes = [8, 128], strides = [1, 1]} : vector<8x384xf32> to vector<8x128xf32>
    %240 = arith.addf %238, %239 : vector<8x128xf32>
    %241 = arith.negf %240 : vector<8x128xf32>
    %242 = math.exp %241 : vector<8x128xf32>
    %cst_90 = arith.constant 1.000000e+00 : f32
    %243 = vector.broadcast %cst_90 : f32 to vector<8x128xf32>
    %244 = arith.addf %243, %242 : vector<8x128xf32>
    %245 = arith.divf %243, %244 : vector<8x128xf32>
    %246 = vector.extract_strided_slice %233 {offsets = [0, 128], sizes = [8, 128], strides = [1, 1]} : vector<8x384xf32> to vector<8x128xf32>
    %247 = vector.extract_strided_slice %237 {offsets = [0, 128], sizes = [8, 128], strides = [1, 1]} : vector<8x384xf32> to vector<8x128xf32>
    %248 = arith.addf %246, %247 : vector<8x128xf32>
    %249 = arith.negf %248 : vector<8x128xf32>
    %250 = math.exp %249 : vector<8x128xf32>
    %cst_91 = arith.constant 1.000000e+00 : f32
    %251 = vector.broadcast %cst_91 : f32 to vector<8x128xf32>
    %252 = arith.addf %251, %250 : vector<8x128xf32>
    %253 = arith.divf %251, %252 : vector<8x128xf32>
    %254 = vector.extract_strided_slice %233 {offsets = [0, 256], sizes = [8, 128], strides = [1, 1]} : vector<8x384xf32> to vector<8x128xf32>
    %255 = vector.extract_strided_slice %237 {offsets = [0, 256], sizes = [8, 128], strides = [1, 1]} : vector<8x384xf32> to vector<8x128xf32>
    %256 = arith.addf %255, %16 : vector<8x128xf32>
    %257 = arith.mulf %245, %256 : vector<8x128xf32>
    %258 = arith.addf %254, %257 : vector<8x128xf32>
    %259 = math.tanh %258 : vector<8x128xf32>
    %cst_92 = arith.constant 1.000000e+00 : f32
    %260 = vector.broadcast %cst_92 : f32 to vector<8x128xf32>
    %261 = arith.subf %260, %253 : vector<8x128xf32>
    %262 = arith.mulf %261, %259 : vector<8x128xf32>
    %263 = arith.mulf %253, %236 : vector<8x128xf32>
    %264 = arith.addf %262, %263 : vector<8x128xf32>
    %c0_93 = arith.constant 0 : index
    %c0_94 = arith.constant 0 : index
    %265 = vector.load %arg13[%c0_93, %c0_94] : memref<8x128xf32, #tpu.memory_space<vmem>>, vector<8x128xf32>
    tpu.vector_store %arg13[%c0_93, %c0_94], %264 {strides = array<i32>} : memref<8x128xf32, #tpu.memory_space<vmem>>, vector<8x128xf32>,
    %c0_95 = arith.constant 0 : index
    %c0_96 = arith.constant 0 : index
    %266 = vector.load %arg14[%c0_95, %c0_96] : memref<8x128xf32, #tpu.memory_space<vmem>>, vector<8x128xf32>
    %cst_97 = arith.constant dense<0.000000e+00> : vector<8x384xf32>
    %267 = tpu.matmul %266, %13, %cst_97 {dimension_numbers = #tpu.dot_dimension_numbers<[1], [0], [0], [1], [0, 0, 1, 1], [], []>} : vector<8x128xf32>, vector<128x384xf32>, vector<8x384xf32> -> vector<8x384xf32>
    %268 = vector.extract_strided_slice %235 {offsets = [0, 0], sizes = [8, 128], strides = [1, 1]} : vector<8x384xf32> to vector<8x128xf32>
    %269 = vector.extract_strided_slice %267 {offsets = [0, 0], sizes = [8, 128], strides = [1, 1]} : vector<8x384xf32> to vector<8x128xf32>
    %270 = arith.addf %268, %269 : vector<8x128xf32>
    %271 = arith.negf %270 : vector<8x128xf32>
    %272 = math.exp %271 : vector<8x128xf32>
    %cst_98 = arith.constant 1.000000e+00 : f32
    %273 = vector.broadcast %cst_98 : f32 to vector<8x128xf32>
    %274 = arith.addf %273, %272 : vector<8x128xf32>
    %275 = arith.divf %273, %274 : vector<8x128xf32>
    %276 = vector.extract_strided_slice %235 {offsets = [0, 128], sizes = [8, 128], strides = [1, 1]} : vector<8x384xf32> to vector<8x128xf32>
    %277 = vector.extract_strided_slice %267 {offsets = [0, 128], sizes = [8, 128], strides = [1, 1]} : vector<8x384xf32> to vector<8x128xf32>
    %278 = arith.addf %276, %277 : vector<8x128xf32>
    %279 = arith.negf %278 : vector<8x128xf32>
    %280 = math.exp %279 : vector<8x128xf32>
    %cst_99 = arith.constant 1.000000e+00 : f32
    %281 = vector.broadcast %cst_99 : f32 to vector<8x128xf32>
    %282 = arith.addf %281, %280 : vector<8x128xf32>
    %283 = arith.divf %281, %282 : vector<8x128xf32>
    %284 = vector.extract_strided_slice %235 {offsets = [0, 256], sizes = [8, 128], strides = [1, 1]} : vector<8x384xf32> to vector<8x128xf32>
    %285 = vector.extract_strided_slice %267 {offsets = [0, 256], sizes = [8, 128], strides = [1, 1]} : vector<8x384xf32> to vector<8x128xf32>
    %286 = arith.addf %285, %19 : vector<8x128xf32>
    %287 = arith.mulf %275, %286 : vector<8x128xf32>
    %288 = arith.addf %284, %287 : vector<8x128xf32>
    %289 = math.tanh %288 : vector<8x128xf32>
    %cst_100 = arith.constant 1.000000e+00 : f32
    %290 = vector.broadcast %cst_100 : f32 to vector<8x128xf32>
    %291 = arith.subf %290, %283 : vector<8x128xf32>
    %292 = arith.mulf %291, %289 : vector<8x128xf32>
    %293 = arith.mulf %283, %266 : vector<8x128xf32>
    %294 = arith.addf %292, %293 : vector<8x128xf32>
    %c0_101 = arith.constant 0 : index
    %c0_102 = arith.constant 0 : index
    %295 = vector.load %arg14[%c0_101, %c0_102] : memref<8x128xf32, #tpu.memory_space<vmem>>, vector<8x128xf32>
    tpu.vector_store %arg14[%c0_101, %c0_102], %294 {strides = array<i32>} : memref<8x128xf32, #tpu.memory_space<vmem>>, vector<8x128xf32>,
    %c4_i32 = arith.constant 4 : i32
    %c8_i32_103 = arith.constant 8 : i32
    %296 = arith.muli %c4_i32, %c8_i32_103 : i32
    %297 = tpu.assume_multiple %296, 8 : i32
    %c7_i32_104 = arith.constant 7 : i32
    %298 = arith.subi %c7_i32_104, %c4_i32 : i32
    %c8_i32_105 = arith.constant 8 : i32
    %299 = arith.muli %298, %c8_i32_105 : i32
    %300 = tpu.assume_multiple %299, 8 : i32
    %301 = arith.index_cast %297 : i32 to index
    %c0_106 = arith.constant 0 : index
    %302 = vector.load %arg12[%301, %c0_106] : memref<64x768xf32, #tpu.memory_space<vmem>>, vector<8x384xf32>
    %303 = arith.index_cast %300 : i32 to index
    %c384_107 = arith.constant 384 : index
    %304 = vector.load %arg12[%303, %c384_107] : memref<64x768xf32, #tpu.memory_space<vmem>>, vector<8x384xf32>
    %c0_108 = arith.constant 0 : index
    %c0_109 = arith.constant 0 : index
    %305 = vector.load %arg13[%c0_108, %c0_109] : memref<8x128xf32, #tpu.memory_space<vmem>>, vector<8x128xf32>
    %cst_110 = arith.constant dense<0.000000e+00> : vector<8x384xf32>
    %306 = tpu.matmul %305, %12, %cst_110 {dimension_numbers = #tpu.dot_dimension_numbers<[1], [0], [0], [1], [0, 0, 1, 1], [], []>} : vector<8x128xf32>, vector<128x384xf32>, vector<8x384xf32> -> vector<8x384xf32>
    %307 = vector.extract_strided_slice %302 {offsets = [0, 0], sizes = [8, 128], strides = [1, 1]} : vector<8x384xf32> to vector<8x128xf32>
    %308 = vector.extract_strided_slice %306 {offsets = [0, 0], sizes = [8, 128], strides = [1, 1]} : vector<8x384xf32> to vector<8x128xf32>
    %309 = arith.addf %307, %308 : vector<8x128xf32>
    %310 = arith.negf %309 : vector<8x128xf32>
    %311 = math.exp %310 : vector<8x128xf32>
    %cst_111 = arith.constant 1.000000e+00 : f32
    %312 = vector.broadcast %cst_111 : f32 to vector<8x128xf32>
    %313 = arith.addf %312, %311 : vector<8x128xf32>
    %314 = arith.divf %312, %313 : vector<8x128xf32>
    %315 = vector.extract_strided_slice %302 {offsets = [0, 128], sizes = [8, 128], strides = [1, 1]} : vector<8x384xf32> to vector<8x128xf32>
    %316 = vector.extract_strided_slice %306 {offsets = [0, 128], sizes = [8, 128], strides = [1, 1]} : vector<8x384xf32> to vector<8x128xf32>
    %317 = arith.addf %315, %316 : vector<8x128xf32>
    %318 = arith.negf %317 : vector<8x128xf32>
    %319 = math.exp %318 : vector<8x128xf32>
    %cst_112 = arith.constant 1.000000e+00 : f32
    %320 = vector.broadcast %cst_112 : f32 to vector<8x128xf32>
    %321 = arith.addf %320, %319 : vector<8x128xf32>
    %322 = arith.divf %320, %321 : vector<8x128xf32>
    %323 = vector.extract_strided_slice %302 {offsets = [0, 256], sizes = [8, 128], strides = [1, 1]} : vector<8x384xf32> to vector<8x128xf32>
    %324 = vector.extract_strided_slice %306 {offsets = [0, 256], sizes = [8, 128], strides = [1, 1]} : vector<8x384xf32> to vector<8x128xf32>
    %325 = arith.addf %324, %16 : vector<8x128xf32>
    %326 = arith.mulf %314, %325 : vector<8x128xf32>
    %327 = arith.addf %323, %326 : vector<8x128xf32>
    %328 = math.tanh %327 : vector<8x128xf32>
    %cst_113 = arith.constant 1.000000e+00 : f32
    %329 = vector.broadcast %cst_113 : f32 to vector<8x128xf32>
    %330 = arith.subf %329, %322 : vector<8x128xf32>
    %331 = arith.mulf %330, %328 : vector<8x128xf32>
    %332 = arith.mulf %322, %305 : vector<8x128xf32>
    %333 = arith.addf %331, %332 : vector<8x128xf32>
    %c0_114 = arith.constant 0 : index
    %c0_115 = arith.constant 0 : index
    %334 = vector.load %arg13[%c0_114, %c0_115] : memref<8x128xf32, #tpu.memory_space<vmem>>, vector<8x128xf32>
    tpu.vector_store %arg13[%c0_114, %c0_115], %333 {strides = array<i32>} : memref<8x128xf32, #tpu.memory_space<vmem>>, vector<8x128xf32>,
    %c0_116 = arith.constant 0 : index
    %c0_117 = arith.constant 0 : index
    %335 = vector.load %arg14[%c0_116, %c0_117] : memref<8x128xf32, #tpu.memory_space<vmem>>, vector<8x128xf32>
    %cst_118 = arith.constant dense<0.000000e+00> : vector<8x384xf32>
    %336 = tpu.matmul %335, %13, %cst_118 {dimension_numbers = #tpu.dot_dimension_numbers<[1], [0], [0], [1], [0, 0, 1, 1], [], []>} : vector<8x128xf32>, vector<128x384xf32>, vector<8x384xf32> -> vector<8x384xf32>
    %337 = vector.extract_strided_slice %304 {offsets = [0, 0], sizes = [8, 128], strides = [1, 1]} : vector<8x384xf32> to vector<8x128xf32>
    %338 = vector.extract_strided_slice %336 {offsets = [0, 0], sizes = [8, 128], strides = [1, 1]} : vector<8x384xf32> to vector<8x128xf32>
    %339 = arith.addf %337, %338 : vector<8x128xf32>
    %340 = arith.negf %339 : vector<8x128xf32>
    %341 = math.exp %340 : vector<8x128xf32>
    %cst_119 = arith.constant 1.000000e+00 : f32
    %342 = vector.broadcast %cst_119 : f32 to vector<8x128xf32>
    %343 = arith.addf %342, %341 : vector<8x128xf32>
    %344 = arith.divf %342, %343 : vector<8x128xf32>
    %345 = vector.extract_strided_slice %304 {offsets = [0, 128], sizes = [8, 128], strides = [1, 1]} : vector<8x384xf32> to vector<8x128xf32>
    %346 = vector.extract_strided_slice %336 {offsets = [0, 128], sizes = [8, 128], strides = [1, 1]} : vector<8x384xf32> to vector<8x128xf32>
    %347 = arith.addf %345, %346 : vector<8x128xf32>
    %348 = arith.negf %347 : vector<8x128xf32>
    %349 = math.exp %348 : vector<8x128xf32>
    %cst_120 = arith.constant 1.000000e+00 : f32
    %350 = vector.broadcast %cst_120 : f32 to vector<8x128xf32>
    %351 = arith.addf %350, %349 : vector<8x128xf32>
    %352 = arith.divf %350, %351 : vector<8x128xf32>
    %353 = vector.extract_strided_slice %304 {offsets = [0, 256], sizes = [8, 128], strides = [1, 1]} : vector<8x384xf32> to vector<8x128xf32>
    %354 = vector.extract_strided_slice %336 {offsets = [0, 256], sizes = [8, 128], strides = [1, 1]} : vector<8x384xf32> to vector<8x128xf32>
    %355 = arith.addf %354, %19 : vector<8x128xf32>
    %356 = arith.mulf %344, %355 : vector<8x128xf32>
    %357 = arith.addf %353, %356 : vector<8x128xf32>
    %358 = math.tanh %357 : vector<8x128xf32>
    %cst_121 = arith.constant 1.000000e+00 : f32
    %359 = vector.broadcast %cst_121 : f32 to vector<8x128xf32>
    %360 = arith.subf %359, %352 : vector<8x128xf32>
    %361 = arith.mulf %360, %358 : vector<8x128xf32>
    %362 = arith.mulf %352, %335 : vector<8x128xf32>
    %363 = arith.addf %361, %362 : vector<8x128xf32>
    %c0_122 = arith.constant 0 : index
    %c0_123 = arith.constant 0 : index
    %364 = vector.load %arg14[%c0_122, %c0_123] : memref<8x128xf32, #tpu.memory_space<vmem>>, vector<8x128xf32>
    tpu.vector_store %arg14[%c0_122, %c0_123], %363 {strides = array<i32>} : memref<8x128xf32, #tpu.memory_space<vmem>>, vector<8x128xf32>,
    %c5_i32 = arith.constant 5 : i32
    %c8_i32_124 = arith.constant 8 : i32
    %365 = arith.muli %c5_i32, %c8_i32_124 : i32
    %366 = tpu.assume_multiple %365, 8 : i32
    %c7_i32_125 = arith.constant 7 : i32
    %367 = arith.subi %c7_i32_125, %c5_i32 : i32
    %c8_i32_126 = arith.constant 8 : i32
    %368 = arith.muli %367, %c8_i32_126 : i32
    %369 = tpu.assume_multiple %368, 8 : i32
    %370 = arith.index_cast %366 : i32 to index
    %c0_127 = arith.constant 0 : index
    %371 = vector.load %arg12[%370, %c0_127] : memref<64x768xf32, #tpu.memory_space<vmem>>, vector<8x384xf32>
    %372 = arith.index_cast %369 : i32 to index
    %c384_128 = arith.constant 384 : index
    %373 = vector.load %arg12[%372, %c384_128] : memref<64x768xf32, #tpu.memory_space<vmem>>, vector<8x384xf32>
    %c0_129 = arith.constant 0 : index
    %c0_130 = arith.constant 0 : index
    %374 = vector.load %arg13[%c0_129, %c0_130] : memref<8x128xf32, #tpu.memory_space<vmem>>, vector<8x128xf32>
    %cst_131 = arith.constant dense<0.000000e+00> : vector<8x384xf32>
    %375 = tpu.matmul %374, %12, %cst_131 {dimension_numbers = #tpu.dot_dimension_numbers<[1], [0], [0], [1], [0, 0, 1, 1], [], []>} : vector<8x128xf32>, vector<128x384xf32>, vector<8x384xf32> -> vector<8x384xf32>
    %376 = vector.extract_strided_slice %371 {offsets = [0, 0], sizes = [8, 128], strides = [1, 1]} : vector<8x384xf32> to vector<8x128xf32>
    %377 = vector.extract_strided_slice %375 {offsets = [0, 0], sizes = [8, 128], strides = [1, 1]} : vector<8x384xf32> to vector<8x128xf32>
    %378 = arith.addf %376, %377 : vector<8x128xf32>
    %379 = arith.negf %378 : vector<8x128xf32>
    %380 = math.exp %379 : vector<8x128xf32>
    %cst_132 = arith.constant 1.000000e+00 : f32
    %381 = vector.broadcast %cst_132 : f32 to vector<8x128xf32>
    %382 = arith.addf %381, %380 : vector<8x128xf32>
    %383 = arith.divf %381, %382 : vector<8x128xf32>
    %384 = vector.extract_strided_slice %371 {offsets = [0, 128], sizes = [8, 128], strides = [1, 1]} : vector<8x384xf32> to vector<8x128xf32>
    %385 = vector.extract_strided_slice %375 {offsets = [0, 128], sizes = [8, 128], strides = [1, 1]} : vector<8x384xf32> to vector<8x128xf32>
    %386 = arith.addf %384, %385 : vector<8x128xf32>
    %387 = arith.negf %386 : vector<8x128xf32>
    %388 = math.exp %387 : vector<8x128xf32>
    %cst_133 = arith.constant 1.000000e+00 : f32
    %389 = vector.broadcast %cst_133 : f32 to vector<8x128xf32>
    %390 = arith.addf %389, %388 : vector<8x128xf32>
    %391 = arith.divf %389, %390 : vector<8x128xf32>
    %392 = vector.extract_strided_slice %371 {offsets = [0, 256], sizes = [8, 128], strides = [1, 1]} : vector<8x384xf32> to vector<8x128xf32>
    %393 = vector.extract_strided_slice %375 {offsets = [0, 256], sizes = [8, 128], strides = [1, 1]} : vector<8x384xf32> to vector<8x128xf32>
    %394 = arith.addf %393, %16 : vector<8x128xf32>
    %395 = arith.mulf %383, %394 : vector<8x128xf32>
    %396 = arith.addf %392, %395 : vector<8x128xf32>
    %397 = math.tanh %396 : vector<8x128xf32>
    %cst_134 = arith.constant 1.000000e+00 : f32
    %398 = vector.broadcast %cst_134 : f32 to vector<8x128xf32>
    %399 = arith.subf %398, %391 : vector<8x128xf32>
    %400 = arith.mulf %399, %397 : vector<8x128xf32>
    %401 = arith.mulf %391, %374 : vector<8x128xf32>
    %402 = arith.addf %400, %401 : vector<8x128xf32>
    %c0_135 = arith.constant 0 : index
    %c0_136 = arith.constant 0 : index
    %403 = vector.load %arg13[%c0_135, %c0_136] : memref<8x128xf32, #tpu.memory_space<vmem>>, vector<8x128xf32>
    tpu.vector_store %arg13[%c0_135, %c0_136], %402 {strides = array<i32>} : memref<8x128xf32, #tpu.memory_space<vmem>>, vector<8x128xf32>,
    %c0_137 = arith.constant 0 : index
    %c0_138 = arith.constant 0 : index
    %404 = vector.load %arg14[%c0_137, %c0_138] : memref<8x128xf32, #tpu.memory_space<vmem>>, vector<8x128xf32>
    %cst_139 = arith.constant dense<0.000000e+00> : vector<8x384xf32>
    %405 = tpu.matmul %404, %13, %cst_139 {dimension_numbers = #tpu.dot_dimension_numbers<[1], [0], [0], [1], [0, 0, 1, 1], [], []>} : vector<8x128xf32>, vector<128x384xf32>, vector<8x384xf32> -> vector<8x384xf32>
    %406 = vector.extract_strided_slice %373 {offsets = [0, 0], sizes = [8, 128], strides = [1, 1]} : vector<8x384xf32> to vector<8x128xf32>
    %407 = vector.extract_strided_slice %405 {offsets = [0, 0], sizes = [8, 128], strides = [1, 1]} : vector<8x384xf32> to vector<8x128xf32>
    %408 = arith.addf %406, %407 : vector<8x128xf32>
    %409 = arith.negf %408 : vector<8x128xf32>
    %410 = math.exp %409 : vector<8x128xf32>
    %cst_140 = arith.constant 1.000000e+00 : f32
    %411 = vector.broadcast %cst_140 : f32 to vector<8x128xf32>
    %412 = arith.addf %411, %410 : vector<8x128xf32>
    %413 = arith.divf %411, %412 : vector<8x128xf32>
    %414 = vector.extract_strided_slice %373 {offsets = [0, 128], sizes = [8, 128], strides = [1, 1]} : vector<8x384xf32> to vector<8x128xf32>
    %415 = vector.extract_strided_slice %405 {offsets = [0, 128], sizes = [8, 128], strides = [1, 1]} : vector<8x384xf32> to vector<8x128xf32>
    %416 = arith.addf %414, %415 : vector<8x128xf32>
    %417 = arith.negf %416 : vector<8x128xf32>
    %418 = math.exp %417 : vector<8x128xf32>
    %cst_141 = arith.constant 1.000000e+00 : f32
    %419 = vector.broadcast %cst_141 : f32 to vector<8x128xf32>
    %420 = arith.addf %419, %418 : vector<8x128xf32>
    %421 = arith.divf %419, %420 : vector<8x128xf32>
    %422 = vector.extract_strided_slice %373 {offsets = [0, 256], sizes = [8, 128], strides = [1, 1]} : vector<8x384xf32> to vector<8x128xf32>
    %423 = vector.extract_strided_slice %405 {offsets = [0, 256], sizes = [8, 128], strides = [1, 1]} : vector<8x384xf32> to vector<8x128xf32>
    %424 = arith.addf %423, %19 : vector<8x128xf32>
    %425 = arith.mulf %413, %424 : vector<8x128xf32>
    %426 = arith.addf %422, %425 : vector<8x128xf32>
    %427 = math.tanh %426 : vector<8x128xf32>
    %cst_142 = arith.constant 1.000000e+00 : f32
    %428 = vector.broadcast %cst_142 : f32 to vector<8x128xf32>
    %429 = arith.subf %428, %421 : vector<8x128xf32>
    %430 = arith.mulf %429, %427 : vector<8x128xf32>
    %431 = arith.mulf %421, %404 : vector<8x128xf32>
    %432 = arith.addf %430, %431 : vector<8x128xf32>
    %c0_143 = arith.constant 0 : index
    %c0_144 = arith.constant 0 : index
    %433 = vector.load %arg14[%c0_143, %c0_144] : memref<8x128xf32, #tpu.memory_space<vmem>>, vector<8x128xf32>
    tpu.vector_store %arg14[%c0_143, %c0_144], %432 {strides = array<i32>} : memref<8x128xf32, #tpu.memory_space<vmem>>, vector<8x128xf32>,
    %c6_i32 = arith.constant 6 : i32
    %c8_i32_145 = arith.constant 8 : i32
    %434 = arith.muli %c6_i32, %c8_i32_145 : i32
    %435 = tpu.assume_multiple %434, 8 : i32
    %c7_i32_146 = arith.constant 7 : i32
    %436 = arith.subi %c7_i32_146, %c6_i32 : i32
    %c8_i32_147 = arith.constant 8 : i32
    %437 = arith.muli %436, %c8_i32_147 : i32
    %438 = tpu.assume_multiple %437, 8 : i32
    %439 = arith.index_cast %435 : i32 to index
    %c0_148 = arith.constant 0 : index
    %440 = vector.load %arg12[%439, %c0_148] : memref<64x768xf32, #tpu.memory_space<vmem>>, vector<8x384xf32>
    %441 = arith.index_cast %438 : i32 to index
    %c384_149 = arith.constant 384 : index
    %442 = vector.load %arg12[%441, %c384_149] : memref<64x768xf32, #tpu.memory_space<vmem>>, vector<8x384xf32>
    %c0_150 = arith.constant 0 : index
    %c0_151 = arith.constant 0 : index
    %443 = vector.load %arg13[%c0_150, %c0_151] : memref<8x128xf32, #tpu.memory_space<vmem>>, vector<8x128xf32>
    %cst_152 = arith.constant dense<0.000000e+00> : vector<8x384xf32>
    %444 = tpu.matmul %443, %12, %cst_152 {dimension_numbers = #tpu.dot_dimension_numbers<[1], [0], [0], [1], [0, 0, 1, 1], [], []>} : vector<8x128xf32>, vector<128x384xf32>, vector<8x384xf32> -> vector<8x384xf32>
    %445 = vector.extract_strided_slice %440 {offsets = [0, 0], sizes = [8, 128], strides = [1, 1]} : vector<8x384xf32> to vector<8x128xf32>
    %446 = vector.extract_strided_slice %444 {offsets = [0, 0], sizes = [8, 128], strides = [1, 1]} : vector<8x384xf32> to vector<8x128xf32>
    %447 = arith.addf %445, %446 : vector<8x128xf32>
    %448 = arith.negf %447 : vector<8x128xf32>
    %449 = math.exp %448 : vector<8x128xf32>
    %cst_153 = arith.constant 1.000000e+00 : f32
    %450 = vector.broadcast %cst_153 : f32 to vector<8x128xf32>
    %451 = arith.addf %450, %449 : vector<8x128xf32>
    %452 = arith.divf %450, %451 : vector<8x128xf32>
    %453 = vector.extract_strided_slice %440 {offsets = [0, 128], sizes = [8, 128], strides = [1, 1]} : vector<8x384xf32> to vector<8x128xf32>
    %454 = vector.extract_strided_slice %444 {offsets = [0, 128], sizes = [8, 128], strides = [1, 1]} : vector<8x384xf32> to vector<8x128xf32>
    %455 = arith.addf %453, %454 : vector<8x128xf32>
    %456 = arith.negf %455 : vector<8x128xf32>
    %457 = math.exp %456 : vector<8x128xf32>
    %cst_154 = arith.constant 1.000000e+00 : f32
    %458 = vector.broadcast %cst_154 : f32 to vector<8x128xf32>
    %459 = arith.addf %458, %457 : vector<8x128xf32>
    %460 = arith.divf %458, %459 : vector<8x128xf32>
    %461 = vector.extract_strided_slice %440 {offsets = [0, 256], sizes = [8, 128], strides = [1, 1]} : vector<8x384xf32> to vector<8x128xf32>
    %462 = vector.extract_strided_slice %444 {offsets = [0, 256], sizes = [8, 128], strides = [1, 1]} : vector<8x384xf32> to vector<8x128xf32>
    %463 = arith.addf %462, %16 : vector<8x128xf32>
    %464 = arith.mulf %452, %463 : vector<8x128xf32>
    %465 = arith.addf %461, %464 : vector<8x128xf32>
    %466 = math.tanh %465 : vector<8x128xf32>
    %cst_155 = arith.constant 1.000000e+00 : f32
    %467 = vector.broadcast %cst_155 : f32 to vector<8x128xf32>
    %468 = arith.subf %467, %460 : vector<8x128xf32>
    %469 = arith.mulf %468, %466 : vector<8x128xf32>
    %470 = arith.mulf %460, %443 : vector<8x128xf32>
    %471 = arith.addf %469, %470 : vector<8x128xf32>
    %c0_156 = arith.constant 0 : index
    %c0_157 = arith.constant 0 : index
    %472 = vector.load %arg13[%c0_156, %c0_157] : memref<8x128xf32, #tpu.memory_space<vmem>>, vector<8x128xf32>
    tpu.vector_store %arg13[%c0_156, %c0_157], %471 {strides = array<i32>} : memref<8x128xf32, #tpu.memory_space<vmem>>, vector<8x128xf32>,
    %c0_158 = arith.constant 0 : index
    %c0_159 = arith.constant 0 : index
    %473 = vector.load %arg14[%c0_158, %c0_159] : memref<8x128xf32, #tpu.memory_space<vmem>>, vector<8x128xf32>
    %cst_160 = arith.constant dense<0.000000e+00> : vector<8x384xf32>
    %474 = tpu.matmul %473, %13, %cst_160 {dimension_numbers = #tpu.dot_dimension_numbers<[1], [0], [0], [1], [0, 0, 1, 1], [], []>} : vector<8x128xf32>, vector<128x384xf32>, vector<8x384xf32> -> vector<8x384xf32>
    %475 = vector.extract_strided_slice %442 {offsets = [0, 0], sizes = [8, 128], strides = [1, 1]} : vector<8x384xf32> to vector<8x128xf32>
    %476 = vector.extract_strided_slice %474 {offsets = [0, 0], sizes = [8, 128], strides = [1, 1]} : vector<8x384xf32> to vector<8x128xf32>
    %477 = arith.addf %475, %476 : vector<8x128xf32>
    %478 = arith.negf %477 : vector<8x128xf32>
    %479 = math.exp %478 : vector<8x128xf32>
    %cst_161 = arith.constant 1.000000e+00 : f32
    %480 = vector.broadcast %cst_161 : f32 to vector<8x128xf32>
    %481 = arith.addf %480, %479 : vector<8x128xf32>
    %482 = arith.divf %480, %481 : vector<8x128xf32>
    %483 = vector.extract_strided_slice %442 {offsets = [0, 128], sizes = [8, 128], strides = [1, 1]} : vector<8x384xf32> to vector<8x128xf32>
    %484 = vector.extract_strided_slice %474 {offsets = [0, 128], sizes = [8, 128], strides = [1, 1]} : vector<8x384xf32> to vector<8x128xf32>
    %485 = arith.addf %483, %484 : vector<8x128xf32>
    %486 = arith.negf %485 : vector<8x128xf32>
    %487 = math.exp %486 : vector<8x128xf32>
    %cst_162 = arith.constant 1.000000e+00 : f32
    %488 = vector.broadcast %cst_162 : f32 to vector<8x128xf32>
    %489 = arith.addf %488, %487 : vector<8x128xf32>
    %490 = arith.divf %488, %489 : vector<8x128xf32>
    %491 = vector.extract_strided_slice %442 {offsets = [0, 256], sizes = [8, 128], strides = [1, 1]} : vector<8x384xf32> to vector<8x128xf32>
    %492 = vector.extract_strided_slice %474 {offsets = [0, 256], sizes = [8, 128], strides = [1, 1]} : vector<8x384xf32> to vector<8x128xf32>
    %493 = arith.addf %492, %19 : vector<8x128xf32>
    %494 = arith.mulf %482, %493 : vector<8x128xf32>
    %495 = arith.addf %491, %494 : vector<8x128xf32>
    %496 = math.tanh %495 : vector<8x128xf32>
    %cst_163 = arith.constant 1.000000e+00 : f32
    %497 = vector.broadcast %cst_163 : f32 to vector<8x128xf32>
    %498 = arith.subf %497, %490 : vector<8x128xf32>
    %499 = arith.mulf %498, %496 : vector<8x128xf32>
    %500 = arith.mulf %490, %473 : vector<8x128xf32>
    %501 = arith.addf %499, %500 : vector<8x128xf32>
    %c0_164 = arith.constant 0 : index
    %c0_165 = arith.constant 0 : index
    %502 = vector.load %arg14[%c0_164, %c0_165] : memref<8x128xf32, #tpu.memory_space<vmem>>, vector<8x128xf32>
    tpu.vector_store %arg14[%c0_164, %c0_165], %501 {strides = array<i32>} : memref<8x128xf32, #tpu.memory_space<vmem>>, vector<8x128xf32>,
    %c7_i32_166 = arith.constant 7 : i32
    %c8_i32_167 = arith.constant 8 : i32
    %503 = arith.muli %c7_i32_166, %c8_i32_167 : i32
    %504 = tpu.assume_multiple %503, 8 : i32
    %c7_i32_168 = arith.constant 7 : i32
    %505 = arith.subi %c7_i32_168, %c7_i32_166 : i32
    %c8_i32_169 = arith.constant 8 : i32
    %506 = arith.muli %505, %c8_i32_169 : i32
    %507 = tpu.assume_multiple %506, 8 : i32
    %508 = arith.index_cast %504 : i32 to index
    %c0_170 = arith.constant 0 : index
    %509 = vector.load %arg12[%508, %c0_170] : memref<64x768xf32, #tpu.memory_space<vmem>>, vector<8x384xf32>
    %510 = arith.index_cast %507 : i32 to index
    %c384_171 = arith.constant 384 : index
    %511 = vector.load %arg12[%510, %c384_171] : memref<64x768xf32, #tpu.memory_space<vmem>>, vector<8x384xf32>
    %c0_172 = arith.constant 0 : index
    %c0_173 = arith.constant 0 : index
    %512 = vector.load %arg13[%c0_172, %c0_173] : memref<8x128xf32, #tpu.memory_space<vmem>>, vector<8x128xf32>
    %cst_174 = arith.constant dense<0.000000e+00> : vector<8x384xf32>
    %513 = tpu.matmul %512, %12, %cst_174 {dimension_numbers = #tpu.dot_dimension_numbers<[1], [0], [0], [1], [0, 0, 1, 1], [], []>} : vector<8x128xf32>, vector<128x384xf32>, vector<8x384xf32> -> vector<8x384xf32>
    %514 = vector.extract_strided_slice %509 {offsets = [0, 0], sizes = [8, 128], strides = [1, 1]} : vector<8x384xf32> to vector<8x128xf32>
    %515 = vector.extract_strided_slice %513 {offsets = [0, 0], sizes = [8, 128], strides = [1, 1]} : vector<8x384xf32> to vector<8x128xf32>
    %516 = arith.addf %514, %515 : vector<8x128xf32>
    %517 = arith.negf %516 : vector<8x128xf32>
    %518 = math.exp %517 : vector<8x128xf32>
    %cst_175 = arith.constant 1.000000e+00 : f32
    %519 = vector.broadcast %cst_175 : f32 to vector<8x128xf32>
    %520 = arith.addf %519, %518 : vector<8x128xf32>
    %521 = arith.divf %519, %520 : vector<8x128xf32>
    %522 = vector.extract_strided_slice %509 {offsets = [0, 128], sizes = [8, 128], strides = [1, 1]} : vector<8x384xf32> to vector<8x128xf32>
    %523 = vector.extract_strided_slice %513 {offsets = [0, 128], sizes = [8, 128], strides = [1, 1]} : vector<8x384xf32> to vector<8x128xf32>
    %524 = arith.addf %522, %523 : vector<8x128xf32>
    %525 = arith.negf %524 : vector<8x128xf32>
    %526 = math.exp %525 : vector<8x128xf32>
    %cst_176 = arith.constant 1.000000e+00 : f32
    %527 = vector.broadcast %cst_176 : f32 to vector<8x128xf32>
    %528 = arith.addf %527, %526 : vector<8x128xf32>
    %529 = arith.divf %527, %528 : vector<8x128xf32>
    %530 = vector.extract_strided_slice %509 {offsets = [0, 256], sizes = [8, 128], strides = [1, 1]} : vector<8x384xf32> to vector<8x128xf32>
    %531 = vector.extract_strided_slice %513 {offsets = [0, 256], sizes = [8, 128], strides = [1, 1]} : vector<8x384xf32> to vector<8x128xf32>
    %532 = arith.addf %531, %16 : vector<8x128xf32>
    %533 = arith.mulf %521, %532 : vector<8x128xf32>
    %534 = arith.addf %530, %533 : vector<8x128xf32>
    %535 = math.tanh %534 : vector<8x128xf32>
    %cst_177 = arith.constant 1.000000e+00 : f32
    %536 = vector.broadcast %cst_177 : f32 to vector<8x128xf32>
    %537 = arith.subf %536, %529 : vector<8x128xf32>
    %538 = arith.mulf %537, %535 : vector<8x128xf32>
    %539 = arith.mulf %529, %512 : vector<8x128xf32>
    %540 = arith.addf %538, %539 : vector<8x128xf32>
    %c0_178 = arith.constant 0 : index
    %c0_179 = arith.constant 0 : index
    %541 = vector.load %arg13[%c0_178, %c0_179] : memref<8x128xf32, #tpu.memory_space<vmem>>, vector<8x128xf32>
    tpu.vector_store %arg13[%c0_178, %c0_179], %540 {strides = array<i32>} : memref<8x128xf32, #tpu.memory_space<vmem>>, vector<8x128xf32>,
    %c0_180 = arith.constant 0 : index
    %c0_181 = arith.constant 0 : index
    %542 = vector.load %arg14[%c0_180, %c0_181] : memref<8x128xf32, #tpu.memory_space<vmem>>, vector<8x128xf32>
    %cst_182 = arith.constant dense<0.000000e+00> : vector<8x384xf32>
    %543 = tpu.matmul %542, %13, %cst_182 {dimension_numbers = #tpu.dot_dimension_numbers<[1], [0], [0], [1], [0, 0, 1, 1], [], []>} : vector<8x128xf32>, vector<128x384xf32>, vector<8x384xf32> -> vector<8x384xf32>
    %544 = vector.extract_strided_slice %511 {offsets = [0, 0], sizes = [8, 128], strides = [1, 1]} : vector<8x384xf32> to vector<8x128xf32>
    %545 = vector.extract_strided_slice %543 {offsets = [0, 0], sizes = [8, 128], strides = [1, 1]} : vector<8x384xf32> to vector<8x128xf32>
    %546 = arith.addf %544, %545 : vector<8x128xf32>
    %547 = arith.negf %546 : vector<8x128xf32>
    %548 = math.exp %547 : vector<8x128xf32>
    %cst_183 = arith.constant 1.000000e+00 : f32
    %549 = vector.broadcast %cst_183 : f32 to vector<8x128xf32>
    %550 = arith.addf %549, %548 : vector<8x128xf32>
    %551 = arith.divf %549, %550 : vector<8x128xf32>
    %552 = vector.extract_strided_slice %511 {offsets = [0, 128], sizes = [8, 128], strides = [1, 1]} : vector<8x384xf32> to vector<8x128xf32>
    %553 = vector.extract_strided_slice %543 {offsets = [0, 128], sizes = [8, 128], strides = [1, 1]} : vector<8x384xf32> to vector<8x128xf32>
    %554 = arith.addf %552, %553 : vector<8x128xf32>
    %555 = arith.negf %554 : vector<8x128xf32>
    %556 = math.exp %555 : vector<8x128xf32>
    %cst_184 = arith.constant 1.000000e+00 : f32
    %557 = vector.broadcast %cst_184 : f32 to vector<8x128xf32>
    %558 = arith.addf %557, %556 : vector<8x128xf32>
    %559 = arith.divf %557, %558 : vector<8x128xf32>
    %560 = vector.extract_strided_slice %511 {offsets = [0, 256], sizes = [8, 128], strides = [1, 1]} : vector<8x384xf32> to vector<8x128xf32>
    %561 = vector.extract_strided_slice %543 {offsets = [0, 256], sizes = [8, 128], strides = [1, 1]} : vector<8x384xf32> to vector<8x128xf32>
    %562 = arith.addf %561, %19 : vector<8x128xf32>
    %563 = arith.mulf %551, %562 : vector<8x128xf32>
    %564 = arith.addf %560, %563 : vector<8x128xf32>
    %565 = math.tanh %564 : vector<8x128xf32>
    %cst_185 = arith.constant 1.000000e+00 : f32
    %566 = vector.broadcast %cst_185 : f32 to vector<8x128xf32>
    %567 = arith.subf %566, %559 : vector<8x128xf32>
    %568 = arith.mulf %567, %565 : vector<8x128xf32>
    %569 = arith.mulf %559, %542 : vector<8x128xf32>
    %570 = arith.addf %568, %569 : vector<8x128xf32>
    %c0_186 = arith.constant 0 : index
    %c0_187 = arith.constant 0 : index
    %571 = vector.load %arg14[%c0_186, %c0_187] : memref<8x128xf32, #tpu.memory_space<vmem>>, vector<8x128xf32>
    tpu.vector_store %arg14[%c0_186, %c0_187], %570 {strides = array<i32>} : memref<8x128xf32, #tpu.memory_space<vmem>>, vector<8x128xf32>,
    %c8_i32_188 = arith.constant 8 : i32
    %c0_189 = arith.constant 0 : index
    %c0_190 = arith.constant 0 : index
    %572 = vector.load %arg13[%c0_189, %c0_190] : memref<8x128xf32, #tpu.memory_space<vmem>>, vector<8x128xf32>
    %c0_191 = arith.constant 0 : index
    %c0_192 = arith.constant 0 : index
    %573 = vector.load %arg8[%c0_191, %c0_192] : memref<1x128xf32, #tpu.memory_space<vmem>>, vector<1x128xf32>
    %574 = vector.broadcast %573 : vector<1x128xf32> to vector<8x128xf32>
    %575 = arith.mulf %572, %574 : vector<8x128xf32>
    %cst_193 = arith.constant dense<0.000000e+00> : vector<8xf32>
    %576 = vector.multi_reduction <add>, %575, %cst_193 [1] : vector<8x128xf32> to vector<8xf32>
    %577 = vector.shape_cast %576 : vector<8xf32> to vector<8x1xf32>
    %c0_194 = arith.constant 0 : index
    %c0_195 = arith.constant 0 : index
    %578 = vector.load %arg14[%c0_194, %c0_195] : memref<8x128xf32, #tpu.memory_space<vmem>>, vector<8x128xf32>
    %c0_196 = arith.constant 0 : index
    %c0_197 = arith.constant 0 : index
    %579 = vector.load %arg9[%c0_196, %c0_197] : memref<1x128xf32, #tpu.memory_space<vmem>>, vector<1x128xf32>
    %580 = vector.broadcast %579 : vector<1x128xf32> to vector<8x128xf32>
    %581 = arith.mulf %578, %580 : vector<8x128xf32>
    %cst_198 = arith.constant dense<0.000000e+00> : vector<8xf32>
    %582 = vector.multi_reduction <add>, %581, %cst_198 [1] : vector<8x128xf32> to vector<8xf32>
    %583 = vector.shape_cast %582 : vector<8xf32> to vector<8x1xf32>
    %584 = arith.addf %577, %583 : vector<8x1xf32>
    %585 = vector.shape_cast %584 : vector<8x1xf32> to vector<8x1xf32>
    %586 = vector.broadcast %585 : vector<8x1xf32> to vector<8x128xf32>
    %c0_199 = arith.constant 0 : index
    %c0_200 = arith.constant 0 : index
    %587 = vector.load %arg10[%c0_199, %c0_200] : memref<1x128xf32, #tpu.memory_space<vmem>>, vector<1x128xf32>
    %588 = vector.broadcast %587 : vector<1x128xf32> to vector<8x128xf32>
    %589 = arith.addf %586, %588 : vector<8x128xf32>
    %c0_201 = arith.constant 0 : index
    %c0_202 = arith.constant 0 : index
    %590 = vector.load %arg11[%c0_201, %c0_202] : memref<8x128xf32, #tpu.memory_space<vmem>>, vector<8x128xf32>
    tpu.vector_store %arg11[%c0_201, %c0_202], %589 {strides = array<i32>} : memref<8x128xf32, #tpu.memory_space<vmem>>, vector<8x128xf32>,
    return
  }
  func.func @transform_0(%arg0: i32) -> (i32, i32, i32) {
    %c0_i32 = arith.constant 0 : i32
    %c0_i32_0 = arith.constant 0 : i32
    %c0_i32_1 = arith.constant 0 : i32
    return %arg0, %c0_i32, %c0_i32_0 : i32, i32, i32
  }
  func.func @transform_1(%arg0: i32) -> (i32, i32) {
    %c0_i32 = arith.constant 0 : i32
    %c0_i32_0 = arith.constant 0 : i32
    %c0_i32_1 = arith.constant 0 : i32
    return %c0_i32, %c0_i32_0 : i32, i32
  }
  func.func @transform_2(%arg0: i32) -> (i32, i32) {
    %c0_i32 = arith.constant 0 : i32
    %c0_i32_0 = arith.constant 0 : i32
    %c0_i32_1 = arith.constant 0 : i32
    return %c0_i32, %c0_i32_0 : i32, i32
  }
  func.func @transform_3(%arg0: i32) -> (i32, i32) {
    %c0_i32 = arith.constant 0 : i32
    %c0_i32_0 = arith.constant 0 : i32
    %c0_i32_1 = arith.constant 0 : i32
    return %c0_i32, %c0_i32_0 : i32, i32
  }
  func.func @transform_4(%arg0: i32) -> (i32, i32) {
    %c0_i32 = arith.constant 0 : i32
    %c0_i32_0 = arith.constant 0 : i32
    %c0_i32_1 = arith.constant 0 : i32
    return %c0_i32, %c0_i32_0 : i32, i32
  }
  func.func @transform_5(%arg0: i32) -> (i32, i32) {
    %c0_i32 = arith.constant 0 : i32
    %c0_i32_0 = arith.constant 0 : i32
    %c0_i32_1 = arith.constant 0 : i32
    return %c0_i32, %c0_i32_0 : i32, i32
  }
  func.func @transform_6(%arg0: i32) -> (i32, i32) {
    %c0_i32 = arith.constant 0 : i32
    %c0_i32_0 = arith.constant 0 : i32
    %c0_i32_1 = arith.constant 0 : i32
    return %c0_i32, %c0_i32_0 : i32, i32
  }
  func.func @transform_7(%arg0: i32) -> (i32, i32) {
    %c0_i32 = arith.constant 0 : i32
    %c0_i32_0 = arith.constant 0 : i32
    %c0_i32_1 = arith.constant 0 : i32
    return %c0_i32, %c0_i32_0 : i32, i32
  }
  func.func @transform_8(%arg0: i32) -> (i32, i32) {
    %c0_i32 = arith.constant 0 : i32
    %c0_i32_0 = arith.constant 0 : i32
    %c0_i32_1 = arith.constant 0 : i32
    return %c0_i32, %c0_i32_0 : i32, i32
  }
  func.func @transform_9(%arg0: i32) -> (i32, i32) {
    %c0_i32 = arith.constant 0 : i32
    %c0_i32_0 = arith.constant 0 : i32
    %c0_i32_1 = arith.constant 0 : i32
    return %c0_i32, %c0_i32_0 : i32, i32
  }
  func.func @transform_10(%arg0: i32) -> (i32, i32) {
    %c0_i32 = arith.constant 0 : i32
    %c0_i32_0 = arith.constant 0 : i32
    return %arg0, %c0_i32 : i32, i32
  }
}

</mosaic_0001>

<llo_original>
// kernel: tpu_custom_call.1
$region0: #{tpu_custom_call.1}
  #allocation0 [shape = 'u32[]', space=smem, size = 0x4, offset = 0x4, fixed_abs, tag = 'smem constant byte address 0x4 - core index']
  #allocation1 [shape = 'u32[72,128]{1,0:T(1,128)}', space=vmem, size = 0x9000, scoped, tag = 'internal scratch']
  #allocation2 [shape = 'f32[64,768]{1,0:T(8,128)}', space=vmem, size = 0x30000, scoped, tag = 'scratch operand']
  #allocation3 [shape = 'f32[8,128]{1,0:T(8,128)}', space=vmem, size = 0x1000, scoped, tag = 'scratch operand']
  #allocation4 [shape = 'f32[8,128]{1,0:T(8,128)}', space=vmem, size = 0x1000, scoped, tag = 'scratch operand']
  %s0 = inlined_call_operand.vmem [shape: f32[1,64,16], index: 0, kind: input, shape index: {}]
  %s1 = inlined_call_operand.hbm [shape: f32[16,768], index: 1, kind: input, shape index: {}]
  %s2 = inlined_call_operand.vmem [shape: f32[1,768], index: 2, kind: input, shape index: {}]
  %s3 = inlined_call_operand.hbm [shape: f32[128,384], index: 3, kind: input, shape index: {}]
  %s4 = inlined_call_operand.vmem [shape: f32[1,128], index: 4, kind: input, shape index: {}]
  %s5 = inlined_call_operand.hbm [shape: f32[128,384], index: 5, kind: input, shape index: {}]
  %s6 = inlined_call_operand.vmem [shape: f32[1,128], index: 6, kind: input, shape index: {}]
  %s7 = inlined_call_operand.vmem [shape: f32[1,128], index: 7, kind: input, shape index: {}]
  %s8 = inlined_call_operand.vmem [shape: f32[1,128], index: 8, kind: input, shape index: {}]
  %s9 = inlined_call_operand.vmem [shape: f32[1,128], index: 9, kind: input, shape index: {}]
  %s10 = inlined_call_operand.hbm [shape: f32[8,128], index: 10, kind: output, shape index: {}]
  %s11 = sld [smem:[#allocation0]]
  $region62: #{tpu_custom_call.1} parent=0
    _
  %s13 = ssub.s32 1, %s11
  %s14 = scalar_select 0, %s13, %s11
  $region1: #{tpu_custom_call.1} parent=0
    #allocation5 [shape = 'u8[49152]{0}', space=vmem, size = 0xc000, scoped, tag = 'input window, operand 1, single buffered']
    #allocation6 [shape = 's32[1]{0}', space=sflag, size = 0x4, scoped, tag = 'scoped memory for tpu_custom_call.1']
    #allocation7 [shape = 's32[1]{0}', space=sflag, size = 0x4, scoped, tag = 'scoped memory for tpu_custom_call.1']
    #allocation8 [shape = 'u8[196608]{0}', space=vmem, size = 0x30000, scoped, tag = 'input window, operand 3, single buffered']
    #allocation9 [shape = 's32[1]{0}', space=sflag, size = 0x4, scoped, tag = 'scoped memory for tpu_custom_call.1']
    #allocation10 [shape = 'u8[196608]{0}', space=vmem, size = 0x30000, scoped, tag = 'input window, operand 5, single buffered']
    #allocation11 [shape = 'u8[4096]{0}', space=vmem, size = 0x1000, scoped, tag = 'output window, operand 0, single buffered']
    %15 = vsyncpa [#allocation6], 0
    %16 = vsyncpa [#allocation9], 0
    %17 = vsyncpa [#allocation7], 0
    // Predicated region
    $region2: #{tpu_custom_call.1} parent=1 // pred_check
      _
    $region3: #{tpu_custom_call.1} parent=1 // pred_check_branch
      %19 = sbr.rel (0) target = $region5
    $region4: #{tpu_custom_call.1} parent=1 // pred_region
      _
    $region5: #{tpu_custom_call.1} parent=1 // pred_fallthru
      _
    // Predicated region
    $region6: #{tpu_custom_call.1} parent=1 // pred_check
      _
    $region7: #{tpu_custom_call.1} parent=1 // pred_check_branch
      %21 = sbr.rel (0) target = $region9
    $region8: #{tpu_custom_call.1} parent=1 // pred_region
      %23 = vsyncadd [#allocation6], 0
      %s24 = sshll.u32 %s1, 4
      %s25 = int_to_ptr.hbm [resolvable:$true] %s24
      %s26 = sshll.u32 [#allocation5], 4
      %s27 = int_to_ptr.vmem [resolvable:$true] %s26
      %32 = dma.hbm_to_vmem [thread:$0]  %s25, 1536, %s27, [#allocation6], 768, 768, 48
    $region9: #{tpu_custom_call.1} parent=1 // pred_fallthru
      _
    // Predicated region
    $region10: #{tpu_custom_call.1} parent=1 // pred_check
      _
    $region11: #{tpu_custom_call.1} parent=1 // pred_check_branch
      %34 = sbr.rel (0) target = $region13
    $region12: #{tpu_custom_call.1} parent=1 // pred_region
      _
    $region13: #{tpu_custom_call.1} parent=1 // pred_fallthru
      _
    // Predicated region
    $region14: #{tpu_custom_call.1} parent=1 // pred_check
      _
    $region15: #{tpu_custom_call.1} parent=1 // pred_check_branch
      %36 = sbr.rel (0) target = $region17
    $region16: #{tpu_custom_call.1} parent=1 // pred_region
      %38 = vsyncadd [#allocation9], 0
      %s39 = sshll.u32 %s3, 4
      %s40 = int_to_ptr.hbm [resolvable:$true] %s39
      %s41 = sshll.u32 [#allocation8], 4
      %s42 = int_to_ptr.vmem [resolvable:$true] %s41
      %47 = dma.hbm_to_vmem [thread:$0]  %s40, 6144, %s42, [#allocation9], 384, 384, 24
    $region17: #{tpu_custom_call.1} parent=1 // pred_fallthru
      _
    // Predicated region
    $region18: #{tpu_custom_call.1} parent=1 // pred_check
      _
    $region19: #{tpu_custom_call.1} parent=1 // pred_check_branch
      %49 = sbr.rel (0) target = $region21
    $region20: #{tpu_custom_call.1} parent=1 // pred_region
      _
    $region21: #{tpu_custom_call.1} parent=1 // pred_fallthru
      _
    // Predicated region
    $region22: #{tpu_custom_call.1} parent=1 // pred_check
      _
    $region23: #{tpu_custom_call.1} parent=1 // pred_check_branch
      %51 = sbr.rel (0) target = $region25
    $region24: #{tpu_custom_call.1} parent=1 // pred_region
      %53 = vsyncadd [#allocation9], 0
      %s54 = sshll.u32 %s5, 4
      %s55 = int_to_ptr.hbm [resolvable:$true] %s54
      %s56 = sshll.u32 [#allocation10], 4
      %s57 = int_to_ptr.vmem [resolvable:$true] %s56
      %62 = dma.hbm_to_vmem [thread:$0]  %s55, 6144, %s57, [#allocation9], 384, 384, 24
    $region25: #{tpu_custom_call.1} parent=1 // pred_fallthru
      _
    // Predicated region
    $region26: #{tpu_custom_call.1} parent=1 // pred_check
      _
    $region27: #{tpu_custom_call.1} parent=1 // pred_check_branch
      %64 = sbr.rel (0) target = $region29
    $region28: #{tpu_custom_call.1} parent=1 // pred_region
      _
    $region29: #{tpu_custom_call.1} parent=1 // pred_fallthru
      _
    // Predicated region
    $region30: #{tpu_custom_call.1} parent=1 // pred_check
      _
    $region31: #{tpu_custom_call.1} parent=1 // pred_check_branch
      %66 = sbr.rel (0) target = $region33
    $region32: #{tpu_custom_call.1} parent=1 // pred_region
      _
    $region33: #{tpu_custom_call.1} parent=1 // pred_fallthru
      _
    // Predicated region
    $region34: #{tpu_custom_call.1} parent=1 // pred_check
      _
    $region35: #{tpu_custom_call.1} parent=1 // pred_check_branch
      %68 = sbr.rel (0) target = $region37
    $region36: #{tpu_custom_call.1} parent=1 // pred_region
      _
    $region37: #{tpu_custom_call.1} parent=1 // pred_fallthru
      _
    // Predicated region
    $region38: #{tpu_custom_call.1} parent=1 // pred_check
      _
    $region39: #{tpu_custom_call.1} parent=1 // pred_check_branch
      %70 = sbr.rel (0) target = $region41
    $region40: #{tpu_custom_call.1} parent=1 // pred_region
      _
    $region41: #{tpu_custom_call.1} parent=1 // pred_fallthru
      _
    // Predicated region
    $region42: #{tpu_custom_call.1} parent=1 // pred_check
      _
    $region43: #{tpu_custom_call.1} parent=1 // pred_check_branch
      %72 = sbr.rel (0) target = $region45
    $region44: #{tpu_custom_call.1} parent=1 // pred_region
      %74 = dma.done [#allocation6], 1536
    $region45: #{tpu_custom_call.1} parent=1 // pred_fallthru
      _
    // Predicated region
    $region46: #{tpu_custom_call.1} parent=1 // pred_check
      _
    $region47: #{tpu_custom_call.1} parent=1 // pred_check_branch
      %76 = sbr.rel (0) target = $region49
    $region48: #{tpu_custom_call.1} parent=1 // pred_region
      %78 = dma.done [#allocation9], 6144
    $region49: #{tpu_custom_call.1} parent=1 // pred_fallthru
      _
    // Predicated region
    $region50: #{tpu_custom_call.1} parent=1 // pred_check
      _
    $region51: #{tpu_custom_call.1} parent=1 // pred_check_branch
      %80 = sbr.rel (0) target = $region53
    $region52: #{tpu_custom_call.1} parent=1 // pred_region
      %82 = dma.done [#allocation9], 6144
    $region53: #{tpu_custom_call.1} parent=1 // pred_fallthru
      _
    %v83 = vld [vmem:[%s0] sm:$0xff]
    %v84 = vld [vmem:[%s0 + $0x8] sm:$0xff]
    %v85 = vld [vmem:[%s0 + $0x10] sm:$0xff]
    %v86 = vld [vmem:[%s0 + $0x18] sm:$0xff]
    %v87 = vld [vmem:[%s0 + $0x20] sm:$0xff]
    %v88 = vld [vmem:[%s0 + $0x28] sm:$0xff]
    %v89 = vld [vmem:[%s0 + $0x30] sm:$0xff]
    %v90 = vld [vmem:[%s0 + $0x38] sm:$0xff]
    %v91 = vld [vmem:[#allocation5] sm:$0xff]
    %v92 = vld [vmem:[#allocation5 + $0x8] sm:$0xff]
    %v93 = vld [vmem:[#allocation5 + $0x10] sm:$0xff]
    %v94 = vld [vmem:[#allocation5 + $0x18] sm:$0xff]
    %v95 = vld [vmem:[#allocation5 + $0x20] sm:$0xff]
    %v96 = vld [vmem:[#allocation5 + $0x28] sm:$0xff]
    %v97 = vld [vmem:[#allocation5 + $0x30] sm:$0xff]
    %v98 = vld [vmem:[#allocation5 + $0x38] sm:$0xff]
    %v99 = vld [vmem:[#allocation5 + $0x40] sm:$0xff]
    %v100 = vld [vmem:[#allocation5 + $0x48] sm:$0xff]
    %v101 = vld [vmem:[#allocation5 + $0x50] sm:$0xff]
    %v102 = vld [vmem:[#allocation5 + $0x58] sm:$0xff]
    %v103 = vld [vmem:[%s2] sm:$0x3f]
    %v105 = vperm.slane %v103, 0
    %v106 = vperm.slane %v103, 1
    %v107 = vperm.slane %v103, 2
    %v108 = vperm.slane %v103, 3
    %v109 = vperm.slane %v103, 4
    %v110 = vperm.slane %v103, 5
    %vm117 = vcmask 130048
    %v119 = vsel %vm117, %v83, 0
    %v122 = vsel %vm117, %v84, 0
    %v125 = vsel %vm117, %v85, 0
    %v128 = vsel %vm117, %v86, 0
    %v131 = vsel %vm117, %v87, 0
    %v134 = vsel %vm117, %v88, 0
    %v137 = vsel %vm117, %v89, 0
    %v140 = vsel %vm117, %v90, 0
    %142 = vmatpush.msra.mxu0 0.0
    %143 = vmatpush.msra.mxu0 0.0
    %144 = vmatpush.msra.mxu0 0.0
    %145 = vmatpush.msra.mxu0 0.0
    %146 = vmatpush.msra.mxu0 0.0
    %147 = vmatpush.msra.mxu0 0.0
    %148 = vmatpush.msra.mxu0 0.0
    %149 = vmatpush.msra.mxu0 0.0
    %150 = vmatpush.msra.mxu0 0.0
    %151 = vmatpush.msra.mxu0 0.0
    %152 = vmatpush.msra.mxu0 0.0
    %153 = vmatpush.msra.mxu0 0.0
    %154 = vmatpush.msra.mxu0 0.0
    %155 = vmatpush.msra.mxu0 0.0
    %156 = vmatpush.msra.mxu0 %v97
    %157 = vmatpush.msra.mxu0 %v91
    %158 = vmatmul.f32.gmra.mxu0 %v119
    %v159 = vpop.f32.mrf.mxu0
    %v160 = vadd.f32 %v105, %v159
    %161 = vmatmul.f32.gmra.mxu0 %v122
    %v162 = vpop.f32.mrf.mxu0
    %v163 = vadd.f32 %v105, %v162
    %164 = vmatmul.f32.gmra.mxu0 %v125
    %v165 = vpop.f32.mrf.mxu0
    %v166 = vadd.f32 %v105, %v165
    %167 = vmatmul.f32.gmra.mxu0 %v128
    %v168 = vpop.f32.mrf.mxu0
    %v169 = vadd.f32 %v105, %v168
    %170 = vmatmul.f32.gmra.mxu0 %v131
    %v171 = vpop.f32.mrf.mxu0
    %v172 = vadd.f32 %v105, %v171
    %173 = vmatmul.f32.gmra.mxu0 %v134
    %v174 = vpop.f32.mrf.mxu0
    %v175 = vadd.f32 %v105, %v174
    %176 = vmatmul.f32.gmra.mxu0 %v137
    %v177 = vpop.f32.mrf.mxu0
    %v178 = vadd.f32 %v105, %v177
    %179 = vmatmul.f32.gmra.mxu0 %v140
    %v180 = vpop.f32.mrf.mxu0
    %v181 = vadd.f32 %v105, %v180
    %182 = vdwg.mxu0
    %183 = vmatpush.msra.mxu0 0.0
    %184 = vmatpush.msra.mxu0 0.0
    %185 = vmatpush.msra.mxu0 0.0
    %186 = vmatpush.msra.mxu0 0.0
    %187 = vmatpush.msra.mxu0 0.0
    %188 = vmatpush.msra.mxu0 0.0
    %189 = vmatpush.msra.mxu0 0.0
    %190 = vmatpush.msra.mxu0 0.0
    %191 = vmatpush.msra.mxu0 0.0
    %192 = vmatpush.msra.mxu0 0.0
    %193 = vmatpush.msra.mxu0 0.0
    %194 = vmatpush.msra.mxu0 0.0
    %195 = vmatpush.msra.mxu0 0.0
    %196 = vmatpush.msra.mxu0 0.0
    %197 = vmatpush.msra.mxu0 %v98
    %198 = vmatpush.msra.mxu0 %v92
    %199 = vmatmul.f32.gmra.mxu0 %v119
    %v200 = vpop.f32.mrf.mxu0
    %v201 = vadd.f32 %v106, %v200
    %202 = vmatmul.f32.gmra.mxu0 %v122
    %v203 = vpop.f32.mrf.mxu0
    %v204 = vadd.f32 %v106, %v203
    %205 = vmatmul.f32.gmra.mxu0 %v125
    %v206 = vpop.f32.mrf.mxu0
    %v207 = vadd.f32 %v106, %v206
    %208 = vmatmul.f32.gmra.mxu0 %v128
    %v209 = vpop.f32.mrf.mxu0
    %v210 = vadd.f32 %v106, %v209
    %211 = vmatmul.f32.gmra.mxu0 %v131
    %v212 = vpop.f32.mrf.mxu0
    %v213 = vadd.f32 %v106, %v212
    %214 = vmatmul.f32.gmra.mxu0 %v134
    %v215 = vpop.f32.mrf.mxu0
    %v216 = vadd.f32 %v106, %v215
    %217 = vmatmul.f32.gmra.mxu0 %v137
    %v218 = vpop.f32.mrf.mxu0
    %v219 = vadd.f32 %v106, %v218
    %220 = vmatmul.f32.gmra.mxu0 %v140
    %v221 = vpop.f32.mrf.mxu0
    %v222 = vadd.f32 %v106, %v221
    %223 = vdwg.mxu0
    %224 = vmatpush.msra.mxu0 0.0
    %225 = vmatpush.msra.mxu0 0.0
    %226 = vmatpush.msra.mxu0 0.0
    %227 = vmatpush.msra.mxu0 0.0
    %228 = vmatpush.msra.mxu0 0.0
    %229 = vmatpush.msra.mxu0 0.0
    %230 = vmatpush.msra.mxu0 0.0
    %231 = vmatpush.msra.mxu0 0.0
    %232 = vmatpush.msra.mxu0 0.0
    %233 = vmatpush.msra.mxu0 0.0
    %234 = vmatpush.msra.mxu0 0.0
    %235 = vmatpush.msra.mxu0 0.0
    %236 = vmatpush.msra.mxu0 0.0
    %237 = vmatpush.msra.mxu0 0.0
    %238 = vmatpush.msra.mxu0 %v99
    %239 = vmatpush.msra.mxu0 %v93
    %240 = vmatmul.f32.gmra.mxu0 %v119
    %v241 = vpop.f32.mrf.mxu0
    %v242 = vadd.f32 %v107, %v241
    %243 = vmatmul.f32.gmra.mxu0 %v122
    %v244 = vpop.f32.mrf.mxu0
    %v245 = vadd.f32 %v107, %v244
    %246 = vmatmul.f32.gmra.mxu0 %v125
    %v247 = vpop.f32.mrf.mxu0
    %v248 = vadd.f32 %v107, %v247
    %249 = vmatmul.f32.gmra.mxu0 %v128
    %v250 = vpop.f32.mrf.mxu0
    %v251 = vadd.f32 %v107, %v250
    %252 = vmatmul.f32.gmra.mxu0 %v131
    %v253 = vpop.f32.mrf.mxu0
    %v254 = vadd.f32 %v107, %v253
    %255 = vmatmul.f32.gmra.mxu0 %v134
    %v256 = vpop.f32.mrf.mxu0
    %v257 = vadd.f32 %v107, %v256
    %258 = vmatmul.f32.gmra.mxu0 %v137
    %v259 = vpop.f32.mrf.mxu0
    %v260 = vadd.f32 %v107, %v259
    %261 = vmatmul.f32.gmra.mxu0 %v140
    %v262 = vpop.f32.mrf.mxu0
    %v263 = vadd.f32 %v107, %v262
    %264 = vdwg.mxu0
    %265 = vmatpush.msra.mxu0 0.0
    %266 = vmatpush.msra.mxu0 0.0
    %267 = vmatpush.msra.mxu0 0.0
    %268 = vmatpush.msra.mxu0 0.0
    %269 = vmatpush.msra.mxu0 0.0
    %270 = vmatpush.msra.mxu0 0.0
    %271 = vmatpush.msra.mxu0 0.0
    %272 = vmatpush.msra.mxu0 0.0
    %273 = vmatpush.msra.mxu0 0.0
    %274 = vmatpush.msra.mxu0 0.0
    %275 = vmatpush.msra.mxu0 0.0
    %276 = vmatpush.msra.mxu0 0.0
    %277 = vmatpush.msra.mxu0 0.0
    %278 = vmatpush.msra.mxu0 0.0
    %279 = vmatpush.msra.mxu0 %v100
    %280 = vmatpush.msra.mxu0 %v94
    %281 = vmatmul.f32.gmra.mxu0 %v119
    %v282 = vpop.f32.mrf.mxu0
    %v283 = vadd.f32 %v108, %v282
    %284 = vmatmul.f32.gmra.mxu0 %v122
    %v285 = vpop.f32.mrf.mxu0
    %v286 = vadd.f32 %v108, %v285
    %287 = vmatmul.f32.gmra.mxu0 %v125
    %v288 = vpop.f32.mrf.mxu0
    %v289 = vadd.f32 %v108, %v288
    %290 = vmatmul.f32.gmra.mxu0 %v128
    %v291 = vpop.f32.mrf.mxu0
    %v292 = vadd.f32 %v108, %v291
    %293 = vmatmul.f32.gmra.mxu0 %v131
    %v294 = vpop.f32.mrf.mxu0
    %v295 = vadd.f32 %v108, %v294
    %296 = vmatmul.f32.gmra.mxu0 %v134
    %v297 = vpop.f32.mrf.mxu0
    %v298 = vadd.f32 %v108, %v297
    %299 = vmatmul.f32.gmra.mxu0 %v137
    %v300 = vpop.f32.mrf.mxu0
    %v301 = vadd.f32 %v108, %v300
    %302 = vmatmul.f32.gmra.mxu0 %v140
    %v303 = vpop.f32.mrf.mxu0
    %v304 = vadd.f32 %v108, %v303
    %305 = vdwg.mxu0
    %306 = vmatpush.msra.mxu0 0.0
    %307 = vmatpush.msra.mxu0 0.0
    %308 = vmatpush.msra.mxu0 0.0
    %309 = vmatpush.msra.mxu0 0.0
    %310 = vmatpush.msra.mxu0 0.0
    %311 = vmatpush.msra.mxu0 0.0
    %312 = vmatpush.msra.mxu0 0.0
    %313 = vmatpush.msra.mxu0 0.0
    %314 = vmatpush.msra.mxu0 0.0
    %315 = vmatpush.msra.mxu0 0.0
    %316 = vmatpush.msra.mxu0 0.0
    %317 = vmatpush.msra.mxu0 0.0
    %318 = vmatpush.msra.mxu0 0.0
    %319 = vmatpush.msra.mxu0 0.0
    %320 = vmatpush.msra.mxu0 %v101
    %321 = vmatpush.msra.mxu0 %v95
    %322 = vmatmul.f32.gmra.mxu0 %v119
    %v323 = vpop.f32.mrf.mxu0
    %v324 = vadd.f32 %v109, %v323
    %325 = vmatmul.f32.gmra.mxu0 %v122
    %v326 = vpop.f32.mrf.mxu0
    %v327 = vadd.f32 %v109, %v326
    %328 = vmatmul.f32.gmra.mxu0 %v125
    %v329 = vpop.f32.mrf.mxu0
    %v330 = vadd.f32 %v109, %v329
    %331 = vmatmul.f32.gmra.mxu0 %v128
    %v332 = vpop.f32.mrf.mxu0
    %v333 = vadd.f32 %v109, %v332
    %334 = vmatmul.f32.gmra.mxu0 %v131
    %v335 = vpop.f32.mrf.mxu0
    %v336 = vadd.f32 %v109, %v335
    %337 = vmatmul.f32.gmra.mxu0 %v134
    %v338 = vpop.f32.mrf.mxu0
    %v339 = vadd.f32 %v109, %v338
    %340 = vmatmul.f32.gmra.mxu0 %v137
    %v341 = vpop.f32.mrf.mxu0
    %v342 = vadd.f32 %v109, %v341
    %343 = vmatmul.f32.gmra.mxu0 %v140
    %v344 = vpop.f32.mrf.mxu0
    %v345 = vadd.f32 %v109, %v344
    %346 = vdwg.mxu0
    %347 = vmatpush.msra.mxu0 0.0
    %348 = vmatpush.msra.mxu0 0.0
    %349 = vmatpush.msra.mxu0 0.0
    %350 = vmatpush.msra.mxu0 0.0
    %351 = vmatpush.msra.mxu0 0.0
    %352 = vmatpush.msra.mxu0 0.0
    %353 = vmatpush.msra.mxu0 0.0
    %354 = vmatpush.msra.mxu0 0.0
    %355 = vmatpush.msra.mxu0 0.0
    %356 = vmatpush.msra.mxu0 0.0
    %357 = vmatpush.msra.mxu0 0.0
    %358 = vmatpush.msra.mxu0 0.0
    %359 = vmatpush.msra.mxu0 0.0
    %360 = vmatpush.msra.mxu0 0.0
    %361 = vmatpush.msra.mxu0 %v102
    %362 = vmatpush.msra.mxu0 %v96
    %363 = vmatmul.f32.gmra.mxu0 %v119
    %v364 = vpop.f32.mrf.mxu0
    %v365 = vadd.f32 %v110, %v364
    %366 = vmatmul.f32.gmra.mxu0 %v122
    %v367 = vpop.f32.mrf.mxu0
    %v368 = vadd.f32 %v110, %v367
    %369 = vmatmul.f32.gmra.mxu0 %v125
    %v370 = vpop.f32.mrf.mxu0
    %v371 = vadd.f32 %v110, %v370
    %372 = vmatmul.f32.gmra.mxu0 %v128
    %v373 = vpop.f32.mrf.mxu0
    %v374 = vadd.f32 %v110, %v373
    %375 = vmatmul.f32.gmra.mxu0 %v131
    %v376 = vpop.f32.mrf.mxu0
    %v377 = vadd.f32 %v110, %v376
    %378 = vmatmul.f32.gmra.mxu0 %v134
    %v379 = vpop.f32.mrf.mxu0
    %v380 = vadd.f32 %v110, %v379
    %381 = vmatmul.f32.gmra.mxu0 %v137
    %v382 = vpop.f32.mrf.mxu0
    %v383 = vadd.f32 %v110, %v382
    %384 = vmatmul.f32.gmra.mxu0 %v140
    %v385 = vpop.f32.mrf.mxu0
    %v386 = vadd.f32 %v110, %v385
    %387 = vdwg.mxu0
    %388 = vst [vmem:[#allocation2] sm:$0xff] %v160
    %389 = vst [vmem:[#allocation2 + $0x8] sm:$0xff] %v201
    %390 = vst [vmem:[#allocation2 + $0x10] sm:$0xff] %v242
    %391 = vst [vmem:[#allocation2 + $0x18] sm:$0xff] %v283
    %392 = vst [vmem:[#allocation2 + $0x20] sm:$0xff] %v324
    %393 = vst [vmem:[#allocation2 + $0x28] sm:$0xff] %v365
    %394 = vst [vmem:[#allocation2 + $0x30] sm:$0xff] %v163
    %395 = vst [vmem:[#allocation2 + $0x38] sm:$0xff] %v204
    %396 = vst [vmem:[#allocation2 + $0x40] sm:$0xff] %v245
    %397 = vst [vmem:[#allocation2 + $0x48] sm:$0xff] %v286
    %398 = vst [vmem:[#allocation2 + $0x50] sm:$0xff] %v327
    %399 = vst [vmem:[#allocation2 + $0x58] sm:$0xff] %v368
    %400 = vst [vmem:[#allocation2 + $0x60] sm:$0xff] %v166
    %401 = vst [vmem:[#allocation2 + $0x68] sm:$0xff] %v207
    %402 = vst [vmem:[#allocation2 + $0x70] sm:$0xff] %v248
    %403 = vst [vmem:[#allocation2 + $0x78] sm:$0xff] %v289
    %404 = vst [vmem:[#allocation2 + $0x80] sm:$0xff] %v330
    %405 = vst [vmem:[#allocation2 + $0x88] sm:$0xff] %v371
    %406 = vst [vmem:[#allocation2 + $0x90] sm:$0xff] %v169
    %407 = vst [vmem:[#allocation2 + $0x98] sm:$0xff] %v210
    %408 = vst [vmem:[#allocation2 + $0xa0] sm:$0xff] %v251
    %409 = vst [vmem:[#allocation2 + $0xa8] sm:$0xff] %v292
    %410 = vst [vmem:[#allocation2 + $0xb0] sm:$0xff] %v333
    %411 = vst [vmem:[#allocation2 + $0xb8] sm:$0xff] %v374
    %412 = vst [vmem:[#allocation2 + $0xc0] sm:$0xff] %v172
    %413 = vst [vmem:[#allocation2 + $0xc8] sm:$0xff] %v213
    %414 = vst [vmem:[#allocation2 + $0xd0] sm:$0xff] %v254
    %415 = vst [vmem:[#allocation2 + $0xd8] sm:$0xff] %v295
    %416 = vst [vmem:[#allocation2 + $0xe0] sm:$0xff] %v336
    %417 = vst [vmem:[#allocation2 + $0xe8] sm:$0xff] %v377
    %418 = vst [vmem:[#allocation2 + $0xf0] sm:$0xff] %v175
    %419 = vst [vmem:[#allocation2 + $0xf8] sm:$0xff] %v216
    %420 = vst [vmem:[#allocation2 + $0x100] sm:$0xff] %v257
    %421 = vst [vmem:[#allocation2 + $0x108] sm:$0xff] %v298
    %422 = vst [vmem:[#allocation2 + $0x110] sm:$0xff] %v339
    %423 = vst [vmem:[#allocation2 + $0x118] sm:$0xff] %v380
    %424 = vst [vmem:[#allocation2 + $0x120] sm:$0xff] %v178
    %425 = vst [vmem:[#allocation2 + $0x128] sm:$0xff] %v219
    %426 = vst [vmem:[#allocation2 + $0x130] sm:$0xff] %v260
    %427 = vst [vmem:[#allocation2 + $0x138] sm:$0xff] %v301
    %428 = vst [vmem:[#allocation2 + $0x140] sm:$0xff] %v342
    %429 = vst [vmem:[#allocation2 + $0x148] sm:$0xff] %v383
    %430 = vst [vmem:[#allocation2 + $0x150] sm:$0xff] %v181
    %431 = vst [vmem:[#allocation2 + $0x158] sm:$0xff] %v222
    %432 = vst [vmem:[#allocation2 + $0x160] sm:$0xff] %v263
    %433 = vst [vmem:[#allocation2 + $0x168] sm:$0xff] %v304
    %434 = vst [vmem:[#allocation2 + $0x170] sm:$0xff] %v345
    %435 = vst [vmem:[#allocation2 + $0x178] sm:$0xff] %v386
    %436 = vst [vmem:[#allocation3] sm:$0xff] 0.0
    %437 = vst [vmem:[#allocation4] sm:$0xff] 0.0
    %v438 = vld [vmem:[#allocation8] sm:$0xff]
    %v439 = vld [vmem:[#allocation8 + $0x8] sm:$0xff]
    %v440 = vld [vmem:[#allocation8 + $0x10] sm:$0xff]
    %v441 = vld [vmem:[#allocation8 + $0x18] sm:$0xff]
    %v442 = vld [vmem:[#allocation8 + $0x20] sm:$0xff]
    %v443 = vld [vmem:[#allocation8 + $0x28] sm:$0xff]
    %v444 = vld [vmem:[#allocation8 + $0x30] sm:$0xff]
    %v445 = vld [vmem:[#allocation8 + $0x38] sm:$0xff]
    %v446 = vld [vmem:[#allocation8 + $0x40] sm:$0xff]
    %v447 = vld [vmem:[#allocation8 + $0x48] sm:$0xff]
    %v448 = vld [vmem:[#allocation8 + $0x50] sm:$0xff]
    %v449 = vld [vmem:[#allocation8 + $0x58] sm:$0xff]
    %v450 = vld [vmem:[#allocation8 + $0x60] sm:$0xff]
    %v451 = vld [vmem:[#allocation8 + $0x68] sm:$0xff]
    %v452 = vld [vmem:[#allocation8 + $0x70] sm:$0xff]
    %v453 = vld [vmem:[#allocation8 + $0x78] sm:$0xff]
    %v454 = vld [vmem:[#allocation8 + $0x80] sm:$0xff]
    %v455 = vld [vmem:[#allocation8 + $0x88] sm:$0xff]
    %v456 = vld [vmem:[#allocation8 + $0x90] sm:$0xff]
    %v457 = vld [vmem:[#allocation8 + $0x98] sm:$0xff]
    %v458 = vld [vmem:[#allocation8 + $0xa0] sm:$0xff]
    %v459 = vld [vmem:[#allocation8 + $0xa8] sm:$0xff]
    %v460 = vld [vmem:[#allocation8 + $0xb0] sm:$0xff]
    %v461 = vld [vmem:[#allocation8 + $0xb8] sm:$0xff]
    %v462 = vld [vmem:[#allocation8 + $0xc0] sm:$0xff]
    %v463 = vld [vmem:[#allocation8 + $0xc8] sm:$0xff]
    %v464 = vld [vmem:[#allocation8 + $0xd0] sm:$0xff]
    %v465 = vld [vmem:[#allocation8 + $0xd8] sm:$0xff]
    %v466 = vld [vmem:[#allocation8 + $0xe0] sm:$0xff]
    %v467 = vld [vmem:[#allocation8 + $0xe8] sm:$0xff]
    %v468 = vld [vmem:[#allocation8 + $0xf0] sm:$0xff]
    %v469 = vld [vmem:[#allocation8 + $0xf8] sm:$0xff]
    %v470 = vld [vmem:[#allocation8 + $0x100] sm:$0xff]
    %v471 = vld [vmem:[#allocation8 + $0x108] sm:$0xff]
    %v472 = vld [vmem:[#allocation8 + $0x110] sm:$0xff]
    %v473 = vld [vmem:[#allocation8 + $0x118] sm:$0xff]
    %v474 = vld [vmem:[#allocation8 + $0x120] sm:$0xff]
    %v475 = vld [vmem:[#allocation8 + $0x128] sm:$0xff]
    %v476 = vld [vmem:[#allocation8 + $0x130] sm:$0xff]
    %v477 = vld [vmem:[#allocation8 + $0x138] sm:$0xff]
    %v478 = vld [vmem:[#allocation8 + $0x140] sm:$0xff]
    %v479 = vld [vmem:[#allocation8 + $0x148] sm:$0xff]
    %v480 = vld [vmem:[#allocation8 + $0x150] sm:$0xff]
    %v481 = vld [vmem:[#allocation8 + $0x158] sm:$0xff]
    %v482 = vld [vmem:[#allocation8 + $0x160] sm:$0xff]
    %v483 = vld [vmem:[#allocation8 + $0x168] sm:$0xff]
    %v484 = vld [vmem:[#allocation8 + $0x170] sm:$0xff]
    %v485 = vld [vmem:[#allocation8 + $0x178] sm:$0xff]
    %v486 = vld [vmem:[#allocation10] sm:$0xff]
    %v487 = vld [vmem:[#allocation10 + $0x8] sm:$0xff]
    %v488 = vld [vmem:[#allocation10 + $0x10] sm:$0xff]
    %v489 = vld [vmem:[#allocation10 + $0x18] sm:$0xff]
    %v490 = vld [vmem:[#allocation10 + $0x20] sm:$0xff]
    %v491 = vld [vmem:[#allocation10 + $0x28] sm:$0xff]
    %v492 = vld [vmem:[#allocation10 + $0x30] sm:$0xff]
    %v493 = vld [vmem:[#allocation10 + $0x38] sm:$0xff]
    %v494 = vld [vmem:[#allocation10 + $0x40] sm:$0xff]
    %v495 = vld [vmem:[#allocation10 + $0x48] sm:$0xff]
    %v496 = vld [vmem:[#allocation10 + $0x50] sm:$0xff]
    %v497 = vld [vmem:[#allocation10 + $0x58] sm:$0xff]
    %v498 = vld [vmem:[#allocation10 + $0x60] sm:$0xff]
    %v499 = vld [vmem:[#allocation10 + $0x68] sm:$0xff]
    %v500 = vld [vmem:[#allocation10 + $0x70] sm:$0xff]
    %v501 = vld [vmem:[#allocation10 + $0x78] sm:$0xff]
    %v502 = vld [vmem:[#allocation10 + $0x80] sm:$0xff]
    %v503 = vld [vmem:[#allocation10 + $0x88] sm:$0xff]
    %v504 = vld [vmem:[#allocation10 + $0x90] sm:$0xff]
    %v505 = vld [vmem:[#allocation10 + $0x98] sm:$0xff]
    %v506 = vld [vmem:[#allocation10 + $0xa0] sm:$0xff]
    %v507 = vld [vmem:[#allocation10 + $0xa8] sm:$0xff]
    %v508 = vld [vmem:[#allocation10 + $0xb0] sm:$0xff]
    %v509 = vld [vmem:[#allocation10 + $0xb8] sm:$0xff]
    %v510 = vld [vmem:[#allocation10 + $0xc0] sm:$0xff]
    %v511 = vld [vmem:[#allocation10 + $0xc8] sm:$0xff]
    %v512 = vld [vmem:[#allocation10 + $0xd0] sm:$0xff]
    %v513 = vld [vmem:[#allocation10 + $0xd8] sm:$0xff]
    %v514 = vld [vmem:[#allocation10 + $0xe0] sm:$0xff]
    %v515 = vld [vmem:[#allocation10 + $0xe8] sm:$0xff]
    %v516 = vld [vmem:[#allocation10 + $0xf0] sm:$0xff]
    %v517 = vld [vmem:[#allocation10 + $0xf8] sm:$0xff]
    %v518 = vld [vmem:[#allocation10 + $0x100] sm:$0xff]
    %v519 = vld [vmem:[#allocation10 + $0x108] sm:$0xff]
    %v520 = vld [vmem:[#allocation10 + $0x110] sm:$0xff]
    %v521 = vld [vmem:[#allocation10 + $0x118] sm:$0xff]
    %v522 = vld [vmem:[#allocation10 + $0x120] sm:$0xff]
    %v523 = vld [vmem:[#allocation10 + $0x128] sm:$0xff]
    %v524 = vld [vmem:[#allocation10 + $0x130] sm:$0xff]
    %v525 = vld [vmem:[#allocation10 + $0x138] sm:$0xff]
    %v526 = vld [vmem:[#allocation10 + $0x140] sm:$0xff]
    %v527 = vld [vmem:[#allocation10 + $0x148] sm:$0xff]
    %v528 = vld [vmem:[#allocation10 + $0x150] sm:$0xff]
    %v529 = vld [vmem:[#allocation10 + $0x158] sm:$0xff]
    %v530 = vld [vmem:[#allocation10 + $0x160] sm:$0xff]
    %v531 = vld [vmem:[#allocation10 + $0x168] sm:$0xff]
    %v532 = vld [vmem:[#allocation10 + $0x170] sm:$0xff]
    %v533 = vld [vmem:[#allocation10 + $0x178] sm:$0xff]
    %v534 = vld [vmem:[%s4] sm:$0x1]
    %v536 = vperm.slane %v534, 0
    %v538 = vld [vmem:[%s6] sm:$0x1]
    %v540 = vperm.slane %v538, 0
    %s542 = smul.u32 0, 6
    %s543 = smul.addr %s542, 8
    %s544 = scalar_lea.vmem [#allocation2], %s543
    %v545 = vld [vmem:[%s544] sm:$0xff]
    %v546 = vld [vmem:[%s544 + $0x8] sm:$0xff]
    %v547 = vld [vmem:[%s544 + $0x10] sm:$0xff]
    %s548 = smul.u32 7, 6
    %s549 = smul.addr %s548, 8
    %s550 = scalar_lea.vmem [#allocation2], %s549
    %v551 = vld [vmem:[%s550 + $0x18] sm:$0xff]
    %v552 = vld [vmem:[%s550 + $0x20] sm:$0xff]
    %v553 = vld [vmem:[%s550 + $0x28] sm:$0xff]
    %v554 = vld [vmem:[#allocation3] sm:$0xff]
    %555 = vmatpush.msra.mxu0 %v483
    %556 = vmatpush.msra.mxu0 %v480
    %557 = vmatpush.msra.mxu0 %v477
    %558 = vmatpush.msra.mxu0 %v474
    %559 = vmatpush.msra.mxu0 %v471
    %560 = vmatpush.msra.mxu0 %v468
    %561 = vmatpush.msra.mxu0 %v465
    %562 = vmatpush.msra.mxu0 %v462
    %563 = vmatpush.msra.mxu0 %v459
    %564 = vmatpush.msra.mxu0 %v456
    %565 = vmatpush.msra.mxu0 %v453
    %566 = vmatpush.msra.mxu0 %v450
    %567 = vmatpush.msra.mxu0 %v447
    %568 = vmatpush.msra.mxu0 %v444
    %569 = vmatpush.msra.mxu0 %v441
    %570 = vmatpush.msra.mxu0 %v438
    %571 = vmatmul.f32.gmra.mxu0 %v554
    %v572 = vpop.f32.mrf.mxu0
    %v573 = vadd.f32 0.0, %v572
    %574 = vdwg.mxu0
    %575 = vmatpush.msra.mxu0 %v484
    %576 = vmatpush.msra.mxu0 %v481
    %577 = vmatpush.msra.mxu0 %v478
    %578 = vmatpush.msra.mxu0 %v475
    %579 = vmatpush.msra.mxu0 %v472
    %580 = vmatpush.msra.mxu0 %v469
    %581 = vmatpush.msra.mxu0 %v466
    %582 = vmatpush.msra.mxu0 %v463
    %583 = vmatpush.msra.mxu0 %v460
    %584 = vmatpush.msra.mxu0 %v457
    %585 = vmatpush.msra.mxu0 %v454
    %586 = vmatpush.msra.mxu0 %v451
    %587 = vmatpush.msra.mxu0 %v448
    %588 = vmatpush.msra.mxu0 %v445
    %589 = vmatpush.msra.mxu0 %v442
    %590 = vmatpush.msra.mxu0 %v439
    %591 = vmatmul.f32.gmra.mxu0 %v554
    %v592 = vpop.f32.mrf.mxu0
    %v593 = vadd.f32 0.0, %v592
    %594 = vdwg.mxu0
    %595 = vmatpush.msra.mxu0 %v485
    %596 = vmatpush.msra.mxu0 %v482
    %597 = vmatpush.msra.mxu0 %v479
    %598 = vmatpush.msra.mxu0 %v476
    %599 = vmatpush.msra.mxu0 %v473
    %600 = vmatpush.msra.mxu0 %v470
    %601 = vmatpush.msra.mxu0 %v467
    %602 = vmatpush.msra.mxu0 %v464
    %603 = vmatpush.msra.mxu0 %v461
    %604 = vmatpush.msra.mxu0 %v458
    %605 = vmatpush.msra.mxu0 %v455
    %606 = vmatpush.msra.mxu0 %v452
    %607 = vmatpush.msra.mxu0 %v449
    %608 = vmatpush.msra.mxu0 %v446
    %609 = vmatpush.msra.mxu0 %v443
    %610 = vmatpush.msra.mxu0 %v440
    %611 = vmatmul.f32.gmra.mxu0 %v554
    %v612 = vpop.f32.mrf.mxu0
    %v613 = vadd.f32 0.0, %v612
    %614 = vdwg.mxu0
    %v615 = vadd.f32 %v545, %v573
    %v616 = vxor.u32 %v615, 2147483648
    %v617 = vmul.f32 %v616, 1.442695
    %v618 = vpow.pop %v617
    %v619 = vadd.f32 %v618, 1.0
    %v620 = vrcp.pop %v619
    %v621 = vmul.f32 %v619, %v620
    %v622 = vsub.f32 1.0, %v621
    %v623 = vmul.f32 %v620, %v622
    %v624 = vadd.f32 %v620, %v623
    %vm625 = vweird.f32 %v619
    %vm626 = vweird.f32 %v620
    %vm627 = vmor %vm625, %vm626
    %v628 = vsel %vm627, %v620, %v624
    %v629 = vand.u32 2147483647, %v619
    %vm630 = vcmp.eq.f32.partialorder %v629, 8.507059e+37
    %v631 = vand.u32 %v619, 2147483648
    %v632 = vor.u32 1.1754944e-38, %v631
    %v633 = vsel %vm630, %v632, %v628
    %v634 = vmul.f32 1.0, %v633
    %v635 = vadd.f32 %v546, %v593
    %v636 = vxor.u32 %v635, 2147483648
    %v637 = vmul.f32 %v636, 1.442695
    %v638 = vpow.pop %v637
    %v639 = vadd.f32 %v638, 1.0
    %v640 = vrcp.pop %v639
    %v641 = vmul.f32 %v639, %v640
    %v642 = vsub.f32 1.0, %v641
    %v643 = vmul.f32 %v640, %v642
    %v644 = vadd.f32 %v640, %v643
    %vm645 = vweird.f32 %v639
    %vm646 = vweird.f32 %v640
    %vm647 = vmor %vm645, %vm646
    %v648 = vsel %vm647, %v640, %v644
    %v649 = vand.u32 2147483647, %v639
    %vm650 = vcmp.eq.f32.partialorder %v649, 8.507059e+37
    %v651 = vand.u32 %v639, 2147483648
    %v652 = vor.u32 1.1754944e-38, %v651
    %v653 = vsel %vm650, %v652, %v648
    %v654 = vmul.f32 1.0, %v653
    %v655 = vadd.f32 %v613, %v536
    %v656 = vmul.f32 %v634, %v655
    %v657 = vadd.f32 %v547, %v656
    %v658 = vtanh.pop %v657
    %v659 = vsub.f32 1.0, %v654
    %v660 = vmul.f32 %v659, %v658
    %v661 = vmul.f32 %v654, %v554
    %v662 = vadd.f32 %v660, %v661
    %663 = vst [vmem:[#allocation3] sm:$0xff] %v662
    %v664 = vld [vmem:[#allocation4] sm:$0xff]
    %665 = vmatpush.msra.mxu0 %v531
    %666 = vmatpush.msra.mxu0 %v528
    %667 = vmatpush.msra.mxu0 %v525
    %668 = vmatpush.msra.mxu0 %v522
    %669 = vmatpush.msra.mxu0 %v519
    %670 = vmatpush.msra.mxu0 %v516
    %671 = vmatpush.msra.mxu0 %v513
    %672 = vmatpush.msra.mxu0 %v510
    %673 = vmatpush.msra.mxu0 %v507
    %674 = vmatpush.msra.mxu0 %v504
    %675 = vmatpush.msra.mxu0 %v501
    %676 = vmatpush.msra.mxu0 %v498
    %677 = vmatpush.msra.mxu0 %v495
    %678 = vmatpush.msra.mxu0 %v492
    %679 = vmatpush.msra.mxu0 %v489
    %680 = vmatpush.msra.mxu0 %v486
    %681 = vmatmul.f32.gmra.mxu0 %v664
    %v682 = vpop.f32.mrf.mxu0
    %v683 = vadd.f32 0.0, %v682
    %684 = vdwg.mxu0
    %685 = vmatpush.msra.mxu0 %v532
    %686 = vmatpush.msra.mxu0 %v529
    %687 = vmatpush.msra.mxu0 %v526
    %688 = vmatpush.msra.mxu0 %v523
    %689 = vmatpush.msra.mxu0 %v520
    %690 = vmatpush.msra.mxu0 %v517
    %691 = vmatpush.msra.mxu0 %v514
    %692 = vmatpush.msra.mxu0 %v511
    %693 = vmatpush.msra.mxu0 %v508
    %694 = vmatpush.msra.mxu0 %v505
    %695 = vmatpush.msra.mxu0 %v502
    %696 = vmatpush.msra.mxu0 %v499
    %697 = vmatpush.msra.mxu0 %v496
    %698 = vmatpush.msra.mxu0 %v493
    %699 = vmatpush.msra.mxu0 %v490
    %700 = vmatpush.msra.mxu0 %v487
    %701 = vmatmul.f32.gmra.mxu0 %v664
    %v702 = vpop.f32.mrf.mxu0
    %v703 = vadd.f32 0.0, %v702
    %704 = vdwg.mxu0
    %705 = vmatpush.msra.mxu0 %v533
    %706 = vmatpush.msra.mxu0 %v530
    %707 = vmatpush.msra.mxu0 %v527
    %708 = vmatpush.msra.mxu0 %v524
    %709 = vmatpush.msra.mxu0 %v521
    %710 = vmatpush.msra.mxu0 %v518
    %711 = vmatpush.msra.mxu0 %v515
    %712 = vmatpush.msra.mxu0 %v512
    %713 = vmatpush.msra.mxu0 %v509
    %714 = vmatpush.msra.mxu0 %v506
    %715 = vmatpush.msra.mxu0 %v503
    %716 = vmatpush.msra.mxu0 %v500
    %717 = vmatpush.msra.mxu0 %v497
    %718 = vmatpush.msra.mxu0 %v494
    %719 = vmatpush.msra.mxu0 %v491
    %720 = vmatpush.msra.mxu0 %v488
    %721 = vmatmul.f32.gmra.mxu0 %v664
    %v722 = vpop.f32.mrf.mxu0
    %v723 = vadd.f32 0.0, %v722
    %724 = vdwg.mxu0
    %v725 = vadd.f32 %v551, %v683
    %v726 = vxor.u32 %v725, 2147483648
    %v727 = vmul.f32 %v726, 1.442695
    %v728 = vpow.pop %v727
    %v729 = vadd.f32 %v728, 1.0
    %v730 = vrcp.pop %v729
    %v731 = vmul.f32 %v729, %v730
    %v732 = vsub.f32 1.0, %v731
    %v733 = vmul.f32 %v730, %v732
    %v734 = vadd.f32 %v730, %v733
    %vm735 = vweird.f32 %v729
    %vm736 = vweird.f32 %v730
    %vm737 = vmor %vm735, %vm736
    %v738 = vsel %vm737, %v730, %v734
    %v739 = vand.u32 2147483647, %v729
    %vm740 = vcmp.eq.f32.partialorder %v739, 8.507059e+37
    %v741 = vand.u32 %v729, 2147483648
    %v742 = vor.u32 1.1754944e-38, %v741
    %v743 = vsel %vm740, %v742, %v738
    %v744 = vmul.f32 1.0, %v743
    %v745 = vadd.f32 %v552, %v703
    %v746 = vxor.u32 %v745, 2147483648
    %v747 = vmul.f32 %v746, 1.442695
    %v748 = vpow.pop %v747
    %v749 = vadd.f32 %v748, 1.0
    %v750 = vrcp.pop %v749
    %v751 = vmul.f32 %v749, %v750
    %v752 = vsub.f32 1.0, %v751
    %v753 = vmul.f32 %v750, %v752
    %v754 = vadd.f32 %v750, %v753
    %vm755 = vweird.f32 %v749
    %vm756 = vweird.f32 %v750
    %vm757 = vmor %vm755, %vm756
    %v758 = vsel %vm757, %v750, %v754
    %v759 = vand.u32 2147483647, %v749
    %vm760 = vcmp.eq.f32.partialorder %v759, 8.507059e+37
    %v761 = vand.u32 %v749, 2147483648
    %v762 = vor.u32 1.1754944e-38, %v761
    %v763 = vsel %vm760, %v762, %v758
    %v764 = vmul.f32 1.0, %v763
    %v765 = vadd.f32 %v723, %v540
    %v766 = vmul.f32 %v744, %v765
    %v767 = vadd.f32 %v553, %v766
    %v768 = vtanh.pop %v767
    %v769 = vsub.f32 1.0, %v764
    %v770 = vmul.f32 %v769, %v768
    %v771 = vmul.f32 %v764, %v664
    %v772 = vadd.f32 %v770, %v771
    %773 = vst [vmem:[#allocation4] sm:$0xff] %v772
    %s774 = smul.u32 1, 6
    %s775 = smul.addr %s774, 8
    %s776 = scalar_lea.vmem [#allocation2], %s775
    %v777 = vld [vmem:[%s776] sm:$0xff]
    %v778 = vld [vmem:[%s776 + $0x8] sm:$0xff]
    %v779 = vld [vmem:[%s776 + $0x10] sm:$0xff]
    %s780 = smul.u32 6, 6
    %s781 = smul.addr %s780, 8
    %s782 = scalar_lea.vmem [#allocation2], %s781
    %v783 = vld [vmem:[%s782 + $0x18] sm:$0xff]
    %v784 = vld [vmem:[%s782 + $0x20] sm:$0xff]
    %v785 = vld [vmem:[%s782 + $0x28] sm:$0xff]
    %v786 = vld [vmem:[#allocation3] sm:$0xff]
    %787 = vmatpush.msra.mxu0 %v483
    %788 = vmatpush.msra.mxu0 %v480
    %789 = vmatpush.msra.mxu0 %v477
    %790 = vmatpush.msra.mxu0 %v474
    %791 = vmatpush.msra.mxu0 %v471
    %792 = vmatpush.msra.mxu0 %v468
    %793 = vmatpush.msra.mxu0 %v465
    %794 = vmatpush.msra.mxu0 %v462
    %795 = vmatpush.msra.mxu0 %v459
    %796 = vmatpush.msra.mxu0 %v456
    %797 = vmatpush.msra.mxu0 %v453
    %798 = vmatpush.msra.mxu0 %v450
    %799 = vmatpush.msra.mxu0 %v447
    %800 = vmatpush.msra.mxu0 %v444
    %801 = vmatpush.msra.mxu0 %v441
    %802 = vmatpush.msra.mxu0 %v438
    %803 = vmatmul.f32.gmra.mxu0 %v786
    %v804 = vpop.f32.mrf.mxu0
    %v805 = vadd.f32 0.0, %v804
    %806 = vdwg.mxu0
    %807 = vmatpush.msra.mxu0 %v484
    %808 = vmatpush.msra.mxu0 %v481
    %809 = vmatpush.msra.mxu0 %v478
    %810 = vmatpush.msra.mxu0 %v475
    %811 = vmatpush.msra.mxu0 %v472
    %812 = vmatpush.msra.mxu0 %v469
    %813 = vmatpush.msra.mxu0 %v466
    %814 = vmatpush.msra.mxu0 %v463
    %815 = vmatpush.msra.mxu0 %v460
    %816 = vmatpush.msra.mxu0 %v457
    %817 = vmatpush.msra.mxu0 %v454
    %818 = vmatpush.msra.mxu0 %v451
    %819 = vmatpush.msra.mxu0 %v448
    %820 = vmatpush.msra.mxu0 %v445
    %821 = vmatpush.msra.mxu0 %v442
    %822 = vmatpush.msra.mxu0 %v439
    %823 = vmatmul.f32.gmra.mxu0 %v786
    %v824 = vpop.f32.mrf.mxu0
    %v825 = vadd.f32 0.0, %v824
    %826 = vdwg.mxu0
    %827 = vmatpush.msra.mxu0 %v485
    %828 = vmatpush.msra.mxu0 %v482
    %829 = vmatpush.msra.mxu0 %v479
    %830 = vmatpush.msra.mxu0 %v476
    %831 = vmatpush.msra.mxu0 %v473
    %832 = vmatpush.msra.mxu0 %v470
    %833 = vmatpush.msra.mxu0 %v467
    %834 = vmatpush.msra.mxu0 %v464
    %835 = vmatpush.msra.mxu0 %v461
    %836 = vmatpush.msra.mxu0 %v458
    %837 = vmatpush.msra.mxu0 %v455
    %838 = vmatpush.msra.mxu0 %v452
    %839 = vmatpush.msra.mxu0 %v449
    %840 = vmatpush.msra.mxu0 %v446
    %841 = vmatpush.msra.mxu0 %v443
    %842 = vmatpush.msra.mxu0 %v440
    %843 = vmatmul.f32.gmra.mxu0 %v786
    %v844 = vpop.f32.mrf.mxu0
    %v845 = vadd.f32 0.0, %v844
    %846 = vdwg.mxu0
    %v847 = vadd.f32 %v777, %v805
    %v848 = vxor.u32 %v847, 2147483648
    %v849 = vmul.f32 %v848, 1.442695
    %v850 = vpow.pop %v849
    %v851 = vadd.f32 %v850, 1.0
    %v852 = vrcp.pop %v851
    %v853 = vmul.f32 %v851, %v852
    %v854 = vsub.f32 1.0, %v853
    %v855 = vmul.f32 %v852, %v854
    %v856 = vadd.f32 %v852, %v855
    %vm857 = vweird.f32 %v851
    %vm858 = vweird.f32 %v852
    %vm859 = vmor %vm857, %vm858
    %v860 = vsel %vm859, %v852, %v856
    %v861 = vand.u32 2147483647, %v851
    %vm862 = vcmp.eq.f32.partialorder %v861, 8.507059e+37
    %v863 = vand.u32 %v851, 2147483648
    %v864 = vor.u32 1.1754944e-38, %v863
    %v865 = vsel %vm862, %v864, %v860
    %v866 = vmul.f32 1.0, %v865
    %v867 = vadd.f32 %v778, %v825
    %v868 = vxor.u32 %v867, 2147483648
    %v869 = vmul.f32 %v868, 1.442695
    %v870 = vpow.pop %v869
    %v871 = vadd.f32 %v870, 1.0
    %v872 = vrcp.pop %v871
    %v873 = vmul.f32 %v871, %v872
    %v874 = vsub.f32 1.0, %v873
    %v875 = vmul.f32 %v872, %v874
    %v876 = vadd.f32 %v872, %v875
    %vm877 = vweird.f32 %v871
    %vm878 = vweird.f32 %v872
    %vm879 = vmor %vm877, %vm878
    %v880 = vsel %vm879, %v872, %v876
    %v881 = vand.u32 2147483647, %v871
    %vm882 = vcmp.eq.f32.partialorder %v881, 8.507059e+37
    %v883 = vand.u32 %v871, 2147483648
    %v884 = vor.u32 1.1754944e-38, %v883
    %v885 = vsel %vm882, %v884, %v880
    %v886 = vmul.f32 1.0, %v885
    %v887 = vadd.f32 %v845, %v536
    %v888 = vmul.f32 %v866, %v887
    %v889 = vadd.f32 %v779, %v888
    %v890 = vtanh.pop %v889
    %v891 = vsub.f32 1.0, %v886
    %v892 = vmul.f32 %v891, %v890
    %v893 = vmul.f32 %v886, %v786
    %v894 = vadd.f32 %v892, %v893
    %895 = vst [vmem:[#allocation3] sm:$0xff] %v894
    %v896 = vld [vmem:[#allocation4] sm:$0xff]
    %897 = vmatpush.msra.mxu0 %v531
    %898 = vmatpush.msra.mxu0 %v528
    %899 = vmatpush.msra.mxu0 %v525
    %900 = vmatpush.msra.mxu0 %v522
    %901 = vmatpush.msra.mxu0 %v519
    %902 = vmatpush.msra.mxu0 %v516
    %903 = vmatpush.msra.mxu0 %v513
    %904 = vmatpush.msra.mxu0 %v510
    %905 = vmatpush.msra.mxu0 %v507
    %906 = vmatpush.msra.mxu0 %v504
    %907 = vmatpush.msra.mxu0 %v501
    %908 = vmatpush.msra.mxu0 %v498
    %909 = vmatpush.msra.mxu0 %v495
    %910 = vmatpush.msra.mxu0 %v492
    %911 = vmatpush.msra.mxu0 %v489
    %912 = vmatpush.msra.mxu0 %v486
    %913 = vmatmul.f32.gmra.mxu0 %v896
    %v914 = vpop.f32.mrf.mxu0
    %v915 = vadd.f32 0.0, %v914
    %916 = vdwg.mxu0
    %917 = vmatpush.msra.mxu0 %v532
    %918 = vmatpush.msra.mxu0 %v529
    %919 = vmatpush.msra.mxu0 %v526
    %920 = vmatpush.msra.mxu0 %v523
    %921 = vmatpush.msra.mxu0 %v520
    %922 = vmatpush.msra.mxu0 %v517
    %923 = vmatpush.msra.mxu0 %v514
    %924 = vmatpush.msra.mxu0 %v511
    %925 = vmatpush.msra.mxu0 %v508
    %926 = vmatpush.msra.mxu0 %v505
    %927 = vmatpush.msra.mxu0 %v502
    %928 = vmatpush.msra.mxu0 %v499
    %929 = vmatpush.msra.mxu0 %v496
    %930 = vmatpush.msra.mxu0 %v493
    %931 = vmatpush.msra.mxu0 %v490
    %932 = vmatpush.msra.mxu0 %v487
    %933 = vmatmul.f32.gmra.mxu0 %v896
    %v934 = vpop.f32.mrf.mxu0
    %v935 = vadd.f32 0.0, %v934
    %936 = vdwg.mxu0
    %937 = vmatpush.msra.mxu0 %v533
    %938 = vmatpush.msra.mxu0 %v530
    %939 = vmatpush.msra.mxu0 %v527
    %940 = vmatpush.msra.mxu0 %v524
    %941 = vmatpush.msra.mxu0 %v521
    %942 = vmatpush.msra.mxu0 %v518
    %943 = vmatpush.msra.mxu0 %v515
    %944 = vmatpush.msra.mxu0 %v512
    %945 = vmatpush.msra.mxu0 %v509
    %946 = vmatpush.msra.mxu0 %v506
    %947 = vmatpush.msra.mxu0 %v503
    %948 = vmatpush.msra.mxu0 %v500
    %949 = vmatpush.msra.mxu0 %v497
    %950 = vmatpush.msra.mxu0 %v494
    %951 = vmatpush.msra.mxu0 %v491
    %952 = vmatpush.msra.mxu0 %v488
    %953 = vmatmul.f32.gmra.mxu0 %v896
    %v954 = vpop.f32.mrf.mxu0
    %v955 = vadd.f32 0.0, %v954
    %956 = vdwg.mxu0
    %v957 = vadd.f32 %v783, %v915
    %v958 = vxor.u32 %v957, 2147483648
    %v959 = vmul.f32 %v958, 1.442695
    %v960 = vpow.pop %v959
    %v961 = vadd.f32 %v960, 1.0
    %v962 = vrcp.pop %v961
    %v963 = vmul.f32 %v961, %v962
    %v964 = vsub.f32 1.0, %v963
    %v965 = vmul.f32 %v962, %v964
    %v966 = vadd.f32 %v962, %v965
    %vm967 = vweird.f32 %v961
    %vm968 = vweird.f32 %v962
    %vm969 = vmor %vm967, %vm968
    %v970 = vsel %vm969, %v962, %v966
    %v971 = vand.u32 2147483647, %v961
    %vm972 = vcmp.eq.f32.partialorder %v971, 8.507059e+37
    %v973 = vand.u32 %v961, 2147483648
    %v974 = vor.u32 1.1754944e-38, %v973
    %v975 = vsel %vm972, %v974, %v970
    %v976 = vmul.f32 1.0, %v975
    %v977 = vadd.f32 %v784, %v935
    %v978 = vxor.u32 %v977, 2147483648
    %v979 = vmul.f32 %v978, 1.442695
    %v980 = vpow.pop %v979
    %v981 = vadd.f32 %v980, 1.0
    %v982 = vrcp.pop %v981
    %v983 = vmul.f32 %v981, %v982
    %v984 = vsub.f32 1.0, %v983
    %v985 = vmul.f32 %v982, %v984
    %v986 = vadd.f32 %v982, %v985
    %vm987 = vweird.f32 %v981
    %vm988 = vweird.f32 %v982
    %vm989 = vmor %vm987, %vm988
    %v990 = vsel %vm989, %v982, %v986
    %v991 = vand.u32 2147483647, %v981
    %vm992 = vcmp.eq.f32.partialorder %v991, 8.507059e+37
    %v993 = vand.u32 %v981, 2147483648
    %v994 = vor.u32 1.1754944e-38, %v993
    %v995 = vsel %vm992, %v994, %v990
    %v996 = vmul.f32 1.0, %v995
    %v997 = vadd.f32 %v955, %v540
    %v998 = vmul.f32 %v976, %v997
    %v999 = vadd.f32 %v785, %v998
    %v1000 = vtanh.pop %v999
    %v1001 = vsub.f32 1.0, %v996
    %v1002 = vmul.f32 %v1001, %v1000
    %v1003 = vmul.f32 %v996, %v896
    %v1004 = vadd.f32 %v1002, %v1003
    %1005 = vst [vmem:[#allocation4] sm:$0xff] %v1004
    %s1006 = smul.u32 2, 6
    %s1007 = smul.addr %s1006, 8
    %s1008 = scalar_lea.vmem [#allocation2], %s1007
    %v1009 = vld [vmem:[%s1008] sm:$0xff]
    %v1010 = vld [vmem:[%s1008 + $0x8] sm:$0xff]
    %v1011 = vld [vmem:[%s1008 + $0x10] sm:$0xff]
    %s1012 = smul.u32 5, 6
    %s1013 = smul.addr %s1012, 8
    %s1014 = scalar_lea.vmem [#allocation2], %s1013
    %v1015 = vld [vmem:[%s1014 + $0x18] sm:$0xff]
    %v1016 = vld [vmem:[%s1014 + $0x20] sm:$0xff]
    %v1017 = vld [vmem:[%s1014 + $0x28] sm:$0xff]
    %v1018 = vld [vmem:[#allocation3] sm:$0xff]
    %1019 = vmatpush.msra.mxu0 %v483
    %1020 = vmatpush.msra.mxu0 %v480
    %1021 = vmatpush.msra.mxu0 %v477
    %1022 = vmatpush.msra.mxu0 %v474
    %1023 = vmatpush.msra.mxu0 %v471
    %1024 = vmatpush.msra.mxu0 %v468
    %1025 = vmatpush.msra.mxu0 %v465
    %1026 = vmatpush.msra.mxu0 %v462
    %1027 = vmatpush.msra.mxu0 %v459
    %1028 = vmatpush.msra.mxu0 %v456
    %1029 = vmatpush.msra.mxu0 %v453
    %1030 = vmatpush.msra.mxu0 %v450
    %1031 = vmatpush.msra.mxu0 %v447
    %1032 = vmatpush.msra.mxu0 %v444
    %1033 = vmatpush.msra.mxu0 %v441
    %1034 = vmatpush.msra.mxu0 %v438
    %1035 = vmatmul.f32.gmra.mxu0 %v1018
    %v1036 = vpop.f32.mrf.mxu0
    %v1037 = vadd.f32 0.0, %v1036
    %1038 = vdwg.mxu0
    %1039 = vmatpush.msra.mxu0 %v484
    %1040 = vmatpush.msra.mxu0 %v481
    %1041 = vmatpush.msra.mxu0 %v478
    %1042 = vmatpush.msra.mxu0 %v475
    %1043 = vmatpush.msra.mxu0 %v472
    %1044 = vmatpush.msra.mxu0 %v469
    %1045 = vmatpush.msra.mxu0 %v466
    %1046 = vmatpush.msra.mxu0 %v463
    %1047 = vmatpush.msra.mxu0 %v460
    %1048 = vmatpush.msra.mxu0 %v457
    %1049 = vmatpush.msra.mxu0 %v454
    %1050 = vmatpush.msra.mxu0 %v451
    %1051 = vmatpush.msra.mxu0 %v448
    %1052 = vmatpush.msra.mxu0 %v445
    %1053 = vmatpush.msra.mxu0 %v442
    %1054 = vmatpush.msra.mxu0 %v439
    %1055 = vmatmul.f32.gmra.mxu0 %v1018
    %v1056 = vpop.f32.mrf.mxu0
    %v1057 = vadd.f32 0.0, %v1056
    %1058 = vdwg.mxu0
    %1059 = vmatpush.msra.mxu0 %v485
    %1060 = vmatpush.msra.mxu0 %v482
    %1061 = vmatpush.msra.mxu0 %v479
    %1062 = vmatpush.msra.mxu0 %v476
    %1063 = vmatpush.msra.mxu0 %v473
    %1064 = vmatpush.msra.mxu0 %v470
    %1065 = vmatpush.msra.mxu0 %v467
    %1066 = vmatpush.msra.mxu0 %v464
    %1067 = vmatpush.msra.mxu0 %v461
    %1068 = vmatpush.msra.mxu0 %v458
    %1069 = vmatpush.msra.mxu0 %v455
    %1070 = vmatpush.msra.mxu0 %v452
    %1071 = vmatpush.msra.mxu0 %v449
    %1072 = vmatpush.msra.mxu0 %v446
    %1073 = vmatpush.msra.mxu0 %v443
    %1074 = vmatpush.msra.mxu0 %v440
    %1075 = vmatmul.f32.gmra.mxu0 %v1018
    %v1076 = vpop.f32.mrf.mxu0
    %v1077 = vadd.f32 0.0, %v1076
    %1078 = vdwg.mxu0
    %v1079 = vadd.f32 %v1009, %v1037
    %v1080 = vxor.u32 %v1079, 2147483648
    %v1081 = vmul.f32 %v1080, 1.442695
    %v1082 = vpow.pop %v1081
    %v1083 = vadd.f32 %v1082, 1.0
    %v1084 = vrcp.pop %v1083
    %v1085 = vmul.f32 %v1083, %v1084
    %v1086 = vsub.f32 1.0, %v1085
    %v1087 = vmul.f32 %v1084, %v1086
    %v1088 = vadd.f32 %v1084, %v1087
    %vm1089 = vweird.f32 %v1083
    %vm1090 = vweird.f32 %v1084
    %vm1091 = vmor %vm1089, %vm1090
    %v1092 = vsel %vm1091, %v1084, %v1088
    %v1093 = vand.u32 2147483647, %v1083
    %vm1094 = vcmp.eq.f32.partialorder %v1093, 8.507059e+37
    %v1095 = vand.u32 %v1083, 2147483648
    %v1096 = vor.u32 1.1754944e-38, %v1095
    %v1097 = vsel %vm1094, %v1096, %v1092
    %v1098 = vmul.f32 1.0, %v1097
    %v1099 = vadd.f32 %v1010, %v1057
    %v1100 = vxor.u32 %v1099, 2147483648
    %v1101 = vmul.f32 %v1100, 1.442695
    %v1102 = vpow.pop %v1101
    %v1103 = vadd.f32 %v1102, 1.0
    %v1104 = vrcp.pop %v1103
    %v1105 = vmul.f32 %v1103, %v1104
    %v1106 = vsub.f32 1.0, %v1105
    %v1107 = vmul.f32 %v1104, %v1106
    %v1108 = vadd.f32 %v1104, %v1107
    %vm1109 = vweird.f32 %v1103
    %vm1110 = vweird.f32 %v1104
    %vm1111 = vmor %vm1109, %vm1110
    %v1112 = vsel %vm1111, %v1104, %v1108
    %v1113 = vand.u32 2147483647, %v1103
    %vm1114 = vcmp.eq.f32.partialorder %v1113, 8.507059e+37
    %v1115 = vand.u32 %v1103, 2147483648
    %v1116 = vor.u32 1.1754944e-38, %v1115
    %v1117 = vsel %vm1114, %v1116, %v1112
    %v1118 = vmul.f32 1.0, %v1117
    %v1119 = vadd.f32 %v1077, %v536
    %v1120 = vmul.f32 %v1098, %v1119
    %v1121 = vadd.f32 %v1011, %v1120
    %v1122 = vtanh.pop %v1121
    %v1123 = vsub.f32 1.0, %v1118
    %v1124 = vmul.f32 %v1123, %v1122
    %v1125 = vmul.f32 %v1118, %v1018
    %v1126 = vadd.f32 %v1124, %v1125
    %1127 = vst [vmem:[#allocation3] sm:$0xff] %v1126
    %v1128 = vld [vmem:[#allocation4] sm:$0xff]
    %1129 = vmatpush.msra.mxu0 %v531
    %1130 = vmatpush.msra.mxu0 %v528
    %1131 = vmatpush.msra.mxu0 %v525
    %1132 = vmatpush.msra.mxu0 %v522
    %1133 = vmatpush.msra.mxu0 %v519
    %1134 = vmatpush.msra.mxu0 %v516
    %1135 = vmatpush.msra.mxu0 %v513
    %1136 = vmatpush.msra.mxu0 %v510
    %1137 = vmatpush.msra.mxu0 %v507
    %1138 = vmatpush.msra.mxu0 %v504
    %1139 = vmatpush.msra.mxu0 %v501
    %1140 = vmatpush.msra.mxu0 %v498
    %1141 = vmatpush.msra.mxu0 %v495
    %1142 = vmatpush.msra.mxu0 %v492
    %1143 = vmatpush.msra.mxu0 %v489
    %1144 = vmatpush.msra.mxu0 %v486
    %1145 = vmatmul.f32.gmra.mxu0 %v1128
    %v1146 = vpop.f32.mrf.mxu0
    %v1147 = vadd.f32 0.0, %v1146
    %1148 = vdwg.mxu0
    %1149 = vmatpush.msra.mxu0 %v532
    %1150 = vmatpush.msra.mxu0 %v529
    %1151 = vmatpush.msra.mxu0 %v526
    %1152 = vmatpush.msra.mxu0 %v523
    %1153 = vmatpush.msra.mxu0 %v520
    %1154 = vmatpush.msra.mxu0 %v517
    %1155 = vmatpush.msra.mxu0 %v514
    %1156 = vmatpush.msra.mxu0 %v511
    %1157 = vmatpush.msra.mxu0 %v508
    %1158 = vmatpush.msra.mxu0 %v505
    %1159 = vmatpush.msra.mxu0 %v502
    %1160 = vmatpush.msra.mxu0 %v499
    %1161 = vmatpush.msra.mxu0 %v496
    %1162 = vmatpush.msra.mxu0 %v493
    %1163 = vmatpush.msra.mxu0 %v490
    %1164 = vmatpush.msra.mxu0 %v487
    %1165 = vmatmul.f32.gmra.mxu0 %v1128
    %v1166 = vpop.f32.mrf.mxu0
    %v1167 = vadd.f32 0.0, %v1166
    %1168 = vdwg.mxu0
    %1169 = vmatpush.msra.mxu0 %v533
    %1170 = vmatpush.msra.mxu0 %v530
    %1171 = vmatpush.msra.mxu0 %v527
    %1172 = vmatpush.msra.mxu0 %v524
    %1173 = vmatpush.msra.mxu0 %v521
    %1174 = vmatpush.msra.mxu0 %v518
    %1175 = vmatpush.msra.mxu0 %v515
    %1176 = vmatpush.msra.mxu0 %v512
    %1177 = vmatpush.msra.mxu0 %v509
    %1178 = vmatpush.msra.mxu0 %v506
    %1179 = vmatpush.msra.mxu0 %v503
    %1180 = vmatpush.msra.mxu0 %v500
    %1181 = vmatpush.msra.mxu0 %v497
    %1182 = vmatpush.msra.mxu0 %v494
    %1183 = vmatpush.msra.mxu0 %v491
    %1184 = vmatpush.msra.mxu0 %v488
    %1185 = vmatmul.f32.gmra.mxu0 %v1128
    %v1186 = vpop.f32.mrf.mxu0
    %v1187 = vadd.f32 0.0, %v1186
    %1188 = vdwg.mxu0
    %v1189 = vadd.f32 %v1015, %v1147
    %v1190 = vxor.u32 %v1189, 2147483648
    %v1191 = vmul.f32 %v1190, 1.442695
    %v1192 = vpow.pop %v1191
    %v1193 = vadd.f32 %v1192, 1.0
    %v1194 = vrcp.pop %v1193
    %v1195 = vmul.f32 %v1193, %v1194
    %v1196 = vsub.f32 1.0, %v1195
    %v1197 = vmul.f32 %v1194, %v1196
    %v1198 = vadd.f32 %v1194, %v1197
    %vm1199 = vweird.f32 %v1193
    %vm1200 = vweird.f32 %v1194
    %vm1201 = vmor %vm1199, %vm1200
    %v1202 = vsel %vm1201, %v1194, %v1198
    %v1203 = vand.u32 2147483647, %v1193
    %vm1204 = vcmp.eq.f32.partialorder %v1203, 8.507059e+37
    %v1205 = vand.u32 %v1193, 2147483648
    %v1206 = vor.u32 1.1754944e-38, %v1205
    %v1207 = vsel %vm1204, %v1206, %v1202
    %v1208 = vmul.f32 1.0, %v1207
    %v1209 = vadd.f32 %v1016, %v1167
    %v1210 = vxor.u32 %v1209, 2147483648
    %v1211 = vmul.f32 %v1210, 1.442695
    %v1212 = vpow.pop %v1211
    %v1213 = vadd.f32 %v1212, 1.0
    %v1214 = vrcp.pop %v1213
    %v1215 = vmul.f32 %v1213, %v1214
    %v1216 = vsub.f32 1.0, %v1215
    %v1217 = vmul.f32 %v1214, %v1216
    %v1218 = vadd.f32 %v1214, %v1217
    %vm1219 = vweird.f32 %v1213
    %vm1220 = vweird.f32 %v1214
    %vm1221 = vmor %vm1219, %vm1220
    %v1222 = vsel %vm1221, %v1214, %v1218
    %v1223 = vand.u32 2147483647, %v1213
    %vm1224 = vcmp.eq.f32.partialorder %v1223, 8.507059e+37
    %v1225 = vand.u32 %v1213, 2147483648
    %v1226 = vor.u32 1.1754944e-38, %v1225
    %v1227 = vsel %vm1224, %v1226, %v1222
    %v1228 = vmul.f32 1.0, %v1227
    %v1229 = vadd.f32 %v1187, %v540
    %v1230 = vmul.f32 %v1208, %v1229
    %v1231 = vadd.f32 %v1017, %v1230
    %v1232 = vtanh.pop %v1231
    %v1233 = vsub.f32 1.0, %v1228
    %v1234 = vmul.f32 %v1233, %v1232
    %v1235 = vmul.f32 %v1228, %v1128
    %v1236 = vadd.f32 %v1234, %v1235
    %1237 = vst [vmem:[#allocation4] sm:$0xff] %v1236
    %s1238 = smul.u32 3, 6
    %s1239 = smul.addr %s1238, 8
    %s1240 = scalar_lea.vmem [#allocation2], %s1239
    %v1241 = vld [vmem:[%s1240] sm:$0xff]
    %v1242 = vld [vmem:[%s1240 + $0x8] sm:$0xff]
    %v1243 = vld [vmem:[%s1240 + $0x10] sm:$0xff]
    %s1244 = smul.u32 4, 6
    %s1245 = smul.addr %s1244, 8
    %s1246 = scalar_lea.vmem [#allocation2], %s1245
    %v1247 = vld [vmem:[%s1246 + $0x18] sm:$0xff]
    %v1248 = vld [vmem:[%s1246 + $0x20] sm:$0xff]
    %v1249 = vld [vmem:[%s1246 + $0x28] sm:$0xff]
    %v1250 = vld [vmem:[#allocation3] sm:$0xff]
    %1251 = vmatpush.msra.mxu0 %v483
    %1252 = vmatpush.msra.mxu0 %v480
    %1253 = vmatpush.msra.mxu0 %v477
    %1254 = vmatpush.msra.mxu0 %v474
    %1255 = vmatpush.msra.mxu0 %v471
    %1256 = vmatpush.msra.mxu0 %v468
    %1257 = vmatpush.msra.mxu0 %v465
    %1258 = vmatpush.msra.mxu0 %v462
    %1259 = vmatpush.msra.mxu0 %v459
    %1260 = vmatpush.msra.mxu0 %v456
    %1261 = vmatpush.msra.mxu0 %v453
    %1262 = vmatpush.msra.mxu0 %v450
    %1263 = vmatpush.msra.mxu0 %v447
    %1264 = vmatpush.msra.mxu0 %v444
    %1265 = vmatpush.msra.mxu0 %v441
    %1266 = vmatpush.msra.mxu0 %v438
    %1267 = vmatmul.f32.gmra.mxu0 %v1250
    %v1268 = vpop.f32.mrf.mxu0
    %v1269 = vadd.f32 0.0, %v1268
    %1270 = vdwg.mxu0
    %1271 = vmatpush.msra.mxu0 %v484
    %1272 = vmatpush.msra.mxu0 %v481
    %1273 = vmatpush.msra.mxu0 %v478
    %1274 = vmatpush.msra.mxu0 %v475
    %1275 = vmatpush.msra.mxu0 %v472
    %1276 = vmatpush.msra.mxu0 %v469
    %1277 = vmatpush.msra.mxu0 %v466
    %1278 = vmatpush.msra.mxu0 %v463
    %1279 = vmatpush.msra.mxu0 %v460
    %1280 = vmatpush.msra.mxu0 %v457
    %1281 = vmatpush.msra.mxu0 %v454
    %1282 = vmatpush.msra.mxu0 %v451
    %1283 = vmatpush.msra.mxu0 %v448
    %1284 = vmatpush.msra.mxu0 %v445
    %1285 = vmatpush.msra.mxu0 %v442
    %1286 = vmatpush.msra.mxu0 %v439
    %1287 = vmatmul.f32.gmra.mxu0 %v1250
    %v1288 = vpop.f32.mrf.mxu0
    %v1289 = vadd.f32 0.0, %v1288
    %1290 = vdwg.mxu0
    %1291 = vmatpush.msra.mxu0 %v485
    %1292 = vmatpush.msra.mxu0 %v482
    %1293 = vmatpush.msra.mxu0 %v479
    %1294 = vmatpush.msra.mxu0 %v476
    %1295 = vmatpush.msra.mxu0 %v473
    %1296 = vmatpush.msra.mxu0 %v470
    %1297 = vmatpush.msra.mxu0 %v467
    %1298 = vmatpush.msra.mxu0 %v464
    %1299 = vmatpush.msra.mxu0 %v461
    %1300 = vmatpush.msra.mxu0 %v458
    %1301 = vmatpush.msra.mxu0 %v455
    %1302 = vmatpush.msra.mxu0 %v452
    %1303 = vmatpush.msra.mxu0 %v449
    %1304 = vmatpush.msra.mxu0 %v446
    %1305 = vmatpush.msra.mxu0 %v443
    %1306 = vmatpush.msra.mxu0 %v440
    %1307 = vmatmul.f32.gmra.mxu0 %v1250
    %v1308 = vpop.f32.mrf.mxu0
    %v1309 = vadd.f32 0.0, %v1308
    %1310 = vdwg.mxu0
    %v1311 = vadd.f32 %v1241, %v1269
    %v1312 = vxor.u32 %v1311, 2147483648
    %v1313 = vmul.f32 %v1312, 1.442695
    %v1314 = vpow.pop %v1313
    %v1315 = vadd.f32 %v1314, 1.0
    %v1316 = vrcp.pop %v1315
    %v1317 = vmul.f32 %v1315, %v1316
    %v1318 = vsub.f32 1.0, %v1317
    %v1319 = vmul.f32 %v1316, %v1318
    %v1320 = vadd.f32 %v1316, %v1319
    %vm1321 = vweird.f32 %v1315
    %vm1322 = vweird.f32 %v1316
    %vm1323 = vmor %vm1321, %vm1322
    %v1324 = vsel %vm1323, %v1316, %v1320
    %v1325 = vand.u32 2147483647, %v1315
    %vm1326 = vcmp.eq.f32.partialorder %v1325, 8.507059e+37
    %v1327 = vand.u32 %v1315, 2147483648
    %v1328 = vor.u32 1.1754944e-38, %v1327
    %v1329 = vsel %vm1326, %v1328, %v1324
    %v1330 = vmul.f32 1.0, %v1329
    %v1331 = vadd.f32 %v1242, %v1289
    %v1332 = vxor.u32 %v1331, 2147483648
    %v1333 = vmul.f32 %v1332, 1.442695
    %v1334 = vpow.pop %v1333
    %v1335 = vadd.f32 %v1334, 1.0
    %v1336 = vrcp.pop %v1335
    %v1337 = vmul.f32 %v1335, %v1336
    %v1338 = vsub.f32 1.0, %v1337
    %v1339 = vmul.f32 %v1336, %v1338
    %v1340 = vadd.f32 %v1336, %v1339
    %vm1341 = vweird.f32 %v1335
    %vm1342 = vweird.f32 %v1336
    %vm1343 = vmor %vm1341, %vm1342
    %v1344 = vsel %vm1343, %v1336, %v1340
    %v1345 = vand.u32 2147483647, %v1335
    %vm1346 = vcmp.eq.f32.partialorder %v1345, 8.507059e+37
    %v1347 = vand.u32 %v1335, 2147483648
    %v1348 = vor.u32 1.1754944e-38, %v1347
    %v1349 = vsel %vm1346, %v1348, %v1344
    %v1350 = vmul.f32 1.0, %v1349
    %v1351 = vadd.f32 %v1309, %v536
    %v1352 = vmul.f32 %v1330, %v1351
    %v1353 = vadd.f32 %v1243, %v1352
    %v1354 = vtanh.pop %v1353
    %v1355 = vsub.f32 1.0, %v1350
    %v1356 = vmul.f32 %v1355, %v1354
    %v1357 = vmul.f32 %v1350, %v1250
    %v1358 = vadd.f32 %v1356, %v1357
    %1359 = vst [vmem:[#allocation3] sm:$0xff] %v1358
    %v1360 = vld [vmem:[#allocation4] sm:$0xff]
    %1361 = vmatpush.msra.mxu0 %v531
    %1362 = vmatpush.msra.mxu0 %v528
    %1363 = vmatpush.msra.mxu0 %v525
    %1364 = vmatpush.msra.mxu0 %v522
    %1365 = vmatpush.msra.mxu0 %v519
    %1366 = vmatpush.msra.mxu0 %v516
    %1367 = vmatpush.msra.mxu0 %v513
    %1368 = vmatpush.msra.mxu0 %v510
    %1369 = vmatpush.msra.mxu0 %v507
    %1370 = vmatpush.msra.mxu0 %v504
    %1371 = vmatpush.msra.mxu0 %v501
    %1372 = vmatpush.msra.mxu0 %v498
    %1373 = vmatpush.msra.mxu0 %v495
    %1374 = vmatpush.msra.mxu0 %v492
    %1375 = vmatpush.msra.mxu0 %v489
    %1376 = vmatpush.msra.mxu0 %v486
    %1377 = vmatmul.f32.gmra.mxu0 %v1360
    %v1378 = vpop.f32.mrf.mxu0
    %v1379 = vadd.f32 0.0, %v1378
    %1380 = vdwg.mxu0
    %1381 = vmatpush.msra.mxu0 %v532
    %1382 = vmatpush.msra.mxu0 %v529
    %1383 = vmatpush.msra.mxu0 %v526
    %1384 = vmatpush.msra.mxu0 %v523
    %1385 = vmatpush.msra.mxu0 %v520
    %1386 = vmatpush.msra.mxu0 %v517
    %1387 = vmatpush.msra.mxu0 %v514
    %1388 = vmatpush.msra.mxu0 %v511
    %1389 = vmatpush.msra.mxu0 %v508
    %1390 = vmatpush.msra.mxu0 %v505
    %1391 = vmatpush.msra.mxu0 %v502
    %1392 = vmatpush.msra.mxu0 %v499
    %1393 = vmatpush.msra.mxu0 %v496
    %1394 = vmatpush.msra.mxu0 %v493
    %1395 = vmatpush.msra.mxu0 %v490
    %1396 = vmatpush.msra.mxu0 %v487
    %1397 = vmatmul.f32.gmra.mxu0 %v1360
    %v1398 = vpop.f32.mrf.mxu0
    %v1399 = vadd.f32 0.0, %v1398
    %1400 = vdwg.mxu0
    %1401 = vmatpush.msra.mxu0 %v533
    %1402 = vmatpush.msra.mxu0 %v530
    %1403 = vmatpush.msra.mxu0 %v527
    %1404 = vmatpush.msra.mxu0 %v524
    %1405 = vmatpush.msra.mxu0 %v521
    %1406 = vmatpush.msra.mxu0 %v518
    %1407 = vmatpush.msra.mxu0 %v515
    %1408 = vmatpush.msra.mxu0 %v512
    %1409 = vmatpush.msra.mxu0 %v509
    %1410 = vmatpush.msra.mxu0 %v506
    %1411 = vmatpush.msra.mxu0 %v503
    %1412 = vmatpush.msra.mxu0 %v500
    %1413 = vmatpush.msra.mxu0 %v497
    %1414 = vmatpush.msra.mxu0 %v494
    %1415 = vmatpush.msra.mxu0 %v491
    %1416 = vmatpush.msra.mxu0 %v488
    %1417 = vmatmul.f32.gmra.mxu0 %v1360
    %v1418 = vpop.f32.mrf.mxu0
    %v1419 = vadd.f32 0.0, %v1418
    %1420 = vdwg.mxu0
    %v1421 = vadd.f32 %v1247, %v1379
    %v1422 = vxor.u32 %v1421, 2147483648
    %v1423 = vmul.f32 %v1422, 1.442695
    %v1424 = vpow.pop %v1423
    %v1425 = vadd.f32 %v1424, 1.0
    %v1426 = vrcp.pop %v1425
    %v1427 = vmul.f32 %v1425, %v1426
    %v1428 = vsub.f32 1.0, %v1427
    %v1429 = vmul.f32 %v1426, %v1428
    %v1430 = vadd.f32 %v1426, %v1429
    %vm1431 = vweird.f32 %v1425
    %vm1432 = vweird.f32 %v1426
    %vm1433 = vmor %vm1431, %vm1432
    %v1434 = vsel %vm1433, %v1426, %v1430
    %v1435 = vand.u32 2147483647, %v1425
    %vm1436 = vcmp.eq.f32.partialorder %v1435, 8.507059e+37
    %v1437 = vand.u32 %v1425, 2147483648
    %v1438 = vor.u32 1.1754944e-38, %v1437
    %v1439 = vsel %vm1436, %v1438, %v1434
    %v1440 = vmul.f32 1.0, %v1439
    %v1441 = vadd.f32 %v1248, %v1399
    %v1442 = vxor.u32 %v1441, 2147483648
    %v1443 = vmul.f32 %v1442, 1.442695
    %v1444 = vpow.pop %v1443
    %v1445 = vadd.f32 %v1444, 1.0
    %v1446 = vrcp.pop %v1445
    %v1447 = vmul.f32 %v1445, %v1446
    %v1448 = vsub.f32 1.0, %v1447
    %v1449 = vmul.f32 %v1446, %v1448
    %v1450 = vadd.f32 %v1446, %v1449
    %vm1451 = vweird.f32 %v1445
    %vm1452 = vweird.f32 %v1446
    %vm1453 = vmor %vm1451, %vm1452
    %v1454 = vsel %vm1453, %v1446, %v1450
    %v1455 = vand.u32 2147483647, %v1445
    %vm1456 = vcmp.eq.f32.partialorder %v1455, 8.507059e+37
    %v1457 = vand.u32 %v1445, 2147483648
    %v1458 = vor.u32 1.1754944e-38, %v1457
    %v1459 = vsel %vm1456, %v1458, %v1454
    %v1460 = vmul.f32 1.0, %v1459
    %v1461 = vadd.f32 %v1419, %v540
    %v1462 = vmul.f32 %v1440, %v1461
    %v1463 = vadd.f32 %v1249, %v1462
    %v1464 = vtanh.pop %v1463
    %v1465 = vsub.f32 1.0, %v1460
    %v1466 = vmul.f32 %v1465, %v1464
    %v1467 = vmul.f32 %v1460, %v1360
    %v1468 = vadd.f32 %v1466, %v1467
    %1469 = vst [vmem:[#allocation4] sm:$0xff] %v1468
    %v1470 = vld [vmem:[%s1246] sm:$0xff]
    %v1471 = vld [vmem:[%s1246 + $0x8] sm:$0xff]
    %v1472 = vld [vmem:[%s1246 + $0x10] sm:$0xff]
    %v1473 = vld [vmem:[%s1240 + $0x18] sm:$0xff]
    %v1474 = vld [vmem:[%s1240 + $0x20] sm:$0xff]
    %v1475 = vld [vmem:[%s1240 + $0x28] sm:$0xff]
    %v1476 = vld [vmem:[#allocation3] sm:$0xff]
    %1477 = vmatpush.msra.mxu0 %v483
    %1478 = vmatpush.msra.mxu0 %v480
    %1479 = vmatpush.msra.mxu0 %v477
    %1480 = vmatpush.msra.mxu0 %v474
    %1481 = vmatpush.msra.mxu0 %v471
    %1482 = vmatpush.msra.mxu0 %v468
    %1483 = vmatpush.msra.mxu0 %v465
    %1484 = vmatpush.msra.mxu0 %v462
    %1485 = vmatpush.msra.mxu0 %v459
    %1486 = vmatpush.msra.mxu0 %v456
    %1487 = vmatpush.msra.mxu0 %v453
    %1488 = vmatpush.msra.mxu0 %v450
    %1489 = vmatpush.msra.mxu0 %v447
    %1490 = vmatpush.msra.mxu0 %v444
    %1491 = vmatpush.msra.mxu0 %v441
    %1492 = vmatpush.msra.mxu0 %v438
    %1493 = vmatmul.f32.gmra.mxu0 %v1476
    %v1494 = vpop.f32.mrf.mxu0
    %v1495 = vadd.f32 0.0, %v1494
    %1496 = vdwg.mxu0
    %1497 = vmatpush.msra.mxu0 %v484
    %1498 = vmatpush.msra.mxu0 %v481
    %1499 = vmatpush.msra.mxu0 %v478
    %1500 = vmatpush.msra.mxu0 %v475
    %1501 = vmatpush.msra.mxu0 %v472
    %1502 = vmatpush.msra.mxu0 %v469
    %1503 = vmatpush.msra.mxu0 %v466
    %1504 = vmatpush.msra.mxu0 %v463
    %1505 = vmatpush.msra.mxu0 %v460
    %1506 = vmatpush.msra.mxu0 %v457
    %1507 = vmatpush.msra.mxu0 %v454
    %1508 = vmatpush.msra.mxu0 %v451
    %1509 = vmatpush.msra.mxu0 %v448
    %1510 = vmatpush.msra.mxu0 %v445
    %1511 = vmatpush.msra.mxu0 %v442
    %1512 = vmatpush.msra.mxu0 %v439
    %1513 = vmatmul.f32.gmra.mxu0 %v1476
    %v1514 = vpop.f32.mrf.mxu0
    %v1515 = vadd.f32 0.0, %v1514
    %1516 = vdwg.mxu0
    %1517 = vmatpush.msra.mxu0 %v485
    %1518 = vmatpush.msra.mxu0 %v482
    %1519 = vmatpush.msra.mxu0 %v479
    %1520 = vmatpush.msra.mxu0 %v476
    %1521 = vmatpush.msra.mxu0 %v473
    %1522 = vmatpush.msra.mxu0 %v470
    %1523 = vmatpush.msra.mxu0 %v467
    %1524 = vmatpush.msra.mxu0 %v464
    %1525 = vmatpush.msra.mxu0 %v461
    %1526 = vmatpush.msra.mxu0 %v458
    %1527 = vmatpush.msra.mxu0 %v455
    %1528 = vmatpush.msra.mxu0 %v452
    %1529 = vmatpush.msra.mxu0 %v449
    %1530 = vmatpush.msra.mxu0 %v446
    %1531 = vmatpush.msra.mxu0 %v443
    %1532 = vmatpush.msra.mxu0 %v440
    %1533 = vmatmul.f32.gmra.mxu0 %v1476
    %v1534 = vpop.f32.mrf.mxu0
    %v1535 = vadd.f32 0.0, %v1534
    %1536 = vdwg.mxu0
    %v1537 = vadd.f32 %v1470, %v1495
    %v1538 = vxor.u32 %v1537, 2147483648
    %v1539 = vmul.f32 %v1538, 1.442695
    %v1540 = vpow.pop %v1539
    %v1541 = vadd.f32 %v1540, 1.0
    %v1542 = vrcp.pop %v1541
    %v1543 = vmul.f32 %v1541, %v1542
    %v1544 = vsub.f32 1.0, %v1543
    %v1545 = vmul.f32 %v1542, %v1544
    %v1546 = vadd.f32 %v1542, %v1545
    %vm1547 = vweird.f32 %v1541
    %vm1548 = vweird.f32 %v1542
    %vm1549 = vmor %vm1547, %vm1548
    %v1550 = vsel %vm1549, %v1542, %v1546
    %v1551 = vand.u32 2147483647, %v1541
    %vm1552 = vcmp.eq.f32.partialorder %v1551, 8.507059e+37
    %v1553 = vand.u32 %v1541, 2147483648
    %v1554 = vor.u32 1.1754944e-38, %v1553
    %v1555 = vsel %vm1552, %v1554, %v1550
    %v1556 = vmul.f32 1.0, %v1555
    %v1557 = vadd.f32 %v1471, %v1515
    %v1558 = vxor.u32 %v1557, 2147483648
    %v1559 = vmul.f32 %v1558, 1.442695
    %v1560 = vpow.pop %v1559
    %v1561 = vadd.f32 %v1560, 1.0
    %v1562 = vrcp.pop %v1561
    %v1563 = vmul.f32 %v1561, %v1562
    %v1564 = vsub.f32 1.0, %v1563
    %v1565 = vmul.f32 %v1562, %v1564
    %v1566 = vadd.f32 %v1562, %v1565
    %vm1567 = vweird.f32 %v1561
    %vm1568 = vweird.f32 %v1562
    %vm1569 = vmor %vm1567, %vm1568
    %v1570 = vsel %vm1569, %v1562, %v1566
    %v1571 = vand.u32 2147483647, %v1561
    %vm1572 = vcmp.eq.f32.partialorder %v1571, 8.507059e+37
    %v1573 = vand.u32 %v1561, 2147483648
    %v1574 = vor.u32 1.1754944e-38, %v1573
    %v1575 = vsel %vm1572, %v1574, %v1570
    %v1576 = vmul.f32 1.0, %v1575
    %v1577 = vadd.f32 %v1535, %v536
    %v1578 = vmul.f32 %v1556, %v1577
    %v1579 = vadd.f32 %v1472, %v1578
    %v1580 = vtanh.pop %v1579
    %v1581 = vsub.f32 1.0, %v1576
    %v1582 = vmul.f32 %v1581, %v1580
    %v1583 = vmul.f32 %v1576, %v1476
    %v1584 = vadd.f32 %v1582, %v1583
    %1585 = vst [vmem:[#allocation3] sm:$0xff] %v1584
    %v1586 = vld [vmem:[#allocation4] sm:$0xff]
    %1587 = vmatpush.msra.mxu0 %v531
    %1588 = vmatpush.msra.mxu0 %v528
    %1589 = vmatpush.msra.mxu0 %v525
    %1590 = vmatpush.msra.mxu0 %v522
    %1591 = vmatpush.msra.mxu0 %v519
    %1592 = vmatpush.msra.mxu0 %v516
    %1593 = vmatpush.msra.mxu0 %v513
    %1594 = vmatpush.msra.mxu0 %v510
    %1595 = vmatpush.msra.mxu0 %v507
    %1596 = vmatpush.msra.mxu0 %v504
    %1597 = vmatpush.msra.mxu0 %v501
    %1598 = vmatpush.msra.mxu0 %v498
    %1599 = vmatpush.msra.mxu0 %v495
    %1600 = vmatpush.msra.mxu0 %v492
    %1601 = vmatpush.msra.mxu0 %v489
    %1602 = vmatpush.msra.mxu0 %v486
    %1603 = vmatmul.f32.gmra.mxu0 %v1586
    %v1604 = vpop.f32.mrf.mxu0
    %v1605 = vadd.f32 0.0, %v1604
    %1606 = vdwg.mxu0
    %1607 = vmatpush.msra.mxu0 %v532
    %1608 = vmatpush.msra.mxu0 %v529
    %1609 = vmatpush.msra.mxu0 %v526
    %1610 = vmatpush.msra.mxu0 %v523
    %1611 = vmatpush.msra.mxu0 %v520
    %1612 = vmatpush.msra.mxu0 %v517
    %1613 = vmatpush.msra.mxu0 %v514
    %1614 = vmatpush.msra.mxu0 %v511
    %1615 = vmatpush.msra.mxu0 %v508
    %1616 = vmatpush.msra.mxu0 %v505
    %1617 = vmatpush.msra.mxu0 %v502
    %1618 = vmatpush.msra.mxu0 %v499
    %1619 = vmatpush.msra.mxu0 %v496
    %1620 = vmatpush.msra.mxu0 %v493
    %1621 = vmatpush.msra.mxu0 %v490
    %1622 = vmatpush.msra.mxu0 %v487
    %1623 = vmatmul.f32.gmra.mxu0 %v1586
    %v1624 = vpop.f32.mrf.mxu0
    %v1625 = vadd.f32 0.0, %v1624
    %1626 = vdwg.mxu0
    %1627 = vmatpush.msra.mxu0 %v533
    %1628 = vmatpush.msra.mxu0 %v530
    %1629 = vmatpush.msra.mxu0 %v527
    %1630 = vmatpush.msra.mxu0 %v524
    %1631 = vmatpush.msra.mxu0 %v521
    %1632 = vmatpush.msra.mxu0 %v518
    %1633 = vmatpush.msra.mxu0 %v515
    %1634 = vmatpush.msra.mxu0 %v512
    %1635 = vmatpush.msra.mxu0 %v509
    %1636 = vmatpush.msra.mxu0 %v506
    %1637 = vmatpush.msra.mxu0 %v503
    %1638 = vmatpush.msra.mxu0 %v500
    %1639 = vmatpush.msra.mxu0 %v497
    %1640 = vmatpush.msra.mxu0 %v494
    %1641 = vmatpush.msra.mxu0 %v491
    %1642 = vmatpush.msra.mxu0 %v488
    %1643 = vmatmul.f32.gmra.mxu0 %v1586
    %v1644 = vpop.f32.mrf.mxu0
    %v1645 = vadd.f32 0.0, %v1644
    %1646 = vdwg.mxu0
    %v1647 = vadd.f32 %v1473, %v1605
    %v1648 = vxor.u32 %v1647, 2147483648
    %v1649 = vmul.f32 %v1648, 1.442695
    %v1650 = vpow.pop %v1649
    %v1651 = vadd.f32 %v1650, 1.0
    %v1652 = vrcp.pop %v1651
    %v1653 = vmul.f32 %v1651, %v1652
    %v1654 = vsub.f32 1.0, %v1653
    %v1655 = vmul.f32 %v1652, %v1654
    %v1656 = vadd.f32 %v1652, %v1655
    %vm1657 = vweird.f32 %v1651
    %vm1658 = vweird.f32 %v1652
    %vm1659 = vmor %vm1657, %vm1658
    %v1660 = vsel %vm1659, %v1652, %v1656
    %v1661 = vand.u32 2147483647, %v1651
    %vm1662 = vcmp.eq.f32.partialorder %v1661, 8.507059e+37
    %v1663 = vand.u32 %v1651, 2147483648
    %v1664 = vor.u32 1.1754944e-38, %v1663
    %v1665 = vsel %vm1662, %v1664, %v1660
    %v1666 = vmul.f32 1.0, %v1665
    %v1667 = vadd.f32 %v1474, %v1625
    %v1668 = vxor.u32 %v1667, 2147483648
    %v1669 = vmul.f32 %v1668, 1.442695
    %v1670 = vpow.pop %v1669
    %v1671 = vadd.f32 %v1670, 1.0
    %v1672 = vrcp.pop %v1671
    %v1673 = vmul.f32 %v1671, %v1672
    %v1674 = vsub.f32 1.0, %v1673
    %v1675 = vmul.f32 %v1672, %v1674
    %v1676 = vadd.f32 %v1672, %v1675
    %vm1677 = vweird.f32 %v1671
    %vm1678 = vweird.f32 %v1672
    %vm1679 = vmor %vm1677, %vm1678
    %v1680 = vsel %vm1679, %v1672, %v1676
    %v1681 = vand.u32 2147483647, %v1671
    %vm1682 = vcmp.eq.f32.partialorder %v1681, 8.507059e+37
    %v1683 = vand.u32 %v1671, 2147483648
    %v1684 = vor.u32 1.1754944e-38, %v1683
    %v1685 = vsel %vm1682, %v1684, %v1680
    %v1686 = vmul.f32 1.0, %v1685
    %v1687 = vadd.f32 %v1645, %v540
    %v1688 = vmul.f32 %v1666, %v1687
    %v1689 = vadd.f32 %v1475, %v1688
    %v1690 = vtanh.pop %v1689
    %v1691 = vsub.f32 1.0, %v1686
    %v1692 = vmul.f32 %v1691, %v1690
    %v1693 = vmul.f32 %v1686, %v1586
    %v1694 = vadd.f32 %v1692, %v1693
    %1695 = vst [vmem:[#allocation4] sm:$0xff] %v1694
    %v1696 = vld [vmem:[%s1014] sm:$0xff]
    %v1697 = vld [vmem:[%s1014 + $0x8] sm:$0xff]
    %v1698 = vld [vmem:[%s1014 + $0x10] sm:$0xff]
    %v1699 = vld [vmem:[%s1008 + $0x18] sm:$0xff]
    %v1700 = vld [vmem:[%s1008 + $0x20] sm:$0xff]
    %v1701 = vld [vmem:[%s1008 + $0x28] sm:$0xff]
    %v1702 = vld [vmem:[#allocation3] sm:$0xff]
    %1703 = vmatpush.msra.mxu0 %v483
    %1704 = vmatpush.msra.mxu0 %v480
    %1705 = vmatpush.msra.mxu0 %v477
    %1706 = vmatpush.msra.mxu0 %v474
    %1707 = vmatpush.msra.mxu0 %v471
    %1708 = vmatpush.msra.mxu0 %v468
    %1709 = vmatpush.msra.mxu0 %v465
    %1710 = vmatpush.msra.mxu0 %v462
    %1711 = vmatpush.msra.mxu0 %v459
    %1712 = vmatpush.msra.mxu0 %v456
    %1713 = vmatpush.msra.mxu0 %v453
    %1714 = vmatpush.msra.mxu0 %v450
    %1715 = vmatpush.msra.mxu0 %v447
    %1716 = vmatpush.msra.mxu0 %v444
    %1717 = vmatpush.msra.mxu0 %v441
    %1718 = vmatpush.msra.mxu0 %v438
    %1719 = vmatmul.f32.gmra.mxu0 %v1702
    %v1720 = vpop.f32.mrf.mxu0
    %v1721 = vadd.f32 0.0, %v1720
    %1722 = vdwg.mxu0
    %1723 = vmatpush.msra.mxu0 %v484
    %1724 = vmatpush.msra.mxu0 %v481
    %1725 = vmatpush.msra.mxu0 %v478
    %1726 = vmatpush.msra.mxu0 %v475
    %1727 = vmatpush.msra.mxu0 %v472
    %1728 = vmatpush.msra.mxu0 %v469
    %1729 = vmatpush.msra.mxu0 %v466
    %1730 = vmatpush.msra.mxu0 %v463
    %1731 = vmatpush.msra.mxu0 %v460
    %1732 = vmatpush.msra.mxu0 %v457
    %1733 = vmatpush.msra.mxu0 %v454
    %1734 = vmatpush.msra.mxu0 %v451
    %1735 = vmatpush.msra.mxu0 %v448
    %1736 = vmatpush.msra.mxu0 %v445
    %1737 = vmatpush.msra.mxu0 %v442
    %1738 = vmatpush.msra.mxu0 %v439
    %1739 = vmatmul.f32.gmra.mxu0 %v1702
    %v1740 = vpop.f32.mrf.mxu0
    %v1741 = vadd.f32 0.0, %v1740
    %1742 = vdwg.mxu0
    %1743 = vmatpush.msra.mxu0 %v485
    %1744 = vmatpush.msra.mxu0 %v482
    %1745 = vmatpush.msra.mxu0 %v479
    %1746 = vmatpush.msra.mxu0 %v476
    %1747 = vmatpush.msra.mxu0 %v473
    %1748 = vmatpush.msra.mxu0 %v470
    %1749 = vmatpush.msra.mxu0 %v467
    %1750 = vmatpush.msra.mxu0 %v464
    %1751 = vmatpush.msra.mxu0 %v461
    %1752 = vmatpush.msra.mxu0 %v458
    %1753 = vmatpush.msra.mxu0 %v455
    %1754 = vmatpush.msra.mxu0 %v452
    %1755 = vmatpush.msra.mxu0 %v449
    %1756 = vmatpush.msra.mxu0 %v446
    %1757 = vmatpush.msra.mxu0 %v443
    %1758 = vmatpush.msra.mxu0 %v440
    %1759 = vmatmul.f32.gmra.mxu0 %v1702
    %v1760 = vpop.f32.mrf.mxu0
    %v1761 = vadd.f32 0.0, %v1760
    %1762 = vdwg.mxu0
    %v1763 = vadd.f32 %v1696, %v1721
    %v1764 = vxor.u32 %v1763, 2147483648
    %v1765 = vmul.f32 %v1764, 1.442695
    %v1766 = vpow.pop %v1765
    %v1767 = vadd.f32 %v1766, 1.0
    %v1768 = vrcp.pop %v1767
    %v1769 = vmul.f32 %v1767, %v1768
    %v1770 = vsub.f32 1.0, %v1769
    %v1771 = vmul.f32 %v1768, %v1770
    %v1772 = vadd.f32 %v1768, %v1771
    %vm1773 = vweird.f32 %v1767
    %vm1774 = vweird.f32 %v1768
    %vm1775 = vmor %vm1773, %vm1774
    %v1776 = vsel %vm1775, %v1768, %v1772
    %v1777 = vand.u32 2147483647, %v1767
    %vm1778 = vcmp.eq.f32.partialorder %v1777, 8.507059e+37
    %v1779 = vand.u32 %v1767, 2147483648
    %v1780 = vor.u32 1.1754944e-38, %v1779
    %v1781 = vsel %vm1778, %v1780, %v1776
    %v1782 = vmul.f32 1.0, %v1781
    %v1783 = vadd.f32 %v1697, %v1741
    %v1784 = vxor.u32 %v1783, 2147483648
    %v1785 = vmul.f32 %v1784, 1.442695
    %v1786 = vpow.pop %v1785
    %v1787 = vadd.f32 %v1786, 1.0
    %v1788 = vrcp.pop %v1787
    %v1789 = vmul.f32 %v1787, %v1788
    %v1790 = vsub.f32 1.0, %v1789
    %v1791 = vmul.f32 %v1788, %v1790
    %v1792 = vadd.f32 %v1788, %v1791
    %vm1793 = vweird.f32 %v1787
    %vm1794 = vweird.f32 %v1788
    %vm1795 = vmor %vm1793, %vm1794
    %v1796 = vsel %vm1795, %v1788, %v1792
    %v1797 = vand.u32 2147483647, %v1787
    %vm1798 = vcmp.eq.f32.partialorder %v1797, 8.507059e+37
    %v1799 = vand.u32 %v1787, 2147483648
    %v1800 = vor.u32 1.1754944e-38, %v1799
    %v1801 = vsel %vm1798, %v1800, %v1796
    %v1802 = vmul.f32 1.0, %v1801
    %v1803 = vadd.f32 %v1761, %v536
    %v1804 = vmul.f32 %v1782, %v1803
    %v1805 = vadd.f32 %v1698, %v1804
    %v1806 = vtanh.pop %v1805
    %v1807 = vsub.f32 1.0, %v1802
    %v1808 = vmul.f32 %v1807, %v1806
    %v1809 = vmul.f32 %v1802, %v1702
    %v1810 = vadd.f32 %v1808, %v1809
    %1811 = vst [vmem:[#allocation3] sm:$0xff] %v1810
    %v1812 = vld [vmem:[#allocation4] sm:$0xff]
    %1813 = vmatpush.msra.mxu0 %v531
    %1814 = vmatpush.msra.mxu0 %v528
    %1815 = vmatpush.msra.mxu0 %v525
    %1816 = vmatpush.msra.mxu0 %v522
    %1817 = vmatpush.msra.mxu0 %v519
    %1818 = vmatpush.msra.mxu0 %v516
    %1819 = vmatpush.msra.mxu0 %v513
    %1820 = vmatpush.msra.mxu0 %v510
    %1821 = vmatpush.msra.mxu0 %v507
    %1822 = vmatpush.msra.mxu0 %v504
    %1823 = vmatpush.msra.mxu0 %v501
    %1824 = vmatpush.msra.mxu0 %v498
    %1825 = vmatpush.msra.mxu0 %v495
    %1826 = vmatpush.msra.mxu0 %v492
    %1827 = vmatpush.msra.mxu0 %v489
    %1828 = vmatpush.msra.mxu0 %v486
    %1829 = vmatmul.f32.gmra.mxu0 %v1812
    %v1830 = vpop.f32.mrf.mxu0
    %v1831 = vadd.f32 0.0, %v1830
    %1832 = vdwg.mxu0
    %1833 = vmatpush.msra.mxu0 %v532
    %1834 = vmatpush.msra.mxu0 %v529
    %1835 = vmatpush.msra.mxu0 %v526
    %1836 = vmatpush.msra.mxu0 %v523
    %1837 = vmatpush.msra.mxu0 %v520
    %1838 = vmatpush.msra.mxu0 %v517
    %1839 = vmatpush.msra.mxu0 %v514
    %1840 = vmatpush.msra.mxu0 %v511
    %1841 = vmatpush.msra.mxu0 %v508
    %1842 = vmatpush.msra.mxu0 %v505
    %1843 = vmatpush.msra.mxu0 %v502
    %1844 = vmatpush.msra.mxu0 %v499
    %1845 = vmatpush.msra.mxu0 %v496
    %1846 = vmatpush.msra.mxu0 %v493
    %1847 = vmatpush.msra.mxu0 %v490
    %1848 = vmatpush.msra.mxu0 %v487
    %1849 = vmatmul.f32.gmra.mxu0 %v1812
    %v1850 = vpop.f32.mrf.mxu0
    %v1851 = vadd.f32 0.0, %v1850
    %1852 = vdwg.mxu0
    %1853 = vmatpush.msra.mxu0 %v533
    %1854 = vmatpush.msra.mxu0 %v530
    %1855 = vmatpush.msra.mxu0 %v527
    %1856 = vmatpush.msra.mxu0 %v524
    %1857 = vmatpush.msra.mxu0 %v521
    %1858 = vmatpush.msra.mxu0 %v518
    %1859 = vmatpush.msra.mxu0 %v515
    %1860 = vmatpush.msra.mxu0 %v512
    %1861 = vmatpush.msra.mxu0 %v509
    %1862 = vmatpush.msra.mxu0 %v506
    %1863 = vmatpush.msra.mxu0 %v503
    %1864 = vmatpush.msra.mxu0 %v500
    %1865 = vmatpush.msra.mxu0 %v497
    %1866 = vmatpush.msra.mxu0 %v494
    %1867 = vmatpush.msra.mxu0 %v491
    %1868 = vmatpush.msra.mxu0 %v488
    %1869 = vmatmul.f32.gmra.mxu0 %v1812
    %v1870 = vpop.f32.mrf.mxu0
    %v1871 = vadd.f32 0.0, %v1870
    %1872 = vdwg.mxu0
    %v1873 = vadd.f32 %v1699, %v1831
    %v1874 = vxor.u32 %v1873, 2147483648
    %v1875 = vmul.f32 %v1874, 1.442695
    %v1876 = vpow.pop %v1875
    %v1877 = vadd.f32 %v1876, 1.0
    %v1878 = vrcp.pop %v1877
    %v1879 = vmul.f32 %v1877, %v1878
    %v1880 = vsub.f32 1.0, %v1879
    %v1881 = vmul.f32 %v1878, %v1880
    %v1882 = vadd.f32 %v1878, %v1881
    %vm1883 = vweird.f32 %v1877
    %vm1884 = vweird.f32 %v1878
    %vm1885 = vmor %vm1883, %vm1884
    %v1886 = vsel %vm1885, %v1878, %v1882
    %v1887 = vand.u32 2147483647, %v1877
    %vm1888 = vcmp.eq.f32.partialorder %v1887, 8.507059e+37
    %v1889 = vand.u32 %v1877, 2147483648
    %v1890 = vor.u32 1.1754944e-38, %v1889
    %v1891 = vsel %vm1888, %v1890, %v1886
    %v1892 = vmul.f32 1.0, %v1891
    %v1893 = vadd.f32 %v1700, %v1851
    %v1894 = vxor.u32 %v1893, 2147483648
    %v1895 = vmul.f32 %v1894, 1.442695
    %v1896 = vpow.pop %v1895
    %v1897 = vadd.f32 %v1896, 1.0
    %v1898 = vrcp.pop %v1897
    %v1899 = vmul.f32 %v1897, %v1898
    %v1900 = vsub.f32 1.0, %v1899
    %v1901 = vmul.f32 %v1898, %v1900
    %v1902 = vadd.f32 %v1898, %v1901
    %vm1903 = vweird.f32 %v1897
    %vm1904 = vweird.f32 %v1898
    %vm1905 = vmor %vm1903, %vm1904
    %v1906 = vsel %vm1905, %v1898, %v1902
    %v1907 = vand.u32 2147483647, %v1897
    %vm1908 = vcmp.eq.f32.partialorder %v1907, 8.507059e+37
    %v1909 = vand.u32 %v1897, 2147483648
    %v1910 = vor.u32 1.1754944e-38, %v1909
    %v1911 = vsel %vm1908, %v1910, %v1906
    %v1912 = vmul.f32 1.0, %v1911
    %v1913 = vadd.f32 %v1871, %v540
    %v1914 = vmul.f32 %v1892, %v1913
    %v1915 = vadd.f32 %v1701, %v1914
    %v1916 = vtanh.pop %v1915
    %v1917 = vsub.f32 1.0, %v1912
    %v1918 = vmul.f32 %v1917, %v1916
    %v1919 = vmul.f32 %v1912, %v1812
    %v1920 = vadd.f32 %v1918, %v1919
    %1921 = vst [vmem:[#allocation4] sm:$0xff] %v1920
    %v1922 = vld [vmem:[%s782] sm:$0xff]
    %v1923 = vld [vmem:[%s782 + $0x8] sm:$0xff]
    %v1924 = vld [vmem:[%s782 + $0x10] sm:$0xff]
    %v1925 = vld [vmem:[%s776 + $0x18] sm:$0xff]
    %v1926 = vld [vmem:[%s776 + $0x20] sm:$0xff]
    %v1927 = vld [vmem:[%s776 + $0x28] sm:$0xff]
    %v1928 = vld [vmem:[#allocation3] sm:$0xff]
    %1929 = vmatpush.msra.mxu0 %v483
    %1930 = vmatpush.msra.mxu0 %v480
    %1931 = vmatpush.msra.mxu0 %v477
    %1932 = vmatpush.msra.mxu0 %v474
    %1933 = vmatpush.msra.mxu0 %v471
    %1934 = vmatpush.msra.mxu0 %v468
    %1935 = vmatpush.msra.mxu0 %v465
    %1936 = vmatpush.msra.mxu0 %v462
    %1937 = vmatpush.msra.mxu0 %v459
    %1938 = vmatpush.msra.mxu0 %v456
    %1939 = vmatpush.msra.mxu0 %v453
    %1940 = vmatpush.msra.mxu0 %v450
    %1941 = vmatpush.msra.mxu0 %v447
    %1942 = vmatpush.msra.mxu0 %v444
    %1943 = vmatpush.msra.mxu0 %v441
    %1944 = vmatpush.msra.mxu0 %v438
    %1945 = vmatmul.f32.gmra.mxu0 %v1928
    %v1946 = vpop.f32.mrf.mxu0
    %v1947 = vadd.f32 0.0, %v1946
    %1948 = vdwg.mxu0
    %1949 = vmatpush.msra.mxu0 %v484
    %1950 = vmatpush.msra.mxu0 %v481
    %1951 = vmatpush.msra.mxu0 %v478
    %1952 = vmatpush.msra.mxu0 %v475
    %1953 = vmatpush.msra.mxu0 %v472
    %1954 = vmatpush.msra.mxu0 %v469
    %1955 = vmatpush.msra.mxu0 %v466
    %1956 = vmatpush.msra.mxu0 %v463
    %1957 = vmatpush.msra.mxu0 %v460
    %1958 = vmatpush.msra.mxu0 %v457
    %1959 = vmatpush.msra.mxu0 %v454
    %1960 = vmatpush.msra.mxu0 %v451
    %1961 = vmatpush.msra.mxu0 %v448
    %1962 = vmatpush.msra.mxu0 %v445
    %1963 = vmatpush.msra.mxu0 %v442
    %1964 = vmatpush.msra.mxu0 %v439
    %1965 = vmatmul.f32.gmra.mxu0 %v1928
    %v1966 = vpop.f32.mrf.mxu0
    %v1967 = vadd.f32 0.0, %v1966
    %1968 = vdwg.mxu0
    %1969 = vmatpush.msra.mxu0 %v485
    %1970 = vmatpush.msra.mxu0 %v482
    %1971 = vmatpush.msra.mxu0 %v479
    %1972 = vmatpush.msra.mxu0 %v476
    %1973 = vmatpush.msra.mxu0 %v473
    %1974 = vmatpush.msra.mxu0 %v470
    %1975 = vmatpush.msra.mxu0 %v467
    %1976 = vmatpush.msra.mxu0 %v464
    %1977 = vmatpush.msra.mxu0 %v461
    %1978 = vmatpush.msra.mxu0 %v458
    %1979 = vmatpush.msra.mxu0 %v455
    %1980 = vmatpush.msra.mxu0 %v452
    %1981 = vmatpush.msra.mxu0 %v449
    %1982 = vmatpush.msra.mxu0 %v446
    %1983 = vmatpush.msra.mxu0 %v443
    %1984 = vmatpush.msra.mxu0 %v440
    %1985 = vmatmul.f32.gmra.mxu0 %v1928
    %v1986 = vpop.f32.mrf.mxu0
    %v1987 = vadd.f32 0.0, %v1986
    %1988 = vdwg.mxu0
    %v1989 = vadd.f32 %v1922, %v1947
    %v1990 = vxor.u32 %v1989, 2147483648
    %v1991 = vmul.f32 %v1990, 1.442695
    %v1992 = vpow.pop %v1991
    %v1993 = vadd.f32 %v1992, 1.0
    %v1994 = vrcp.pop %v1993
    %v1995 = vmul.f32 %v1993, %v1994
    %v1996 = vsub.f32 1.0, %v1995
    %v1997 = vmul.f32 %v1994, %v1996
    %v1998 = vadd.f32 %v1994, %v1997
    %vm1999 = vweird.f32 %v1993
    %vm2000 = vweird.f32 %v1994
    %vm2001 = vmor %vm1999, %vm2000
    %v2002 = vsel %vm2001, %v1994, %v1998
    %v2003 = vand.u32 2147483647, %v1993
    %vm2004 = vcmp.eq.f32.partialorder %v2003, 8.507059e+37
    %v2005 = vand.u32 %v1993, 2147483648
    %v2006 = vor.u32 1.1754944e-38, %v2005
    %v2007 = vsel %vm2004, %v2006, %v2002
    %v2008 = vmul.f32 1.0, %v2007
    %v2009 = vadd.f32 %v1923, %v1967
    %v2010 = vxor.u32 %v2009, 2147483648
    %v2011 = vmul.f32 %v2010, 1.442695
    %v2012 = vpow.pop %v2011
    %v2013 = vadd.f32 %v2012, 1.0
    %v2014 = vrcp.pop %v2013
    %v2015 = vmul.f32 %v2013, %v2014
    %v2016 = vsub.f32 1.0, %v2015
    %v2017 = vmul.f32 %v2014, %v2016
    %v2018 = vadd.f32 %v2014, %v2017
    %vm2019 = vweird.f32 %v2013
    %vm2020 = vweird.f32 %v2014
    %vm2021 = vmor %vm2019, %vm2020
    %v2022 = vsel %vm2021, %v2014, %v2018
    %v2023 = vand.u32 2147483647, %v2013
    %vm2024 = vcmp.eq.f32.partialorder %v2023, 8.507059e+37
    %v2025 = vand.u32 %v2013, 2147483648
    %v2026 = vor.u32 1.1754944e-38, %v2025
    %v2027 = vsel %vm2024, %v2026, %v2022
    %v2028 = vmul.f32 1.0, %v2027
    %v2029 = vadd.f32 %v1987, %v536
    %v2030 = vmul.f32 %v2008, %v2029
    %v2031 = vadd.f32 %v1924, %v2030
    %v2032 = vtanh.pop %v2031
    %v2033 = vsub.f32 1.0, %v2028
    %v2034 = vmul.f32 %v2033, %v2032
    %v2035 = vmul.f32 %v2028, %v1928
    %v2036 = vadd.f32 %v2034, %v2035
    %2037 = vst [vmem:[#allocation3] sm:$0xff] %v2036
    %v2038 = vld [vmem:[#allocation4] sm:$0xff]
    %2039 = vmatpush.msra.mxu0 %v531
    %2040 = vmatpush.msra.mxu0 %v528
    %2041 = vmatpush.msra.mxu0 %v525
    %2042 = vmatpush.msra.mxu0 %v522
    %2043 = vmatpush.msra.mxu0 %v519
    %2044 = vmatpush.msra.mxu0 %v516
    %2045 = vmatpush.msra.mxu0 %v513
    %2046 = vmatpush.msra.mxu0 %v510
    %2047 = vmatpush.msra.mxu0 %v507
    %2048 = vmatpush.msra.mxu0 %v504
    %2049 = vmatpush.msra.mxu0 %v501
    %2050 = vmatpush.msra.mxu0 %v498
    %2051 = vmatpush.msra.mxu0 %v495
    %2052 = vmatpush.msra.mxu0 %v492
    %2053 = vmatpush.msra.mxu0 %v489
    %2054 = vmatpush.msra.mxu0 %v486
    %2055 = vmatmul.f32.gmra.mxu0 %v2038
    %v2056 = vpop.f32.mrf.mxu0
    %v2057 = vadd.f32 0.0, %v2056
    %2058 = vdwg.mxu0
    %2059 = vmatpush.msra.mxu0 %v532
    %2060 = vmatpush.msra.mxu0 %v529
    %2061 = vmatpush.msra.mxu0 %v526
    %2062 = vmatpush.msra.mxu0 %v523
    %2063 = vmatpush.msra.mxu0 %v520
    %2064 = vmatpush.msra.mxu0 %v517
    %2065 = vmatpush.msra.mxu0 %v514
    %2066 = vmatpush.msra.mxu0 %v511
    %2067 = vmatpush.msra.mxu0 %v508
    %2068 = vmatpush.msra.mxu0 %v505
    %2069 = vmatpush.msra.mxu0 %v502
    %2070 = vmatpush.msra.mxu0 %v499
    %2071 = vmatpush.msra.mxu0 %v496
    %2072 = vmatpush.msra.mxu0 %v493
    %2073 = vmatpush.msra.mxu0 %v490
    %2074 = vmatpush.msra.mxu0 %v487
    %2075 = vmatmul.f32.gmra.mxu0 %v2038
    %v2076 = vpop.f32.mrf.mxu0
    %v2077 = vadd.f32 0.0, %v2076
    %2078 = vdwg.mxu0
    %2079 = vmatpush.msra.mxu0 %v533
    %2080 = vmatpush.msra.mxu0 %v530
    %2081 = vmatpush.msra.mxu0 %v527
    %2082 = vmatpush.msra.mxu0 %v524
    %2083 = vmatpush.msra.mxu0 %v521
    %2084 = vmatpush.msra.mxu0 %v518
    %2085 = vmatpush.msra.mxu0 %v515
    %2086 = vmatpush.msra.mxu0 %v512
    %2087 = vmatpush.msra.mxu0 %v509
    %2088 = vmatpush.msra.mxu0 %v506
    %2089 = vmatpush.msra.mxu0 %v503
    %2090 = vmatpush.msra.mxu0 %v500
    %2091 = vmatpush.msra.mxu0 %v497
    %2092 = vmatpush.msra.mxu0 %v494
    %2093 = vmatpush.msra.mxu0 %v491
    %2094 = vmatpush.msra.mxu0 %v488
    %2095 = vmatmul.f32.gmra.mxu0 %v2038
    %v2096 = vpop.f32.mrf.mxu0
    %v2097 = vadd.f32 0.0, %v2096
    %2098 = vdwg.mxu0
    %v2099 = vadd.f32 %v1925, %v2057
    %v2100 = vxor.u32 %v2099, 2147483648
    %v2101 = vmul.f32 %v2100, 1.442695
    %v2102 = vpow.pop %v2101
    %v2103 = vadd.f32 %v2102, 1.0
    %v2104 = vrcp.pop %v2103
    %v2105 = vmul.f32 %v2103, %v2104
    %v2106 = vsub.f32 1.0, %v2105
    %v2107 = vmul.f32 %v2104, %v2106
    %v2108 = vadd.f32 %v2104, %v2107
    %vm2109 = vweird.f32 %v2103
    %vm2110 = vweird.f32 %v2104
    %vm2111 = vmor %vm2109, %vm2110
    %v2112 = vsel %vm2111, %v2104, %v2108
    %v2113 = vand.u32 2147483647, %v2103
    %vm2114 = vcmp.eq.f32.partialorder %v2113, 8.507059e+37
    %v2115 = vand.u32 %v2103, 2147483648
    %v2116 = vor.u32 1.1754944e-38, %v2115
    %v2117 = vsel %vm2114, %v2116, %v2112
    %v2118 = vmul.f32 1.0, %v2117
    %v2119 = vadd.f32 %v1926, %v2077
    %v2120 = vxor.u32 %v2119, 2147483648
    %v2121 = vmul.f32 %v2120, 1.442695
    %v2122 = vpow.pop %v2121
    %v2123 = vadd.f32 %v2122, 1.0
    %v2124 = vrcp.pop %v2123
    %v2125 = vmul.f32 %v2123, %v2124
    %v2126 = vsub.f32 1.0, %v2125
    %v2127 = vmul.f32 %v2124, %v2126
    %v2128 = vadd.f32 %v2124, %v2127
    %vm2129 = vweird.f32 %v2123
    %vm2130 = vweird.f32 %v2124
    %vm2131 = vmor %vm2129, %vm2130
    %v2132 = vsel %vm2131, %v2124, %v2128
    %v2133 = vand.u32 2147483647, %v2123
    %vm2134 = vcmp.eq.f32.partialorder %v2133, 8.507059e+37
    %v2135 = vand.u32 %v2123, 2147483648
    %v2136 = vor.u32 1.1754944e-38, %v2135
    %v2137 = vsel %vm2134, %v2136, %v2132
    %v2138 = vmul.f32 1.0, %v2137
    %v2139 = vadd.f32 %v2097, %v540
    %v2140 = vmul.f32 %v2118, %v2139
    %v2141 = vadd.f32 %v1927, %v2140
    %v2142 = vtanh.pop %v2141
    %v2143 = vsub.f32 1.0, %v2138
    %v2144 = vmul.f32 %v2143, %v2142
    %v2145 = vmul.f32 %v2138, %v2038
    %v2146 = vadd.f32 %v2144, %v2145
    %2147 = vst [vmem:[#allocation4] sm:$0xff] %v2146
    %v2148 = vld [vmem:[%s550] sm:$0xff]
    %v2149 = vld [vmem:[%s550 + $0x8] sm:$0xff]
    %v2150 = vld [vmem:[%s550 + $0x10] sm:$0xff]
    %v2151 = vld [vmem:[%s544 + $0x18] sm:$0xff]
    %v2152 = vld [vmem:[%s544 + $0x20] sm:$0xff]
    %v2153 = vld [vmem:[%s544 + $0x28] sm:$0xff]
    %v2154 = vld [vmem:[#allocation3] sm:$0xff]
    %2155 = vmatpush.msra.mxu0 %v483
    %2156 = vmatpush.msra.mxu0 %v480
    %2157 = vmatpush.msra.mxu0 %v477
    %2158 = vmatpush.msra.mxu0 %v474
    %2159 = vmatpush.msra.mxu0 %v471
    %2160 = vmatpush.msra.mxu0 %v468
    %2161 = vmatpush.msra.mxu0 %v465
    %2162 = vmatpush.msra.mxu0 %v462
    %2163 = vmatpush.msra.mxu0 %v459
    %2164 = vmatpush.msra.mxu0 %v456
    %2165 = vmatpush.msra.mxu0 %v453
    %2166 = vmatpush.msra.mxu0 %v450
    %2167 = vmatpush.msra.mxu0 %v447
    %2168 = vmatpush.msra.mxu0 %v444
    %2169 = vmatpush.msra.mxu0 %v441
    %2170 = vmatpush.msra.mxu0 %v438
    %2171 = vmatmul.f32.gmra.mxu0 %v2154
    %v2172 = vpop.f32.mrf.mxu0
    %v2173 = vadd.f32 0.0, %v2172
    %2174 = vdwg.mxu0
    %2175 = vmatpush.msra.mxu0 %v484
    %2176 = vmatpush.msra.mxu0 %v481
    %2177 = vmatpush.msra.mxu0 %v478
    %2178 = vmatpush.msra.mxu0 %v475
    %2179 = vmatpush.msra.mxu0 %v472
    %2180 = vmatpush.msra.mxu0 %v469
    %2181 = vmatpush.msra.mxu0 %v466
    %2182 = vmatpush.msra.mxu0 %v463
    %2183 = vmatpush.msra.mxu0 %v460
    %2184 = vmatpush.msra.mxu0 %v457
    %2185 = vmatpush.msra.mxu0 %v454
    %2186 = vmatpush.msra.mxu0 %v451
    %2187 = vmatpush.msra.mxu0 %v448
    %2188 = vmatpush.msra.mxu0 %v445
    %2189 = vmatpush.msra.mxu0 %v442
    %2190 = vmatpush.msra.mxu0 %v439
    %2191 = vmatmul.f32.gmra.mxu0 %v2154
    %v2192 = vpop.f32.mrf.mxu0
    %v2193 = vadd.f32 0.0, %v2192
    %2194 = vdwg.mxu0
    %2195 = vmatpush.msra.mxu0 %v485
    %2196 = vmatpush.msra.mxu0 %v482
    %2197 = vmatpush.msra.mxu0 %v479
    %2198 = vmatpush.msra.mxu0 %v476
    %2199 = vmatpush.msra.mxu0 %v473
    %2200 = vmatpush.msra.mxu0 %v470
    %2201 = vmatpush.msra.mxu0 %v467
    %2202 = vmatpush.msra.mxu0 %v464
    %2203 = vmatpush.msra.mxu0 %v461
    %2204 = vmatpush.msra.mxu0 %v458
    %2205 = vmatpush.msra.mxu0 %v455
    %2206 = vmatpush.msra.mxu0 %v452
    %2207 = vmatpush.msra.mxu0 %v449
    %2208 = vmatpush.msra.mxu0 %v446
    %2209 = vmatpush.msra.mxu0 %v443
    %2210 = vmatpush.msra.mxu0 %v440
    %2211 = vmatmul.f32.gmra.mxu0 %v2154
    %v2212 = vpop.f32.mrf.mxu0
    %v2213 = vadd.f32 0.0, %v2212
    %2214 = vdwg.mxu0
    %v2215 = vadd.f32 %v2148, %v2173
    %v2216 = vxor.u32 %v2215, 2147483648
    %v2217 = vmul.f32 %v2216, 1.442695
    %v2218 = vpow.pop %v2217
    %v2219 = vadd.f32 %v2218, 1.0
    %v2220 = vrcp.pop %v2219
    %v2221 = vmul.f32 %v2219, %v2220
    %v2222 = vsub.f32 1.0, %v2221
    %v2223 = vmul.f32 %v2220, %v2222
    %v2224 = vadd.f32 %v2220, %v2223
    %vm2225 = vweird.f32 %v2219
    %vm2226 = vweird.f32 %v2220
    %vm2227 = vmor %vm2225, %vm2226
    %v2228 = vsel %vm2227, %v2220, %v2224
    %v2229 = vand.u32 2147483647, %v2219
    %vm2230 = vcmp.eq.f32.partialorder %v2229, 8.507059e+37
    %v2231 = vand.u32 %v2219, 2147483648
    %v2232 = vor.u32 1.1754944e-38, %v2231
    %v2233 = vsel %vm2230, %v2232, %v2228
    %v2234 = vmul.f32 1.0, %v2233
    %v2235 = vadd.f32 %v2149, %v2193
    %v2236 = vxor.u32 %v2235, 2147483648
    %v2237 = vmul.f32 %v2236, 1.442695
    %v2238 = vpow.pop %v2237
    %v2239 = vadd.f32 %v2238, 1.0
    %v2240 = vrcp.pop %v2239
    %v2241 = vmul.f32 %v2239, %v2240
    %v2242 = vsub.f32 1.0, %v2241
    %v2243 = vmul.f32 %v2240, %v2242
    %v2244 = vadd.f32 %v2240, %v2243
    %vm2245 = vweird.f32 %v2239
    %vm2246 = vweird.f32 %v2240
    %vm2247 = vmor %vm2245, %vm2246
    %v2248 = vsel %vm2247, %v2240, %v2244
    %v2249 = vand.u32 2147483647, %v2239
    %vm2250 = vcmp.eq.f32.partialorder %v2249, 8.507059e+37
    %v2251 = vand.u32 %v2239, 2147483648
    %v2252 = vor.u32 1.1754944e-38, %v2251
    %v2253 = vsel %vm2250, %v2252, %v2248
    %v2254 = vmul.f32 1.0, %v2253
    %v2255 = vadd.f32 %v2213, %v536
    %v2256 = vmul.f32 %v2234, %v2255
    %v2257 = vadd.f32 %v2150, %v2256
    %v2258 = vtanh.pop %v2257
    %v2259 = vsub.f32 1.0, %v2254
    %v2260 = vmul.f32 %v2259, %v2258
    %v2261 = vmul.f32 %v2254, %v2154
    %v2262 = vadd.f32 %v2260, %v2261
    %2263 = vst [vmem:[#allocation3] sm:$0xff] %v2262
    %v2264 = vld [vmem:[#allocation4] sm:$0xff]
    %2265 = vmatpush.msra.mxu0 %v531
    %2266 = vmatpush.msra.mxu0 %v528
    %2267 = vmatpush.msra.mxu0 %v525
    %2268 = vmatpush.msra.mxu0 %v522
    %2269 = vmatpush.msra.mxu0 %v519
    %2270 = vmatpush.msra.mxu0 %v516
    %2271 = vmatpush.msra.mxu0 %v513
    %2272 = vmatpush.msra.mxu0 %v510
    %2273 = vmatpush.msra.mxu0 %v507
    %2274 = vmatpush.msra.mxu0 %v504
    %2275 = vmatpush.msra.mxu0 %v501
    %2276 = vmatpush.msra.mxu0 %v498
    %2277 = vmatpush.msra.mxu0 %v495
    %2278 = vmatpush.msra.mxu0 %v492
    %2279 = vmatpush.msra.mxu0 %v489
    %2280 = vmatpush.msra.mxu0 %v486
    %2281 = vmatmul.f32.gmra.mxu0 %v2264
    %v2282 = vpop.f32.mrf.mxu0
    %v2283 = vadd.f32 0.0, %v2282
    %2284 = vdwg.mxu0
    %2285 = vmatpush.msra.mxu0 %v532
    %2286 = vmatpush.msra.mxu0 %v529
    %2287 = vmatpush.msra.mxu0 %v526
    %2288 = vmatpush.msra.mxu0 %v523
    %2289 = vmatpush.msra.mxu0 %v520
    %2290 = vmatpush.msra.mxu0 %v517
    %2291 = vmatpush.msra.mxu0 %v514
    %2292 = vmatpush.msra.mxu0 %v511
    %2293 = vmatpush.msra.mxu0 %v508
    %2294 = vmatpush.msra.mxu0 %v505
    %2295 = vmatpush.msra.mxu0 %v502
    %2296 = vmatpush.msra.mxu0 %v499
    %2297 = vmatpush.msra.mxu0 %v496
    %2298 = vmatpush.msra.mxu0 %v493
    %2299 = vmatpush.msra.mxu0 %v490
    %2300 = vmatpush.msra.mxu0 %v487
    %2301 = vmatmul.f32.gmra.mxu0 %v2264
    %v2302 = vpop.f32.mrf.mxu0
    %v2303 = vadd.f32 0.0, %v2302
    %2304 = vdwg.mxu0
    %2305 = vmatpush.msra.mxu0 %v533
    %2306 = vmatpush.msra.mxu0 %v530
    %2307 = vmatpush.msra.mxu0 %v527
    %2308 = vmatpush.msra.mxu0 %v524
    %2309 = vmatpush.msra.mxu0 %v521
    %2310 = vmatpush.msra.mxu0 %v518
    %2311 = vmatpush.msra.mxu0 %v515
    %2312 = vmatpush.msra.mxu0 %v512
    %2313 = vmatpush.msra.mxu0 %v509
    %2314 = vmatpush.msra.mxu0 %v506
    %2315 = vmatpush.msra.mxu0 %v503
    %2316 = vmatpush.msra.mxu0 %v500
    %2317 = vmatpush.msra.mxu0 %v497
    %2318 = vmatpush.msra.mxu0 %v494
    %2319 = vmatpush.msra.mxu0 %v491
    %2320 = vmatpush.msra.mxu0 %v488
    %2321 = vmatmul.f32.gmra.mxu0 %v2264
    %v2322 = vpop.f32.mrf.mxu0
    %v2323 = vadd.f32 0.0, %v2322
    %2324 = vdwg.mxu0
    %v2325 = vadd.f32 %v2151, %v2283
    %v2326 = vxor.u32 %v2325, 2147483648
    %v2327 = vmul.f32 %v2326, 1.442695
    %v2328 = vpow.pop %v2327
    %v2329 = vadd.f32 %v2328, 1.0
    %v2330 = vrcp.pop %v2329
    %v2331 = vmul.f32 %v2329, %v2330
    %v2332 = vsub.f32 1.0, %v2331
    %v2333 = vmul.f32 %v2330, %v2332
    %v2334 = vadd.f32 %v2330, %v2333
    %vm2335 = vweird.f32 %v2329
    %vm2336 = vweird.f32 %v2330
    %vm2337 = vmor %vm2335, %vm2336
    %v2338 = vsel %vm2337, %v2330, %v2334
    %v2339 = vand.u32 2147483647, %v2329
    %vm2340 = vcmp.eq.f32.partialorder %v2339, 8.507059e+37
    %v2341 = vand.u32 %v2329, 2147483648
    %v2342 = vor.u32 1.1754944e-38, %v2341
    %v2343 = vsel %vm2340, %v2342, %v2338
    %v2344 = vmul.f32 1.0, %v2343
    %v2345 = vadd.f32 %v2152, %v2303
    %v2346 = vxor.u32 %v2345, 2147483648
    %v2347 = vmul.f32 %v2346, 1.442695
    %v2348 = vpow.pop %v2347
    %v2349 = vadd.f32 %v2348, 1.0
    %v2350 = vrcp.pop %v2349
    %v2351 = vmul.f32 %v2349, %v2350
    %v2352 = vsub.f32 1.0, %v2351
    %v2353 = vmul.f32 %v2350, %v2352
    %v2354 = vadd.f32 %v2350, %v2353
    %vm2355 = vweird.f32 %v2349
    %vm2356 = vweird.f32 %v2350
    %vm2357 = vmor %vm2355, %vm2356
    %v2358 = vsel %vm2357, %v2350, %v2354
    %v2359 = vand.u32 2147483647, %v2349
    %vm2360 = vcmp.eq.f32.partialorder %v2359, 8.507059e+37
    %v2361 = vand.u32 %v2349, 2147483648
    %v2362 = vor.u32 1.1754944e-38, %v2361
    %v2363 = vsel %vm2360, %v2362, %v2358
    %v2364 = vmul.f32 1.0, %v2363
    %v2365 = vadd.f32 %v2323, %v540
    %v2366 = vmul.f32 %v2344, %v2365
    %v2367 = vadd.f32 %v2153, %v2366
    %v2368 = vtanh.pop %v2367
    %v2369 = vsub.f32 1.0, %v2364
    %v2370 = vmul.f32 %v2369, %v2368
    %v2371 = vmul.f32 %v2364, %v2264
    %v2372 = vadd.f32 %v2370, %v2371
    %2373 = vst [vmem:[#allocation4] sm:$0xff] %v2372
    %v2374 = vld [vmem:[#allocation3] sm:$0xff]
    %v2375 = vld [vmem:[%s7] sm:$0x1]
    %v2377 = vperm.slane %v2375, 0
    %v2379 = vmul.f32 %v2374, %v2377
    %2380 = vadd.xlane.f32.xlu0 %v2379
    %v2381 = vpop.xlane.xlu0 %2380
    %v2382 = vld [vmem:[#allocation4] sm:$0xff]
    %v2383 = vld [vmem:[%s8] sm:$0x1]
    %v2385 = vperm.slane %v2383, 0
    %v2387 = vmul.f32 %v2382, %v2385
    %2388 = vadd.xlane.f32.xlu0 %v2387
    %v2389 = vpop.xlane.xlu0 %2388
    %v2390 = vadd.f32 %v2381, %v2389
    %v2391 = vld [vmem:[%s9] sm:$0x1]
    %v2393 = vperm.slane %v2391, 0
    %v2395 = vadd.f32 %v2390, %v2393
    %2396 = vst [vmem:[#allocation11] sm:$0xff] %v2395
    // Predicated region
    $region54: #{tpu_custom_call.1} parent=1 // pred_check
      _
    $region55: #{tpu_custom_call.1} parent=1 // pred_check_branch
      %2398 = sbr.rel (0) target = $region57
    $region56: #{tpu_custom_call.1} parent=1 // pred_region
      %2400 = vsyncadd [#allocation7], 0
      %s2402 = sshll.u32 [#allocation11], 4
      %s2403 = int_to_ptr.vmem [resolvable:$true] %s2402
      %s2404 = sshll.u32 %s10, 4
      %s2405 = int_to_ptr.hbm [resolvable:$true] %s2404
      %2407 = dma.vmem_to_hbm [thread:$0]  %s2403, 128, %s2405, [#allocation7]
    $region57: #{tpu_custom_call.1} parent=1 // pred_fallthru
      _
    // Predicated region
    $region58: #{tpu_custom_call.1} parent=1 // pred_check
      _
    $region59: #{tpu_custom_call.1} parent=1 // pred_check_branch
      %2409 = sbr.rel (0) target = $region61
    $region60: #{tpu_custom_call.1} parent=1 // pred_region
      %2411 = dma.done [#allocation7], 128
    $region61: #{tpu_custom_call.1} parent=1 // pred_fallthru
      _
    %2412 = vsyncpa [#allocation6], 1
    %2413 = vsyncpa [#allocation9], 1
    %2414 = vsyncpa [#allocation7], 1

</llo_original>
